<compile_context>
chip_gen: v6e
topology: v6e:2x2x1
jax: 0.10.0
libtpu: 0.0.40
codegen_flags: <defaults>
</compile_context>

<pallas_src>
import random

import jax
import jax.numpy as jnp
from jax import lax
from jax.experimental import pallas as pl
from jax.experimental.pallas import tpu as pltpu

# ---- model sizes (forward-consistent, n_layers == 1) ----
SRC_LEN = 8
TRG_LEN = 8
BATCH = 2
SRC_VOCAB = 16
TRG_VOCAB = 16          # decoder.out_dim
EMB_DIM = 128
HID_DIM = 128           # encoder.hid_dim == decoder.hid_dim
N_LAYERS = 1            # encoder.n_layers == decoder.n_layers

# ---- TPU-friendly padded sizes ----
B_PAD = 8               # one full sublane tile
V_PAD = 128             # one full lane tile (shared pad for both vocabularies)
NEG_BIG = -1e30         # bias padding so argmax never picks a padded column


# ---------------------------------------------------------------------------
# Single fused kernel: encoder recurrence + teacher-forced greedy decoder.
# ---------------------------------------------------------------------------
def seq2seq_kernel(src_ref, trg_ref, tf_ref,                 # SMEM int32
                   enc_emb_ref, enc_w_ref, enc_b_ref,        # VMEM f32
                   dec_emb_ref, dec_w_ref, dec_b_ref,
                   dec_wout_ref, dec_bout_ref,
                   out_ref):                                  # [T, B_PAD, V_PAD]
    # Hoisted iota constants (reused by every one-hot / argmax below).
    sub = lax.broadcasted_iota(jnp.int32, (B_PAD, V_PAD), 0)
    lane = lax.broadcasted_iota(jnp.int32, (B_PAD, V_PAD), 1)

    def token_one_hot(tok_ref, t):
        # One-hot [B_PAD, V_PAD] for tokens tok_ref[t, 0:BATCH]; padded batch
        # rows get id -1 -> all-zero row -> zero embedding.
        ids = jnp.full((B_PAD, V_PAD), -1, jnp.int32)
        for b in range(BATCH):
            ids = jnp.where(sub == b, tok_ref[t, b], ids)
        return (ids == lane).astype(jnp.float32)

    # Hoisted bias broadcasts (done once, not per time step).
    enc_b = jnp.broadcast_to(enc_b_ref[...], (B_PAD, 4 * HID_DIM))
    dec_b = jnp.broadcast_to(dec_b_ref[...], (B_PAD, 4 * HID_DIM))
    bout = jnp.broadcast_to(dec_bout_ref[...], (B_PAD, V_PAD))

    enc_emb = enc_emb_ref[...]
    enc_w = enc_w_ref[...]
    dec_emb = dec_emb_ref[...]
    dec_w = dec_w_ref[...]
    wout = dec_wout_ref[...]

    def lstm_cell(x, h, c, w, b):
        # w = [E+H, 4H] (W_ih^T stacked on W_hh^T), b already broadcast.
        xh = jnp.concatenate([x, h], axis=-1)                             # [B, E+H]
        gates = jnp.dot(xh, w, preferred_element_type=jnp.float32) + b    # [B, 4H]
        i = jax.nn.sigmoid(gates[:, 0 * HID_DIM:1 * HID_DIM])
        f = jax.nn.sigmoid(gates[:, 1 * HID_DIM:2 * HID_DIM])
        g = jnp.tanh(gates[:, 2 * HID_DIM:3 * HID_DIM])
        o = jax.nn.sigmoid(gates[:, 3 * HID_DIM:4 * HID_DIM])
        c_new = f * c + i * g
        h_new = o * jnp.tanh(c_new)
        return h_new, c_new

    # ---- Encoder: fully unrolled over the S=8 source steps ----
    h = jnp.zeros((B_PAD, HID_DIM), jnp.float32)
    c = jnp.zeros((B_PAD, HID_DIM), jnp.float32)
    for t in range(SRC_LEN):
        x = jnp.dot(token_one_hot(src_ref, t), enc_emb,
                    preferred_element_type=jnp.float32)                   # [B, E]
        h, c = lstm_cell(x, h, c, enc_w, enc_b)

    # ---- Decoder: fully unrolled, step g produces outputs[g + 1] ----
    out_ref[0] = jnp.zeros((B_PAD, V_PAD), jnp.float32)   # outputs[0] stays zero
    prev_oh = jnp.zeros((B_PAD, V_PAD), jnp.float32)      # greedy one-hot carry
    for g in range(TRG_LEN - 1):
        trg_oh = token_one_hot(trg_ref, g)
        if g == 0:
            inp_oh = trg_oh                               # inp = trg[0] always
        else:
            inp_oh = jnp.where(tf_ref[g] != 0, trg_oh, prev_oh)

        x = jnp.dot(inp_oh, dec_emb, preferred_element_type=jnp.float32)
        h, c = lstm_cell(x, h, c, dec_w, dec_b)
        logits = jnp.dot(h, wout, preferred_element_type=jnp.float32) + bout
        out_ref[g + 1] = logits

        if g < TRG_LEN - 2:
            # Greedy token as a one-hot (first-max tie-break, like torch.argmax).
            m = jnp.max(logits, axis=-1, keepdims=True)
            cand = jnp.where(logits >= m, lane, V_PAD)
            top1 = jnp.min(cand, axis=-1, keepdims=True)
            prev_oh = (lane == top1).astype(jnp.float32)


# ---------------------------------------------------------------------------
# Forward wrapper: one pallas_call, then slice away batch / vocab padding.
# ---------------------------------------------------------------------------
@jax.jit
def seq2seq_forward(params, src, trg, tf_mask):
    smem = pl.BlockSpec(memory_space=pltpu.MemorySpace.SMEM)
    vmem = pl.BlockSpec(memory_space=pltpu.MemorySpace.VMEM)
    out = pl.pallas_call(
        seq2seq_kernel,
        out_shape=jax.ShapeDtypeStruct((TRG_LEN, B_PAD, V_PAD), jnp.float32),
        in_specs=[smem, smem, smem] + [vmem] * 8,
        out_specs=vmem,
    )(src, trg, tf_mask,
      params["enc_emb"], params["enc_w"], params["enc_b"],
      params["dec_emb"], params["dec_w"], params["dec_b"],
      params["dec_wout"], params["dec_bout"])
    return out[:, :BATCH, :TRG_VOCAB]


# ---------------------------------------------------------------------------
# Deterministic parameters (torch.nn.LSTM / Linear layouts), fused & padded
# ONCE at build time: stacked [E+H, 4H] weights, summed biases, zero-padded
# embeddings / output weight, -1e30-padded output bias.
# ---------------------------------------------------------------------------
def make_params(key):
    keys = jax.random.split(key, 10)
    scale = 0.1

    def rnd(k, shape):
        return (scale * jax.random.normal(k, shape)).astype(jnp.float32)

    enc_emb = rnd(keys[0], (SRC_VOCAB, EMB_DIM))
    enc_wih_t = rnd(keys[1], (EMB_DIM, 4 * HID_DIM))      # W_ih^T
    enc_whh_t = rnd(keys[2], (HID_DIM, 4 * HID_DIM))      # W_hh^T
    enc_b = rnd(keys[3], (1, 4 * HID_DIM))                # b_ih + b_hh

    dec_emb = rnd(keys[4], (TRG_VOCAB, EMB_DIM))
    dec_wih_t = rnd(keys[5], (EMB_DIM, 4 * HID_DIM))
    dec_whh_t = rnd(keys[6], (HID_DIM, 4 * HID_DIM))
    dec_b = rnd(keys[7], (1, 4 * HID_DIM))
    dec_wout_t = rnd(keys[8], (HID_DIM, TRG_VOCAB))       # fc_out.weight^T
    dec_bout = rnd(keys[9], (1, TRG_VOCAB))

    return {
        "enc_emb": jnp.zeros((V_PAD, EMB_DIM), jnp.float32).at[:SRC_VOCAB].set(enc_emb),
        "enc_w":   jnp.concatenate([enc_wih_t, enc_whh_t], axis=0),   # [E+H, 4H]
        "enc_b":   enc_b,
        "dec_emb": jnp.zeros((V_PAD, EMB_DIM), jnp.float32).at[:TRG_VOCAB].set(dec_emb),
        "dec_w":   jnp.concatenate([dec_wih_t, dec_whh_t], axis=0),
        "dec_b":   dec_b,
        "dec_wout": jnp.zeros((HID_DIM, V_PAD), jnp.float32)
                       .at[:, :TRG_VOCAB].set(dec_wout_t),
        "dec_bout": jnp.full((1, V_PAD), NEG_BIG, jnp.float32)
                       .at[:, :TRG_VOCAB].set(dec_bout),
    }


if __name__ == "__main__":
    # TODO(synk): teacher forcing uses host Python RNG (as in the reference);
    # decisions are drawn here and passed to the kernel as an int32 SMEM mask.
    random.seed(0)
    teacher_forcing_ratio = 0.5
    tf_mask = jnp.asarray(
        [1] + [int(random.random() < teacher_forcing_ratio)
               for _ in range(1, TRG_LEN)], dtype=jnp.int32)

    key = jax.random.PRNGKey(0)
    k_params, k_src, k_trg = jax.random.split(key, 3)

    params = make_params(k_params)
    src = jax.random.randint(k_src, (SRC_LEN, BATCH), 0, SRC_VOCAB, jnp.int32)
    trg = jax.random.randint(k_trg, (TRG_LEN, BATCH), 0, TRG_VOCAB, jnp.int32)

    outputs = seq2seq_forward(params, src, trg, tf_mask)
    outputs = jax.block_until_ready(outputs)

    assert outputs.shape == (TRG_LEN, BATCH, TRG_VOCAB)
    assert bool(jnp.all(jnp.isfinite(outputs)))
    print("KERNEL_OK")
</pallas_src>

<mosaic_0001>
module attributes {stable_mosaic.version = 11 : i64} {
  func.func @seq2seq_kernel(%arg0: memref<8x2xi32, #tpu.memory_space<smem>>, %arg1: memref<8x2xi32, #tpu.memory_space<smem>>, %arg2: memref<8xi32, #tpu.memory_space<smem>>, %arg3: memref<128x128xf32, #tpu.memory_space<vmem>>, %arg4: memref<256x512xf32, #tpu.memory_space<vmem>>, %arg5: memref<1x512xf32, #tpu.memory_space<vmem>>, %arg6: memref<128x128xf32, #tpu.memory_space<vmem>>, %arg7: memref<256x512xf32, #tpu.memory_space<vmem>>, %arg8: memref<1x512xf32, #tpu.memory_space<vmem>>, %arg9: memref<128x128xf32, #tpu.memory_space<vmem>>, %arg10: memref<1x128xf32, #tpu.memory_space<vmem>>, %arg11: memref<8x8x128xf32, #tpu.memory_space<vmem>>) attributes {dimension_semantics = [], scalar_prefetch = 0 : i64, scratch_operands = 0 : i64, tpu.core_type = #tpu.core_type<tc>} {
    %0 = tpu.iota {dimensions = array<i32: 0>} : vector<8x128xi32>
    %1 = tpu.iota {dimensions = array<i32: 1>} : vector<8x128xi32>
    %c0 = arith.constant 0 : index
    %c0_0 = arith.constant 0 : index
    %2 = vector.load %arg5[%c0, %c0_0] : memref<1x512xf32, #tpu.memory_space<vmem>>, vector<1x512xf32>
    %3 = vector.shape_cast %2 : vector<1x512xf32> to vector<1x512xf32>
    %4 = vector.broadcast %3 : vector<1x512xf32> to vector<8x512xf32>
    %c0_1 = arith.constant 0 : index
    %c0_2 = arith.constant 0 : index
    %5 = vector.load %arg8[%c0_1, %c0_2] : memref<1x512xf32, #tpu.memory_space<vmem>>, vector<1x512xf32>
    %6 = vector.shape_cast %5 : vector<1x512xf32> to vector<1x512xf32>
    %7 = vector.broadcast %6 : vector<1x512xf32> to vector<8x512xf32>
    %c0_3 = arith.constant 0 : index
    %c0_4 = arith.constant 0 : index
    %8 = vector.load %arg10[%c0_3, %c0_4] : memref<1x128xf32, #tpu.memory_space<vmem>>, vector<1x128xf32>
    %9 = vector.shape_cast %8 : vector<1x128xf32> to vector<1x128xf32>
    %10 = vector.broadcast %9 : vector<1x128xf32> to vector<8x128xf32>
    %c0_5 = arith.constant 0 : index
    %c0_6 = arith.constant 0 : index
    %11 = vector.load %arg3[%c0_5, %c0_6] : memref<128x128xf32, #tpu.memory_space<vmem>>, vector<128x128xf32>
    %c0_7 = arith.constant 0 : index
    %c0_8 = arith.constant 0 : index
    %12 = vector.load %arg4[%c0_7, %c0_8] : memref<256x512xf32, #tpu.memory_space<vmem>>, vector<256x512xf32>
    %c0_9 = arith.constant 0 : index
    %c0_10 = arith.constant 0 : index
    %13 = vector.load %arg6[%c0_9, %c0_10] : memref<128x128xf32, #tpu.memory_space<vmem>>, vector<128x128xf32>
    %c0_11 = arith.constant 0 : index
    %c0_12 = arith.constant 0 : index
    %14 = vector.load %arg7[%c0_11, %c0_12] : memref<256x512xf32, #tpu.memory_space<vmem>>, vector<256x512xf32>
    %c0_13 = arith.constant 0 : index
    %c0_14 = arith.constant 0 : index
    %15 = vector.load %arg9[%c0_13, %c0_14] : memref<128x128xf32, #tpu.memory_space<vmem>>, vector<128x128xf32>
    %cst = arith.constant 0.000000e+00 : f32
    %16 = vector.broadcast %cst : f32 to vector<8x128xf32>
    %cst_15 = arith.constant 0.000000e+00 : f32
    %17 = vector.broadcast %cst_15 : f32 to vector<8x128xf32>
    %c-1_i32 = arith.constant -1 : i32
    %18 = vector.broadcast %c-1_i32 : i32 to vector<8x128xi32>
    %c0_i32 = arith.constant 0 : i32
    %19 = vector.broadcast %c0_i32 : i32 to vector<8x128xi32>
    %20 = arith.cmpi eq, %0, %19 : vector<8x128xi32>
    %c0_16 = arith.constant 0 : index
    %c0_17 = arith.constant 0 : index
    %21 = memref.load %arg0[%c0_16, %c0_17] : memref<8x2xi32, #tpu.memory_space<smem>>
    %22 = vector.broadcast %21 : i32 to vector<8x128xi32>
    %23 = arith.select %20, %22, %18 : vector<8x128xi1>, vector<8x128xi32>
    %c1_i32 = arith.constant 1 : i32
    %24 = vector.broadcast %c1_i32 : i32 to vector<8x128xi32>
    %25 = arith.cmpi eq, %0, %24 : vector<8x128xi32>
    %c0_18 = arith.constant 0 : index
    %c1 = arith.constant 1 : index
    %26 = memref.load %arg0[%c0_18, %c1] : memref<8x2xi32, #tpu.memory_space<smem>>
    %27 = vector.broadcast %26 : i32 to vector<8x128xi32>
    %28 = arith.select %25, %27, %23 : vector<8x128xi1>, vector<8x128xi32>
    %29 = arith.cmpi eq, %28, %1 : vector<8x128xi32>
    %30 = arith.extui %29 : vector<8x128xi1> to vector<8x128xi32>
    %31 = arith.sitofp %30 : vector<8x128xi32> to vector<8x128xf32>
    %cst_19 = arith.constant dense<0.000000e+00> : vector<8x128xf32>
    %32 = tpu.matmul %31, %11, %cst_19 {dimension_numbers = #tpu.dot_dimension_numbers<[1], [0], [0], [1], [0, 0, 1, 1], [], []>} : vector<8x128xf32>, vector<128x128xf32>, vector<8x128xf32> -> vector<8x128xf32>
    %33 = tpu.concatenate %32, %16 in 1 : vector<8x128xf32>, vector<8x128xf32> -> vector<8x256xf32>
    %cst_20 = arith.constant dense<0.000000e+00> : vector<8x512xf32>
    %34 = tpu.matmul %33, %12, %cst_20 {dimension_numbers = #tpu.dot_dimension_numbers<[1], [0], [0], [1], [0, 0, 1, 1], [], []>} : vector<8x256xf32>, vector<256x512xf32>, vector<8x512xf32> -> vector<8x512xf32>
    %35 = arith.addf %34, %4 : vector<8x512xf32>
    %36 = vector.extract_strided_slice %35 {offsets = [0, 0], sizes = [8, 128], strides = [1, 1]} : vector<8x512xf32> to vector<8x128xf32>
    %37 = arith.negf %36 : vector<8x128xf32>
    %38 = math.exp %37 : vector<8x128xf32>
    %cst_21 = arith.constant 1.000000e+00 : f32
    %39 = vector.broadcast %cst_21 : f32 to vector<8x128xf32>
    %40 = arith.addf %39, %38 : vector<8x128xf32>
    %41 = arith.divf %39, %40 : vector<8x128xf32>
    %42 = vector.extract_strided_slice %35 {offsets = [0, 128], sizes = [8, 128], strides = [1, 1]} : vector<8x512xf32> to vector<8x128xf32>
    %43 = arith.negf %42 : vector<8x128xf32>
    %44 = math.exp %43 : vector<8x128xf32>
    %cst_22 = arith.constant 1.000000e+00 : f32
    %45 = vector.broadcast %cst_22 : f32 to vector<8x128xf32>
    %46 = arith.addf %45, %44 : vector<8x128xf32>
    %47 = arith.divf %45, %46 : vector<8x128xf32>
    %48 = vector.extract_strided_slice %35 {offsets = [0, 256], sizes = [8, 128], strides = [1, 1]} : vector<8x512xf32> to vector<8x128xf32>
    %49 = math.tanh %48 : vector<8x128xf32>
    %50 = vector.extract_strided_slice %35 {offsets = [0, 384], sizes = [8, 128], strides = [1, 1]} : vector<8x512xf32> to vector<8x128xf32>
    %51 = arith.negf %50 : vector<8x128xf32>
    %52 = math.exp %51 : vector<8x128xf32>
    %cst_23 = arith.constant 1.000000e+00 : f32
    %53 = vector.broadcast %cst_23 : f32 to vector<8x128xf32>
    %54 = arith.addf %53, %52 : vector<8x128xf32>
    %55 = arith.divf %53, %54 : vector<8x128xf32>
    %56 = arith.mulf %47, %17 : vector<8x128xf32>
    %57 = arith.mulf %41, %49 : vector<8x128xf32>
    %58 = arith.addf %56, %57 : vector<8x128xf32>
    %59 = math.tanh %58 : vector<8x128xf32>
    %60 = arith.mulf %55, %59 : vector<8x128xf32>
    %c-1_i32_24 = arith.constant -1 : i32
    %61 = vector.broadcast %c-1_i32_24 : i32 to vector<8x128xi32>
    %c0_i32_25 = arith.constant 0 : i32
    %62 = vector.broadcast %c0_i32_25 : i32 to vector<8x128xi32>
    %63 = arith.cmpi eq, %0, %62 : vector<8x128xi32>
    %c1_26 = arith.constant 1 : index
    %c0_27 = arith.constant 0 : index
    %64 = memref.load %arg0[%c1_26, %c0_27] : memref<8x2xi32, #tpu.memory_space<smem>>
    %65 = vector.broadcast %64 : i32 to vector<8x128xi32>
    %66 = arith.select %63, %65, %61 : vector<8x128xi1>, vector<8x128xi32>
    %c1_i32_28 = arith.constant 1 : i32
    %67 = vector.broadcast %c1_i32_28 : i32 to vector<8x128xi32>
    %68 = arith.cmpi eq, %0, %67 : vector<8x128xi32>
    %c1_29 = arith.constant 1 : index
    %c1_30 = arith.constant 1 : index
    %69 = memref.load %arg0[%c1_29, %c1_30] : memref<8x2xi32, #tpu.memory_space<smem>>
    %70 = vector.broadcast %69 : i32 to vector<8x128xi32>
    %71 = arith.select %68, %70, %66 : vector<8x128xi1>, vector<8x128xi32>
    %72 = arith.cmpi eq, %71, %1 : vector<8x128xi32>
    %73 = arith.extui %72 : vector<8x128xi1> to vector<8x128xi32>
    %74 = arith.sitofp %73 : vector<8x128xi32> to vector<8x128xf32>
    %cst_31 = arith.constant dense<0.000000e+00> : vector<8x128xf32>
    %75 = tpu.matmul %74, %11, %cst_31 {dimension_numbers = #tpu.dot_dimension_numbers<[1], [0], [0], [1], [0, 0, 1, 1], [], []>} : vector<8x128xf32>, vector<128x128xf32>, vector<8x128xf32> -> vector<8x128xf32>
    %76 = tpu.concatenate %75, %60 in 1 : vector<8x128xf32>, vector<8x128xf32> -> vector<8x256xf32>
    %cst_32 = arith.constant dense<0.000000e+00> : vector<8x512xf32>
    %77 = tpu.matmul %76, %12, %cst_32 {dimension_numbers = #tpu.dot_dimension_numbers<[1], [0], [0], [1], [0, 0, 1, 1], [], []>} : vector<8x256xf32>, vector<256x512xf32>, vector<8x512xf32> -> vector<8x512xf32>
    %78 = arith.addf %77, %4 : vector<8x512xf32>
    %79 = vector.extract_strided_slice %78 {offsets = [0, 0], sizes = [8, 128], strides = [1, 1]} : vector<8x512xf32> to vector<8x128xf32>
    %80 = arith.negf %79 : vector<8x128xf32>
    %81 = math.exp %80 : vector<8x128xf32>
    %cst_33 = arith.constant 1.000000e+00 : f32
    %82 = vector.broadcast %cst_33 : f32 to vector<8x128xf32>
    %83 = arith.addf %82, %81 : vector<8x128xf32>
    %84 = arith.divf %82, %83 : vector<8x128xf32>
    %85 = vector.extract_strided_slice %78 {offsets = [0, 128], sizes = [8, 128], strides = [1, 1]} : vector<8x512xf32> to vector<8x128xf32>
    %86 = arith.negf %85 : vector<8x128xf32>
    %87 = math.exp %86 : vector<8x128xf32>
    %cst_34 = arith.constant 1.000000e+00 : f32
    %88 = vector.broadcast %cst_34 : f32 to vector<8x128xf32>
    %89 = arith.addf %88, %87 : vector<8x128xf32>
    %90 = arith.divf %88, %89 : vector<8x128xf32>
    %91 = vector.extract_strided_slice %78 {offsets = [0, 256], sizes = [8, 128], strides = [1, 1]} : vector<8x512xf32> to vector<8x128xf32>
    %92 = math.tanh %91 : vector<8x128xf32>
    %93 = vector.extract_strided_slice %78 {offsets = [0, 384], sizes = [8, 128], strides = [1, 1]} : vector<8x512xf32> to vector<8x128xf32>
    %94 = arith.negf %93 : vector<8x128xf32>
    %95 = math.exp %94 : vector<8x128xf32>
    %cst_35 = arith.constant 1.000000e+00 : f32
    %96 = vector.broadcast %cst_35 : f32 to vector<8x128xf32>
    %97 = arith.addf %96, %95 : vector<8x128xf32>
    %98 = arith.divf %96, %97 : vector<8x128xf32>
    %99 = arith.mulf %90, %58 : vector<8x128xf32>
    %100 = arith.mulf %84, %92 : vector<8x128xf32>
    %101 = arith.addf %99, %100 : vector<8x128xf32>
    %102 = math.tanh %101 : vector<8x128xf32>
    %103 = arith.mulf %98, %102 : vector<8x128xf32>
    %c-1_i32_36 = arith.constant -1 : i32
    %104 = vector.broadcast %c-1_i32_36 : i32 to vector<8x128xi32>
    %c0_i32_37 = arith.constant 0 : i32
    %105 = vector.broadcast %c0_i32_37 : i32 to vector<8x128xi32>
    %106 = arith.cmpi eq, %0, %105 : vector<8x128xi32>
    %c2 = arith.constant 2 : index
    %c0_38 = arith.constant 0 : index
    %107 = memref.load %arg0[%c2, %c0_38] : memref<8x2xi32, #tpu.memory_space<smem>>
    %108 = vector.broadcast %107 : i32 to vector<8x128xi32>
    %109 = arith.select %106, %108, %104 : vector<8x128xi1>, vector<8x128xi32>
    %c1_i32_39 = arith.constant 1 : i32
    %110 = vector.broadcast %c1_i32_39 : i32 to vector<8x128xi32>
    %111 = arith.cmpi eq, %0, %110 : vector<8x128xi32>
    %c2_40 = arith.constant 2 : index
    %c1_41 = arith.constant 1 : index
    %112 = memref.load %arg0[%c2_40, %c1_41] : memref<8x2xi32, #tpu.memory_space<smem>>
    %113 = vector.broadcast %112 : i32 to vector<8x128xi32>
    %114 = arith.select %111, %113, %109 : vector<8x128xi1>, vector<8x128xi32>
    %115 = arith.cmpi eq, %114, %1 : vector<8x128xi32>
    %116 = arith.extui %115 : vector<8x128xi1> to vector<8x128xi32>
    %117 = arith.sitofp %116 : vector<8x128xi32> to vector<8x128xf32>
    %cst_42 = arith.constant dense<0.000000e+00> : vector<8x128xf32>
    %118 = tpu.matmul %117, %11, %cst_42 {dimension_numbers = #tpu.dot_dimension_numbers<[1], [0], [0], [1], [0, 0, 1, 1], [], []>} : vector<8x128xf32>, vector<128x128xf32>, vector<8x128xf32> -> vector<8x128xf32>
    %119 = tpu.concatenate %118, %103 in 1 : vector<8x128xf32>, vector<8x128xf32> -> vector<8x256xf32>
    %cst_43 = arith.constant dense<0.000000e+00> : vector<8x512xf32>
    %120 = tpu.matmul %119, %12, %cst_43 {dimension_numbers = #tpu.dot_dimension_numbers<[1], [0], [0], [1], [0, 0, 1, 1], [], []>} : vector<8x256xf32>, vector<256x512xf32>, vector<8x512xf32> -> vector<8x512xf32>
    %121 = arith.addf %120, %4 : vector<8x512xf32>
    %122 = vector.extract_strided_slice %121 {offsets = [0, 0], sizes = [8, 128], strides = [1, 1]} : vector<8x512xf32> to vector<8x128xf32>
    %123 = arith.negf %122 : vector<8x128xf32>
    %124 = math.exp %123 : vector<8x128xf32>
    %cst_44 = arith.constant 1.000000e+00 : f32
    %125 = vector.broadcast %cst_44 : f32 to vector<8x128xf32>
    %126 = arith.addf %125, %124 : vector<8x128xf32>
    %127 = arith.divf %125, %126 : vector<8x128xf32>
    %128 = vector.extract_strided_slice %121 {offsets = [0, 128], sizes = [8, 128], strides = [1, 1]} : vector<8x512xf32> to vector<8x128xf32>
    %129 = arith.negf %128 : vector<8x128xf32>
    %130 = math.exp %129 : vector<8x128xf32>
    %cst_45 = arith.constant 1.000000e+00 : f32
    %131 = vector.broadcast %cst_45 : f32 to vector<8x128xf32>
    %132 = arith.addf %131, %130 : vector<8x128xf32>
    %133 = arith.divf %131, %132 : vector<8x128xf32>
    %134 = vector.extract_strided_slice %121 {offsets = [0, 256], sizes = [8, 128], strides = [1, 1]} : vector<8x512xf32> to vector<8x128xf32>
    %135 = math.tanh %134 : vector<8x128xf32>
    %136 = vector.extract_strided_slice %121 {offsets = [0, 384], sizes = [8, 128], strides = [1, 1]} : vector<8x512xf32> to vector<8x128xf32>
    %137 = arith.negf %136 : vector<8x128xf32>
    %138 = math.exp %137 : vector<8x128xf32>
    %cst_46 = arith.constant 1.000000e+00 : f32
    %139 = vector.broadcast %cst_46 : f32 to vector<8x128xf32>
    %140 = arith.addf %139, %138 : vector<8x128xf32>
    %141 = arith.divf %139, %140 : vector<8x128xf32>
    %142 = arith.mulf %133, %101 : vector<8x128xf32>
    %143 = arith.mulf %127, %135 : vector<8x128xf32>
    %144 = arith.addf %142, %143 : vector<8x128xf32>
    %145 = math.tanh %144 : vector<8x128xf32>
    %146 = arith.mulf %141, %145 : vector<8x128xf32>
    %c-1_i32_47 = arith.constant -1 : i32
    %147 = vector.broadcast %c-1_i32_47 : i32 to vector<8x128xi32>
    %c0_i32_48 = arith.constant 0 : i32
    %148 = vector.broadcast %c0_i32_48 : i32 to vector<8x128xi32>
    %149 = arith.cmpi eq, %0, %148 : vector<8x128xi32>
    %c3 = arith.constant 3 : index
    %c0_49 = arith.constant 0 : index
    %150 = memref.load %arg0[%c3, %c0_49] : memref<8x2xi32, #tpu.memory_space<smem>>
    %151 = vector.broadcast %150 : i32 to vector<8x128xi32>
    %152 = arith.select %149, %151, %147 : vector<8x128xi1>, vector<8x128xi32>
    %c1_i32_50 = arith.constant 1 : i32
    %153 = vector.broadcast %c1_i32_50 : i32 to vector<8x128xi32>
    %154 = arith.cmpi eq, %0, %153 : vector<8x128xi32>
    %c3_51 = arith.constant 3 : index
    %c1_52 = arith.constant 1 : index
    %155 = memref.load %arg0[%c3_51, %c1_52] : memref<8x2xi32, #tpu.memory_space<smem>>
    %156 = vector.broadcast %155 : i32 to vector<8x128xi32>
    %157 = arith.select %154, %156, %152 : vector<8x128xi1>, vector<8x128xi32>
    %158 = arith.cmpi eq, %157, %1 : vector<8x128xi32>
    %159 = arith.extui %158 : vector<8x128xi1> to vector<8x128xi32>
    %160 = arith.sitofp %159 : vector<8x128xi32> to vector<8x128xf32>
    %cst_53 = arith.constant dense<0.000000e+00> : vector<8x128xf32>
    %161 = tpu.matmul %160, %11, %cst_53 {dimension_numbers = #tpu.dot_dimension_numbers<[1], [0], [0], [1], [0, 0, 1, 1], [], []>} : vector<8x128xf32>, vector<128x128xf32>, vector<8x128xf32> -> vector<8x128xf32>
    %162 = tpu.concatenate %161, %146 in 1 : vector<8x128xf32>, vector<8x128xf32> -> vector<8x256xf32>
    %cst_54 = arith.constant dense<0.000000e+00> : vector<8x512xf32>
    %163 = tpu.matmul %162, %12, %cst_54 {dimension_numbers = #tpu.dot_dimension_numbers<[1], [0], [0], [1], [0, 0, 1, 1], [], []>} : vector<8x256xf32>, vector<256x512xf32>, vector<8x512xf32> -> vector<8x512xf32>
    %164 = arith.addf %163, %4 : vector<8x512xf32>
    %165 = vector.extract_strided_slice %164 {offsets = [0, 0], sizes = [8, 128], strides = [1, 1]} : vector<8x512xf32> to vector<8x128xf32>
    %166 = arith.negf %165 : vector<8x128xf32>
    %167 = math.exp %166 : vector<8x128xf32>
    %cst_55 = arith.constant 1.000000e+00 : f32
    %168 = vector.broadcast %cst_55 : f32 to vector<8x128xf32>
    %169 = arith.addf %168, %167 : vector<8x128xf32>
    %170 = arith.divf %168, %169 : vector<8x128xf32>
    %171 = vector.extract_strided_slice %164 {offsets = [0, 128], sizes = [8, 128], strides = [1, 1]} : vector<8x512xf32> to vector<8x128xf32>
    %172 = arith.negf %171 : vector<8x128xf32>
    %173 = math.exp %172 : vector<8x128xf32>
    %cst_56 = arith.constant 1.000000e+00 : f32
    %174 = vector.broadcast %cst_56 : f32 to vector<8x128xf32>
    %175 = arith.addf %174, %173 : vector<8x128xf32>
    %176 = arith.divf %174, %175 : vector<8x128xf32>
    %177 = vector.extract_strided_slice %164 {offsets = [0, 256], sizes = [8, 128], strides = [1, 1]} : vector<8x512xf32> to vector<8x128xf32>
    %178 = math.tanh %177 : vector<8x128xf32>
    %179 = vector.extract_strided_slice %164 {offsets = [0, 384], sizes = [8, 128], strides = [1, 1]} : vector<8x512xf32> to vector<8x128xf32>
    %180 = arith.negf %179 : vector<8x128xf32>
    %181 = math.exp %180 : vector<8x128xf32>
    %cst_57 = arith.constant 1.000000e+00 : f32
    %182 = vector.broadcast %cst_57 : f32 to vector<8x128xf32>
    %183 = arith.addf %182, %181 : vector<8x128xf32>
    %184 = arith.divf %182, %183 : vector<8x128xf32>
    %185 = arith.mulf %176, %144 : vector<8x128xf32>
    %186 = arith.mulf %170, %178 : vector<8x128xf32>
    %187 = arith.addf %185, %186 : vector<8x128xf32>
    %188 = math.tanh %187 : vector<8x128xf32>
    %189 = arith.mulf %184, %188 : vector<8x128xf32>
    %c-1_i32_58 = arith.constant -1 : i32
    %190 = vector.broadcast %c-1_i32_58 : i32 to vector<8x128xi32>
    %c0_i32_59 = arith.constant 0 : i32
    %191 = vector.broadcast %c0_i32_59 : i32 to vector<8x128xi32>
    %192 = arith.cmpi eq, %0, %191 : vector<8x128xi32>
    %c4 = arith.constant 4 : index
    %c0_60 = arith.constant 0 : index
    %193 = memref.load %arg0[%c4, %c0_60] : memref<8x2xi32, #tpu.memory_space<smem>>
    %194 = vector.broadcast %193 : i32 to vector<8x128xi32>
    %195 = arith.select %192, %194, %190 : vector<8x128xi1>, vector<8x128xi32>
    %c1_i32_61 = arith.constant 1 : i32
    %196 = vector.broadcast %c1_i32_61 : i32 to vector<8x128xi32>
    %197 = arith.cmpi eq, %0, %196 : vector<8x128xi32>
    %c4_62 = arith.constant 4 : index
    %c1_63 = arith.constant 1 : index
    %198 = memref.load %arg0[%c4_62, %c1_63] : memref<8x2xi32, #tpu.memory_space<smem>>
    %199 = vector.broadcast %198 : i32 to vector<8x128xi32>
    %200 = arith.select %197, %199, %195 : vector<8x128xi1>, vector<8x128xi32>
    %201 = arith.cmpi eq, %200, %1 : vector<8x128xi32>
    %202 = arith.extui %201 : vector<8x128xi1> to vector<8x128xi32>
    %203 = arith.sitofp %202 : vector<8x128xi32> to vector<8x128xf32>
    %cst_64 = arith.constant dense<0.000000e+00> : vector<8x128xf32>
    %204 = tpu.matmul %203, %11, %cst_64 {dimension_numbers = #tpu.dot_dimension_numbers<[1], [0], [0], [1], [0, 0, 1, 1], [], []>} : vector<8x128xf32>, vector<128x128xf32>, vector<8x128xf32> -> vector<8x128xf32>
    %205 = tpu.concatenate %204, %189 in 1 : vector<8x128xf32>, vector<8x128xf32> -> vector<8x256xf32>
    %cst_65 = arith.constant dense<0.000000e+00> : vector<8x512xf32>
    %206 = tpu.matmul %205, %12, %cst_65 {dimension_numbers = #tpu.dot_dimension_numbers<[1], [0], [0], [1], [0, 0, 1, 1], [], []>} : vector<8x256xf32>, vector<256x512xf32>, vector<8x512xf32> -> vector<8x512xf32>
    %207 = arith.addf %206, %4 : vector<8x512xf32>
    %208 = vector.extract_strided_slice %207 {offsets = [0, 0], sizes = [8, 128], strides = [1, 1]} : vector<8x512xf32> to vector<8x128xf32>
    %209 = arith.negf %208 : vector<8x128xf32>
    %210 = math.exp %209 : vector<8x128xf32>
    %cst_66 = arith.constant 1.000000e+00 : f32
    %211 = vector.broadcast %cst_66 : f32 to vector<8x128xf32>
    %212 = arith.addf %211, %210 : vector<8x128xf32>
    %213 = arith.divf %211, %212 : vector<8x128xf32>
    %214 = vector.extract_strided_slice %207 {offsets = [0, 128], sizes = [8, 128], strides = [1, 1]} : vector<8x512xf32> to vector<8x128xf32>
    %215 = arith.negf %214 : vector<8x128xf32>
    %216 = math.exp %215 : vector<8x128xf32>
    %cst_67 = arith.constant 1.000000e+00 : f32
    %217 = vector.broadcast %cst_67 : f32 to vector<8x128xf32>
    %218 = arith.addf %217, %216 : vector<8x128xf32>
    %219 = arith.divf %217, %218 : vector<8x128xf32>
    %220 = vector.extract_strided_slice %207 {offsets = [0, 256], sizes = [8, 128], strides = [1, 1]} : vector<8x512xf32> to vector<8x128xf32>
    %221 = math.tanh %220 : vector<8x128xf32>
    %222 = vector.extract_strided_slice %207 {offsets = [0, 384], sizes = [8, 128], strides = [1, 1]} : vector<8x512xf32> to vector<8x128xf32>
    %223 = arith.negf %222 : vector<8x128xf32>
    %224 = math.exp %223 : vector<8x128xf32>
    %cst_68 = arith.constant 1.000000e+00 : f32
    %225 = vector.broadcast %cst_68 : f32 to vector<8x128xf32>
    %226 = arith.addf %225, %224 : vector<8x128xf32>
    %227 = arith.divf %225, %226 : vector<8x128xf32>
    %228 = arith.mulf %219, %187 : vector<8x128xf32>
    %229 = arith.mulf %213, %221 : vector<8x128xf32>
    %230 = arith.addf %228, %229 : vector<8x128xf32>
    %231 = math.tanh %230 : vector<8x128xf32>
    %232 = arith.mulf %227, %231 : vector<8x128xf32>
    %c-1_i32_69 = arith.constant -1 : i32
    %233 = vector.broadcast %c-1_i32_69 : i32 to vector<8x128xi32>
    %c0_i32_70 = arith.constant 0 : i32
    %234 = vector.broadcast %c0_i32_70 : i32 to vector<8x128xi32>
    %235 = arith.cmpi eq, %0, %234 : vector<8x128xi32>
    %c5 = arith.constant 5 : index
    %c0_71 = arith.constant 0 : index
    %236 = memref.load %arg0[%c5, %c0_71] : memref<8x2xi32, #tpu.memory_space<smem>>
    %237 = vector.broadcast %236 : i32 to vector<8x128xi32>
    %238 = arith.select %235, %237, %233 : vector<8x128xi1>, vector<8x128xi32>
    %c1_i32_72 = arith.constant 1 : i32
    %239 = vector.broadcast %c1_i32_72 : i32 to vector<8x128xi32>
    %240 = arith.cmpi eq, %0, %239 : vector<8x128xi32>
    %c5_73 = arith.constant 5 : index
    %c1_74 = arith.constant 1 : index
    %241 = memref.load %arg0[%c5_73, %c1_74] : memref<8x2xi32, #tpu.memory_space<smem>>
    %242 = vector.broadcast %241 : i32 to vector<8x128xi32>
    %243 = arith.select %240, %242, %238 : vector<8x128xi1>, vector<8x128xi32>
    %244 = arith.cmpi eq, %243, %1 : vector<8x128xi32>
    %245 = arith.extui %244 : vector<8x128xi1> to vector<8x128xi32>
    %246 = arith.sitofp %245 : vector<8x128xi32> to vector<8x128xf32>
    %cst_75 = arith.constant dense<0.000000e+00> : vector<8x128xf32>
    %247 = tpu.matmul %246, %11, %cst_75 {dimension_numbers = #tpu.dot_dimension_numbers<[1], [0], [0], [1], [0, 0, 1, 1], [], []>} : vector<8x128xf32>, vector<128x128xf32>, vector<8x128xf32> -> vector<8x128xf32>
    %248 = tpu.concatenate %247, %232 in 1 : vector<8x128xf32>, vector<8x128xf32> -> vector<8x256xf32>
    %cst_76 = arith.constant dense<0.000000e+00> : vector<8x512xf32>
    %249 = tpu.matmul %248, %12, %cst_76 {dimension_numbers = #tpu.dot_dimension_numbers<[1], [0], [0], [1], [0, 0, 1, 1], [], []>} : vector<8x256xf32>, vector<256x512xf32>, vector<8x512xf32> -> vector<8x512xf32>
    %250 = arith.addf %249, %4 : vector<8x512xf32>
    %251 = vector.extract_strided_slice %250 {offsets = [0, 0], sizes = [8, 128], strides = [1, 1]} : vector<8x512xf32> to vector<8x128xf32>
    %252 = arith.negf %251 : vector<8x128xf32>
    %253 = math.exp %252 : vector<8x128xf32>
    %cst_77 = arith.constant 1.000000e+00 : f32
    %254 = vector.broadcast %cst_77 : f32 to vector<8x128xf32>
    %255 = arith.addf %254, %253 : vector<8x128xf32>
    %256 = arith.divf %254, %255 : vector<8x128xf32>
    %257 = vector.extract_strided_slice %250 {offsets = [0, 128], sizes = [8, 128], strides = [1, 1]} : vector<8x512xf32> to vector<8x128xf32>
    %258 = arith.negf %257 : vector<8x128xf32>
    %259 = math.exp %258 : vector<8x128xf32>
    %cst_78 = arith.constant 1.000000e+00 : f32
    %260 = vector.broadcast %cst_78 : f32 to vector<8x128xf32>
    %261 = arith.addf %260, %259 : vector<8x128xf32>
    %262 = arith.divf %260, %261 : vector<8x128xf32>
    %263 = vector.extract_strided_slice %250 {offsets = [0, 256], sizes = [8, 128], strides = [1, 1]} : vector<8x512xf32> to vector<8x128xf32>
    %264 = math.tanh %263 : vector<8x128xf32>
    %265 = vector.extract_strided_slice %250 {offsets = [0, 384], sizes = [8, 128], strides = [1, 1]} : vector<8x512xf32> to vector<8x128xf32>
    %266 = arith.negf %265 : vector<8x128xf32>
    %267 = math.exp %266 : vector<8x128xf32>
    %cst_79 = arith.constant 1.000000e+00 : f32
    %268 = vector.broadcast %cst_79 : f32 to vector<8x128xf32>
    %269 = arith.addf %268, %267 : vector<8x128xf32>
    %270 = arith.divf %268, %269 : vector<8x128xf32>
    %271 = arith.mulf %262, %230 : vector<8x128xf32>
    %272 = arith.mulf %256, %264 : vector<8x128xf32>
    %273 = arith.addf %271, %272 : vector<8x128xf32>
    %274 = math.tanh %273 : vector<8x128xf32>
    %275 = arith.mulf %270, %274 : vector<8x128xf32>
    %c-1_i32_80 = arith.constant -1 : i32
    %276 = vector.broadcast %c-1_i32_80 : i32 to vector<8x128xi32>
    %c0_i32_81 = arith.constant 0 : i32
    %277 = vector.broadcast %c0_i32_81 : i32 to vector<8x128xi32>
    %278 = arith.cmpi eq, %0, %277 : vector<8x128xi32>
    %c6 = arith.constant 6 : index
    %c0_82 = arith.constant 0 : index
    %279 = memref.load %arg0[%c6, %c0_82] : memref<8x2xi32, #tpu.memory_space<smem>>
    %280 = vector.broadcast %279 : i32 to vector<8x128xi32>
    %281 = arith.select %278, %280, %276 : vector<8x128xi1>, vector<8x128xi32>
    %c1_i32_83 = arith.constant 1 : i32
    %282 = vector.broadcast %c1_i32_83 : i32 to vector<8x128xi32>
    %283 = arith.cmpi eq, %0, %282 : vector<8x128xi32>
    %c6_84 = arith.constant 6 : index
    %c1_85 = arith.constant 1 : index
    %284 = memref.load %arg0[%c6_84, %c1_85] : memref<8x2xi32, #tpu.memory_space<smem>>
    %285 = vector.broadcast %284 : i32 to vector<8x128xi32>
    %286 = arith.select %283, %285, %281 : vector<8x128xi1>, vector<8x128xi32>
    %287 = arith.cmpi eq, %286, %1 : vector<8x128xi32>
    %288 = arith.extui %287 : vector<8x128xi1> to vector<8x128xi32>
    %289 = arith.sitofp %288 : vector<8x128xi32> to vector<8x128xf32>
    %cst_86 = arith.constant dense<0.000000e+00> : vector<8x128xf32>
    %290 = tpu.matmul %289, %11, %cst_86 {dimension_numbers = #tpu.dot_dimension_numbers<[1], [0], [0], [1], [0, 0, 1, 1], [], []>} : vector<8x128xf32>, vector<128x128xf32>, vector<8x128xf32> -> vector<8x128xf32>
    %291 = tpu.concatenate %290, %275 in 1 : vector<8x128xf32>, vector<8x128xf32> -> vector<8x256xf32>
    %cst_87 = arith.constant dense<0.000000e+00> : vector<8x512xf32>
    %292 = tpu.matmul %291, %12, %cst_87 {dimension_numbers = #tpu.dot_dimension_numbers<[1], [0], [0], [1], [0, 0, 1, 1], [], []>} : vector<8x256xf32>, vector<256x512xf32>, vector<8x512xf32> -> vector<8x512xf32>
    %293 = arith.addf %292, %4 : vector<8x512xf32>
    %294 = vector.extract_strided_slice %293 {offsets = [0, 0], sizes = [8, 128], strides = [1, 1]} : vector<8x512xf32> to vector<8x128xf32>
    %295 = arith.negf %294 : vector<8x128xf32>
    %296 = math.exp %295 : vector<8x128xf32>
    %cst_88 = arith.constant 1.000000e+00 : f32
    %297 = vector.broadcast %cst_88 : f32 to vector<8x128xf32>
    %298 = arith.addf %297, %296 : vector<8x128xf32>
    %299 = arith.divf %297, %298 : vector<8x128xf32>
    %300 = vector.extract_strided_slice %293 {offsets = [0, 128], sizes = [8, 128], strides = [1, 1]} : vector<8x512xf32> to vector<8x128xf32>
    %301 = arith.negf %300 : vector<8x128xf32>
    %302 = math.exp %301 : vector<8x128xf32>
    %cst_89 = arith.constant 1.000000e+00 : f32
    %303 = vector.broadcast %cst_89 : f32 to vector<8x128xf32>
    %304 = arith.addf %303, %302 : vector<8x128xf32>
    %305 = arith.divf %303, %304 : vector<8x128xf32>
    %306 = vector.extract_strided_slice %293 {offsets = [0, 256], sizes = [8, 128], strides = [1, 1]} : vector<8x512xf32> to vector<8x128xf32>
    %307 = math.tanh %306 : vector<8x128xf32>
    %308 = vector.extract_strided_slice %293 {offsets = [0, 384], sizes = [8, 128], strides = [1, 1]} : vector<8x512xf32> to vector<8x128xf32>
    %309 = arith.negf %308 : vector<8x128xf32>
    %310 = math.exp %309 : vector<8x128xf32>
    %cst_90 = arith.constant 1.000000e+00 : f32
    %311 = vector.broadcast %cst_90 : f32 to vector<8x128xf32>
    %312 = arith.addf %311, %310 : vector<8x128xf32>
    %313 = arith.divf %311, %312 : vector<8x128xf32>
    %314 = arith.mulf %305, %273 : vector<8x128xf32>
    %315 = arith.mulf %299, %307 : vector<8x128xf32>
    %316 = arith.addf %314, %315 : vector<8x128xf32>
    %317 = math.tanh %316 : vector<8x128xf32>
    %318 = arith.mulf %313, %317 : vector<8x128xf32>
    %c-1_i32_91 = arith.constant -1 : i32
    %319 = vector.broadcast %c-1_i32_91 : i32 to vector<8x128xi32>
    %c0_i32_92 = arith.constant 0 : i32
    %320 = vector.broadcast %c0_i32_92 : i32 to vector<8x128xi32>
    %321 = arith.cmpi eq, %0, %320 : vector<8x128xi32>
    %c7 = arith.constant 7 : index
    %c0_93 = arith.constant 0 : index
    %322 = memref.load %arg0[%c7, %c0_93] : memref<8x2xi32, #tpu.memory_space<smem>>
    %323 = vector.broadcast %322 : i32 to vector<8x128xi32>
    %324 = arith.select %321, %323, %319 : vector<8x128xi1>, vector<8x128xi32>
    %c1_i32_94 = arith.constant 1 : i32
    %325 = vector.broadcast %c1_i32_94 : i32 to vector<8x128xi32>
    %326 = arith.cmpi eq, %0, %325 : vector<8x128xi32>
    %c7_95 = arith.constant 7 : index
    %c1_96 = arith.constant 1 : index
    %327 = memref.load %arg0[%c7_95, %c1_96] : memref<8x2xi32, #tpu.memory_space<smem>>
    %328 = vector.broadcast %327 : i32 to vector<8x128xi32>
    %329 = arith.select %326, %328, %324 : vector<8x128xi1>, vector<8x128xi32>
    %330 = arith.cmpi eq, %329, %1 : vector<8x128xi32>
    %331 = arith.extui %330 : vector<8x128xi1> to vector<8x128xi32>
    %332 = arith.sitofp %331 : vector<8x128xi32> to vector<8x128xf32>
    %cst_97 = arith.constant dense<0.000000e+00> : vector<8x128xf32>
    %333 = tpu.matmul %332, %11, %cst_97 {dimension_numbers = #tpu.dot_dimension_numbers<[1], [0], [0], [1], [0, 0, 1, 1], [], []>} : vector<8x128xf32>, vector<128x128xf32>, vector<8x128xf32> -> vector<8x128xf32>
    %334 = tpu.concatenate %333, %318 in 1 : vector<8x128xf32>, vector<8x128xf32> -> vector<8x256xf32>
    %cst_98 = arith.constant dense<0.000000e+00> : vector<8x512xf32>
    %335 = tpu.matmul %334, %12, %cst_98 {dimension_numbers = #tpu.dot_dimension_numbers<[1], [0], [0], [1], [0, 0, 1, 1], [], []>} : vector<8x256xf32>, vector<256x512xf32>, vector<8x512xf32> -> vector<8x512xf32>
    %336 = arith.addf %335, %4 : vector<8x512xf32>
    %337 = vector.extract_strided_slice %336 {offsets = [0, 0], sizes = [8, 128], strides = [1, 1]} : vector<8x512xf32> to vector<8x128xf32>
    %338 = arith.negf %337 : vector<8x128xf32>
    %339 = math.exp %338 : vector<8x128xf32>
    %cst_99 = arith.constant 1.000000e+00 : f32
    %340 = vector.broadcast %cst_99 : f32 to vector<8x128xf32>
    %341 = arith.addf %340, %339 : vector<8x128xf32>
    %342 = arith.divf %340, %341 : vector<8x128xf32>
    %343 = vector.extract_strided_slice %336 {offsets = [0, 128], sizes = [8, 128], strides = [1, 1]} : vector<8x512xf32> to vector<8x128xf32>
    %344 = arith.negf %343 : vector<8x128xf32>
    %345 = math.exp %344 : vector<8x128xf32>
    %cst_100 = arith.constant 1.000000e+00 : f32
    %346 = vector.broadcast %cst_100 : f32 to vector<8x128xf32>
    %347 = arith.addf %346, %345 : vector<8x128xf32>
    %348 = arith.divf %346, %347 : vector<8x128xf32>
    %349 = vector.extract_strided_slice %336 {offsets = [0, 256], sizes = [8, 128], strides = [1, 1]} : vector<8x512xf32> to vector<8x128xf32>
    %350 = math.tanh %349 : vector<8x128xf32>
    %351 = vector.extract_strided_slice %336 {offsets = [0, 384], sizes = [8, 128], strides = [1, 1]} : vector<8x512xf32> to vector<8x128xf32>
    %352 = arith.negf %351 : vector<8x128xf32>
    %353 = math.exp %352 : vector<8x128xf32>
    %cst_101 = arith.constant 1.000000e+00 : f32
    %354 = vector.broadcast %cst_101 : f32 to vector<8x128xf32>
    %355 = arith.addf %354, %353 : vector<8x128xf32>
    %356 = arith.divf %354, %355 : vector<8x128xf32>
    %357 = arith.mulf %348, %316 : vector<8x128xf32>
    %358 = arith.mulf %342, %350 : vector<8x128xf32>
    %359 = arith.addf %357, %358 : vector<8x128xf32>
    %360 = math.tanh %359 : vector<8x128xf32>
    %361 = arith.mulf %356, %360 : vector<8x128xf32>
    %cst_102 = arith.constant 0.000000e+00 : f32
    %362 = vector.broadcast %cst_102 : f32 to vector<8x128xf32>
    %c0_103 = arith.constant 0 : index
    %c0_104 = arith.constant 0 : index
    %c0_105 = arith.constant 0 : index
    %363 = vector.load %arg11[%c0_103, %c0_104, %c0_105] : memref<8x8x128xf32, #tpu.memory_space<vmem>>, vector<1x8x128xf32>
    %364 = vector.shape_cast %363 : vector<1x8x128xf32> to vector<8x128xf32>
    %365 = vector.shape_cast %362 : vector<8x128xf32> to vector<1x8x128xf32>
    tpu.vector_store %arg11[%c0_103, %c0_104, %c0_105], %365 {strides = array<i32>} : memref<8x8x128xf32, #tpu.memory_space<vmem>>, vector<1x8x128xf32>,
    %c-1_i32_106 = arith.constant -1 : i32
    %366 = vector.broadcast %c-1_i32_106 : i32 to vector<8x128xi32>
    %c0_i32_107 = arith.constant 0 : i32
    %367 = vector.broadcast %c0_i32_107 : i32 to vector<8x128xi32>
    %368 = arith.cmpi eq, %0, %367 : vector<8x128xi32>
    %c0_108 = arith.constant 0 : index
    %c0_109 = arith.constant 0 : index
    %369 = memref.load %arg1[%c0_108, %c0_109] : memref<8x2xi32, #tpu.memory_space<smem>>
    %370 = vector.broadcast %369 : i32 to vector<8x128xi32>
    %371 = arith.select %368, %370, %366 : vector<8x128xi1>, vector<8x128xi32>
    %c1_i32_110 = arith.constant 1 : i32
    %372 = vector.broadcast %c1_i32_110 : i32 to vector<8x128xi32>
    %373 = arith.cmpi eq, %0, %372 : vector<8x128xi32>
    %c0_111 = arith.constant 0 : index
    %c1_112 = arith.constant 1 : index
    %374 = memref.load %arg1[%c0_111, %c1_112] : memref<8x2xi32, #tpu.memory_space<smem>>
    %375 = vector.broadcast %374 : i32 to vector<8x128xi32>
    %376 = arith.select %373, %375, %371 : vector<8x128xi1>, vector<8x128xi32>
    %377 = arith.cmpi eq, %376, %1 : vector<8x128xi32>
    %378 = arith.extui %377 : vector<8x128xi1> to vector<8x128xi32>
    %379 = arith.sitofp %378 : vector<8x128xi32> to vector<8x128xf32>
    %cst_113 = arith.constant dense<0.000000e+00> : vector<8x128xf32>
    %380 = tpu.matmul %379, %13, %cst_113 {dimension_numbers = #tpu.dot_dimension_numbers<[1], [0], [0], [1], [0, 0, 1, 1], [], []>} : vector<8x128xf32>, vector<128x128xf32>, vector<8x128xf32> -> vector<8x128xf32>
    %381 = tpu.concatenate %380, %361 in 1 : vector<8x128xf32>, vector<8x128xf32> -> vector<8x256xf32>
    %cst_114 = arith.constant dense<0.000000e+00> : vector<8x512xf32>
    %382 = tpu.matmul %381, %14, %cst_114 {dimension_numbers = #tpu.dot_dimension_numbers<[1], [0], [0], [1], [0, 0, 1, 1], [], []>} : vector<8x256xf32>, vector<256x512xf32>, vector<8x512xf32> -> vector<8x512xf32>
    %383 = arith.addf %382, %7 : vector<8x512xf32>
    %384 = vector.extract_strided_slice %383 {offsets = [0, 0], sizes = [8, 128], strides = [1, 1]} : vector<8x512xf32> to vector<8x128xf32>
    %385 = arith.negf %384 : vector<8x128xf32>
    %386 = math.exp %385 : vector<8x128xf32>
    %cst_115 = arith.constant 1.000000e+00 : f32
    %387 = vector.broadcast %cst_115 : f32 to vector<8x128xf32>
    %388 = arith.addf %387, %386 : vector<8x128xf32>
    %389 = arith.divf %387, %388 : vector<8x128xf32>
    %390 = vector.extract_strided_slice %383 {offsets = [0, 128], sizes = [8, 128], strides = [1, 1]} : vector<8x512xf32> to vector<8x128xf32>
    %391 = arith.negf %390 : vector<8x128xf32>
    %392 = math.exp %391 : vector<8x128xf32>
    %cst_116 = arith.constant 1.000000e+00 : f32
    %393 = vector.broadcast %cst_116 : f32 to vector<8x128xf32>
    %394 = arith.addf %393, %392 : vector<8x128xf32>
    %395 = arith.divf %393, %394 : vector<8x128xf32>
    %396 = vector.extract_strided_slice %383 {offsets = [0, 256], sizes = [8, 128], strides = [1, 1]} : vector<8x512xf32> to vector<8x128xf32>
    %397 = math.tanh %396 : vector<8x128xf32>
    %398 = vector.extract_strided_slice %383 {offsets = [0, 384], sizes = [8, 128], strides = [1, 1]} : vector<8x512xf32> to vector<8x128xf32>
    %399 = arith.negf %398 : vector<8x128xf32>
    %400 = math.exp %399 : vector<8x128xf32>
    %cst_117 = arith.constant 1.000000e+00 : f32
    %401 = vector.broadcast %cst_117 : f32 to vector<8x128xf32>
    %402 = arith.addf %401, %400 : vector<8x128xf32>
    %403 = arith.divf %401, %402 : vector<8x128xf32>
    %404 = arith.mulf %395, %359 : vector<8x128xf32>
    %405 = arith.mulf %389, %397 : vector<8x128xf32>
    %406 = arith.addf %404, %405 : vector<8x128xf32>
    %407 = math.tanh %406 : vector<8x128xf32>
    %408 = arith.mulf %403, %407 : vector<8x128xf32>
    %cst_118 = arith.constant dense<0.000000e+00> : vector<8x128xf32>
    %409 = tpu.matmul %408, %15, %cst_118 {dimension_numbers = #tpu.dot_dimension_numbers<[1], [0], [0], [1], [0, 0, 1, 1], [], []>} : vector<8x128xf32>, vector<128x128xf32>, vector<8x128xf32> -> vector<8x128xf32>
    %410 = arith.addf %409, %10 : vector<8x128xf32>
    %c1_119 = arith.constant 1 : index
    %c0_120 = arith.constant 0 : index
    %c0_121 = arith.constant 0 : index
    %411 = vector.load %arg11[%c1_119, %c0_120, %c0_121] : memref<8x8x128xf32, #tpu.memory_space<vmem>>, vector<1x8x128xf32>
    %412 = vector.shape_cast %411 : vector<1x8x128xf32> to vector<8x128xf32>
    %413 = vector.shape_cast %410 : vector<8x128xf32> to vector<1x8x128xf32>
    tpu.vector_store %arg11[%c1_119, %c0_120, %c0_121], %413 {strides = array<i32>} : memref<8x8x128xf32, #tpu.memory_space<vmem>>, vector<1x8x128xf32>,
    %cst_122 = arith.constant dense<0xFF800000> : vector<8xf32>
    %414 = vector.multi_reduction <maximumf>, %410, %cst_122 [1] : vector<8x128xf32> to vector<8xf32>
    %415 = vector.shape_cast %414 : vector<8xf32> to vector<8x1xf32>
    %416 = vector.broadcast %415 : vector<8x1xf32> to vector<8x128xf32>
    %417 = arith.cmpf oge, %410, %416 : vector<8x128xf32>
    %c128_i32 = arith.constant 128 : i32
    %418 = vector.broadcast %c128_i32 : i32 to vector<8x128xi32>
    %419 = arith.select %417, %1, %418 : vector<8x128xi1>, vector<8x128xi32>
    %cst_123 = arith.constant dense<2147483647> : vector<8xi32>
    %420 = vector.multi_reduction <minsi>, %419, %cst_123 [1] : vector<8x128xi32> to vector<8xi32>
    %421 = vector.shape_cast %420 : vector<8xi32> to vector<8x1xi32>
    %422 = vector.broadcast %421 : vector<8x1xi32> to vector<8x128xi32>
    %423 = arith.cmpi eq, %1, %422 : vector<8x128xi32>
    %424 = arith.extui %423 : vector<8x128xi1> to vector<8x128xi32>
    %425 = arith.sitofp %424 : vector<8x128xi32> to vector<8x128xf32>
    %c-1_i32_124 = arith.constant -1 : i32
    %426 = vector.broadcast %c-1_i32_124 : i32 to vector<8x128xi32>
    %c0_i32_125 = arith.constant 0 : i32
    %427 = vector.broadcast %c0_i32_125 : i32 to vector<8x128xi32>
    %428 = arith.cmpi eq, %0, %427 : vector<8x128xi32>
    %c1_126 = arith.constant 1 : index
    %c0_127 = arith.constant 0 : index
    %429 = memref.load %arg1[%c1_126, %c0_127] : memref<8x2xi32, #tpu.memory_space<smem>>
    %430 = vector.broadcast %429 : i32 to vector<8x128xi32>
    %431 = arith.select %428, %430, %426 : vector<8x128xi1>, vector<8x128xi32>
    %c1_i32_128 = arith.constant 1 : i32
    %432 = vector.broadcast %c1_i32_128 : i32 to vector<8x128xi32>
    %433 = arith.cmpi eq, %0, %432 : vector<8x128xi32>
    %c1_129 = arith.constant 1 : index
    %c1_130 = arith.constant 1 : index
    %434 = memref.load %arg1[%c1_129, %c1_130] : memref<8x2xi32, #tpu.memory_space<smem>>
    %435 = vector.broadcast %434 : i32 to vector<8x128xi32>
    %436 = arith.select %433, %435, %431 : vector<8x128xi1>, vector<8x128xi32>
    %437 = arith.cmpi eq, %436, %1 : vector<8x128xi32>
    %438 = arith.extui %437 : vector<8x128xi1> to vector<8x128xi32>
    %439 = arith.sitofp %438 : vector<8x128xi32> to vector<8x128xf32>
    %c1_131 = arith.constant 1 : index
    %440 = memref.load %arg2[%c1_131] : memref<8xi32, #tpu.memory_space<smem>>
    %c0_i32_132 = arith.constant 0 : i32
    %441 = arith.cmpi ne, %440, %c0_i32_132 : i32
    %442 = arith.select %441, %439, %425 : vector<8x128xf32>
    %cst_133 = arith.constant dense<0.000000e+00> : vector<8x128xf32>
    %443 = tpu.matmul %442, %13, %cst_133 {dimension_numbers = #tpu.dot_dimension_numbers<[1], [0], [0], [1], [0, 0, 1, 1], [], []>} : vector<8x128xf32>, vector<128x128xf32>, vector<8x128xf32> -> vector<8x128xf32>
    %444 = tpu.concatenate %443, %408 in 1 : vector<8x128xf32>, vector<8x128xf32> -> vector<8x256xf32>
    %cst_134 = arith.constant dense<0.000000e+00> : vector<8x512xf32>
    %445 = tpu.matmul %444, %14, %cst_134 {dimension_numbers = #tpu.dot_dimension_numbers<[1], [0], [0], [1], [0, 0, 1, 1], [], []>} : vector<8x256xf32>, vector<256x512xf32>, vector<8x512xf32> -> vector<8x512xf32>
    %446 = arith.addf %445, %7 : vector<8x512xf32>
    %447 = vector.extract_strided_slice %446 {offsets = [0, 0], sizes = [8, 128], strides = [1, 1]} : vector<8x512xf32> to vector<8x128xf32>
    %448 = arith.negf %447 : vector<8x128xf32>
    %449 = math.exp %448 : vector<8x128xf32>
    %cst_135 = arith.constant 1.000000e+00 : f32
    %450 = vector.broadcast %cst_135 : f32 to vector<8x128xf32>
    %451 = arith.addf %450, %449 : vector<8x128xf32>
    %452 = arith.divf %450, %451 : vector<8x128xf32>
    %453 = vector.extract_strided_slice %446 {offsets = [0, 128], sizes = [8, 128], strides = [1, 1]} : vector<8x512xf32> to vector<8x128xf32>
    %454 = arith.negf %453 : vector<8x128xf32>
    %455 = math.exp %454 : vector<8x128xf32>
    %cst_136 = arith.constant 1.000000e+00 : f32
    %456 = vector.broadcast %cst_136 : f32 to vector<8x128xf32>
    %457 = arith.addf %456, %455 : vector<8x128xf32>
    %458 = arith.divf %456, %457 : vector<8x128xf32>
    %459 = vector.extract_strided_slice %446 {offsets = [0, 256], sizes = [8, 128], strides = [1, 1]} : vector<8x512xf32> to vector<8x128xf32>
    %460 = math.tanh %459 : vector<8x128xf32>
    %461 = vector.extract_strided_slice %446 {offsets = [0, 384], sizes = [8, 128], strides = [1, 1]} : vector<8x512xf32> to vector<8x128xf32>
    %462 = arith.negf %461 : vector<8x128xf32>
    %463 = math.exp %462 : vector<8x128xf32>
    %cst_137 = arith.constant 1.000000e+00 : f32
    %464 = vector.broadcast %cst_137 : f32 to vector<8x128xf32>
    %465 = arith.addf %464, %463 : vector<8x128xf32>
    %466 = arith.divf %464, %465 : vector<8x128xf32>
    %467 = arith.mulf %458, %406 : vector<8x128xf32>
    %468 = arith.mulf %452, %460 : vector<8x128xf32>
    %469 = arith.addf %467, %468 : vector<8x128xf32>
    %470 = math.tanh %469 : vector<8x128xf32>
    %471 = arith.mulf %466, %470 : vector<8x128xf32>
    %cst_138 = arith.constant dense<0.000000e+00> : vector<8x128xf32>
    %472 = tpu.matmul %471, %15, %cst_138 {dimension_numbers = #tpu.dot_dimension_numbers<[1], [0], [0], [1], [0, 0, 1, 1], [], []>} : vector<8x128xf32>, vector<128x128xf32>, vector<8x128xf32> -> vector<8x128xf32>
    %473 = arith.addf %472, %10 : vector<8x128xf32>
    %c2_139 = arith.constant 2 : index
    %c0_140 = arith.constant 0 : index
    %c0_141 = arith.constant 0 : index
    %474 = vector.load %arg11[%c2_139, %c0_140, %c0_141] : memref<8x8x128xf32, #tpu.memory_space<vmem>>, vector<1x8x128xf32>
    %475 = vector.shape_cast %474 : vector<1x8x128xf32> to vector<8x128xf32>
    %476 = vector.shape_cast %473 : vector<8x128xf32> to vector<1x8x128xf32>
    tpu.vector_store %arg11[%c2_139, %c0_140, %c0_141], %476 {strides = array<i32>} : memref<8x8x128xf32, #tpu.memory_space<vmem>>, vector<1x8x128xf32>,
    %cst_142 = arith.constant dense<0xFF800000> : vector<8xf32>
    %477 = vector.multi_reduction <maximumf>, %473, %cst_142 [1] : vector<8x128xf32> to vector<8xf32>
    %478 = vector.shape_cast %477 : vector<8xf32> to vector<8x1xf32>
    %479 = vector.broadcast %478 : vector<8x1xf32> to vector<8x128xf32>
    %480 = arith.cmpf oge, %473, %479 : vector<8x128xf32>
    %c128_i32_143 = arith.constant 128 : i32
    %481 = vector.broadcast %c128_i32_143 : i32 to vector<8x128xi32>
    %482 = arith.select %480, %1, %481 : vector<8x128xi1>, vector<8x128xi32>
    %cst_144 = arith.constant dense<2147483647> : vector<8xi32>
    %483 = vector.multi_reduction <minsi>, %482, %cst_144 [1] : vector<8x128xi32> to vector<8xi32>
    %484 = vector.shape_cast %483 : vector<8xi32> to vector<8x1xi32>
    %485 = vector.broadcast %484 : vector<8x1xi32> to vector<8x128xi32>
    %486 = arith.cmpi eq, %1, %485 : vector<8x128xi32>
    %487 = arith.extui %486 : vector<8x128xi1> to vector<8x128xi32>
    %488 = arith.sitofp %487 : vector<8x128xi32> to vector<8x128xf32>
    %c-1_i32_145 = arith.constant -1 : i32
    %489 = vector.broadcast %c-1_i32_145 : i32 to vector<8x128xi32>
    %c0_i32_146 = arith.constant 0 : i32
    %490 = vector.broadcast %c0_i32_146 : i32 to vector<8x128xi32>
    %491 = arith.cmpi eq, %0, %490 : vector<8x128xi32>
    %c2_147 = arith.constant 2 : index
    %c0_148 = arith.constant 0 : index
    %492 = memref.load %arg1[%c2_147, %c0_148] : memref<8x2xi32, #tpu.memory_space<smem>>
    %493 = vector.broadcast %492 : i32 to vector<8x128xi32>
    %494 = arith.select %491, %493, %489 : vector<8x128xi1>, vector<8x128xi32>
    %c1_i32_149 = arith.constant 1 : i32
    %495 = vector.broadcast %c1_i32_149 : i32 to vector<8x128xi32>
    %496 = arith.cmpi eq, %0, %495 : vector<8x128xi32>
    %c2_150 = arith.constant 2 : index
    %c1_151 = arith.constant 1 : index
    %497 = memref.load %arg1[%c2_150, %c1_151] : memref<8x2xi32, #tpu.memory_space<smem>>
    %498 = vector.broadcast %497 : i32 to vector<8x128xi32>
    %499 = arith.select %496, %498, %494 : vector<8x128xi1>, vector<8x128xi32>
    %500 = arith.cmpi eq, %499, %1 : vector<8x128xi32>
    %501 = arith.extui %500 : vector<8x128xi1> to vector<8x128xi32>
    %502 = arith.sitofp %501 : vector<8x128xi32> to vector<8x128xf32>
    %c2_152 = arith.constant 2 : index
    %503 = memref.load %arg2[%c2_152] : memref<8xi32, #tpu.memory_space<smem>>
    %c0_i32_153 = arith.constant 0 : i32
    %504 = arith.cmpi ne, %503, %c0_i32_153 : i32
    %505 = arith.select %504, %502, %488 : vector<8x128xf32>
    %cst_154 = arith.constant dense<0.000000e+00> : vector<8x128xf32>
    %506 = tpu.matmul %505, %13, %cst_154 {dimension_numbers = #tpu.dot_dimension_numbers<[1], [0], [0], [1], [0, 0, 1, 1], [], []>} : vector<8x128xf32>, vector<128x128xf32>, vector<8x128xf32> -> vector<8x128xf32>
    %507 = tpu.concatenate %506, %471 in 1 : vector<8x128xf32>, vector<8x128xf32> -> vector<8x256xf32>
    %cst_155 = arith.constant dense<0.000000e+00> : vector<8x512xf32>
    %508 = tpu.matmul %507, %14, %cst_155 {dimension_numbers = #tpu.dot_dimension_numbers<[1], [0], [0], [1], [0, 0, 1, 1], [], []>} : vector<8x256xf32>, vector<256x512xf32>, vector<8x512xf32> -> vector<8x512xf32>
    %509 = arith.addf %508, %7 : vector<8x512xf32>
    %510 = vector.extract_strided_slice %509 {offsets = [0, 0], sizes = [8, 128], strides = [1, 1]} : vector<8x512xf32> to vector<8x128xf32>
    %511 = arith.negf %510 : vector<8x128xf32>
    %512 = math.exp %511 : vector<8x128xf32>
    %cst_156 = arith.constant 1.000000e+00 : f32
    %513 = vector.broadcast %cst_156 : f32 to vector<8x128xf32>
    %514 = arith.addf %513, %512 : vector<8x128xf32>
    %515 = arith.divf %513, %514 : vector<8x128xf32>
    %516 = vector.extract_strided_slice %509 {offsets = [0, 128], sizes = [8, 128], strides = [1, 1]} : vector<8x512xf32> to vector<8x128xf32>
    %517 = arith.negf %516 : vector<8x128xf32>
    %518 = math.exp %517 : vector<8x128xf32>
    %cst_157 = arith.constant 1.000000e+00 : f32
    %519 = vector.broadcast %cst_157 : f32 to vector<8x128xf32>
    %520 = arith.addf %519, %518 : vector<8x128xf32>
    %521 = arith.divf %519, %520 : vector<8x128xf32>
    %522 = vector.extract_strided_slice %509 {offsets = [0, 256], sizes = [8, 128], strides = [1, 1]} : vector<8x512xf32> to vector<8x128xf32>
    %523 = math.tanh %522 : vector<8x128xf32>
    %524 = vector.extract_strided_slice %509 {offsets = [0, 384], sizes = [8, 128], strides = [1, 1]} : vector<8x512xf32> to vector<8x128xf32>
    %525 = arith.negf %524 : vector<8x128xf32>
    %526 = math.exp %525 : vector<8x128xf32>
    %cst_158 = arith.constant 1.000000e+00 : f32
    %527 = vector.broadcast %cst_158 : f32 to vector<8x128xf32>
    %528 = arith.addf %527, %526 : vector<8x128xf32>
    %529 = arith.divf %527, %528 : vector<8x128xf32>
    %530 = arith.mulf %521, %469 : vector<8x128xf32>
    %531 = arith.mulf %515, %523 : vector<8x128xf32>
    %532 = arith.addf %530, %531 : vector<8x128xf32>
    %533 = math.tanh %532 : vector<8x128xf32>
    %534 = arith.mulf %529, %533 : vector<8x128xf32>
    %cst_159 = arith.constant dense<0.000000e+00> : vector<8x128xf32>
    %535 = tpu.matmul %534, %15, %cst_159 {dimension_numbers = #tpu.dot_dimension_numbers<[1], [0], [0], [1], [0, 0, 1, 1], [], []>} : vector<8x128xf32>, vector<128x128xf32>, vector<8x128xf32> -> vector<8x128xf32>
    %536 = arith.addf %535, %10 : vector<8x128xf32>
    %c3_160 = arith.constant 3 : index
    %c0_161 = arith.constant 0 : index
    %c0_162 = arith.constant 0 : index
    %537 = vector.load %arg11[%c3_160, %c0_161, %c0_162] : memref<8x8x128xf32, #tpu.memory_space<vmem>>, vector<1x8x128xf32>
    %538 = vector.shape_cast %537 : vector<1x8x128xf32> to vector<8x128xf32>
    %539 = vector.shape_cast %536 : vector<8x128xf32> to vector<1x8x128xf32>
    tpu.vector_store %arg11[%c3_160, %c0_161, %c0_162], %539 {strides = array<i32>} : memref<8x8x128xf32, #tpu.memory_space<vmem>>, vector<1x8x128xf32>,
    %cst_163 = arith.constant dense<0xFF800000> : vector<8xf32>
    %540 = vector.multi_reduction <maximumf>, %536, %cst_163 [1] : vector<8x128xf32> to vector<8xf32>
    %541 = vector.shape_cast %540 : vector<8xf32> to vector<8x1xf32>
    %542 = vector.broadcast %541 : vector<8x1xf32> to vector<8x128xf32>
    %543 = arith.cmpf oge, %536, %542 : vector<8x128xf32>
    %c128_i32_164 = arith.constant 128 : i32
    %544 = vector.broadcast %c128_i32_164 : i32 to vector<8x128xi32>
    %545 = arith.select %543, %1, %544 : vector<8x128xi1>, vector<8x128xi32>
    %cst_165 = arith.constant dense<2147483647> : vector<8xi32>
    %546 = vector.multi_reduction <minsi>, %545, %cst_165 [1] : vector<8x128xi32> to vector<8xi32>
    %547 = vector.shape_cast %546 : vector<8xi32> to vector<8x1xi32>
    %548 = vector.broadcast %547 : vector<8x1xi32> to vector<8x128xi32>
    %549 = arith.cmpi eq, %1, %548 : vector<8x128xi32>
    %550 = arith.extui %549 : vector<8x128xi1> to vector<8x128xi32>
    %551 = arith.sitofp %550 : vector<8x128xi32> to vector<8x128xf32>
    %c-1_i32_166 = arith.constant -1 : i32
    %552 = vector.broadcast %c-1_i32_166 : i32 to vector<8x128xi32>
    %c0_i32_167 = arith.constant 0 : i32
    %553 = vector.broadcast %c0_i32_167 : i32 to vector<8x128xi32>
    %554 = arith.cmpi eq, %0, %553 : vector<8x128xi32>
    %c3_168 = arith.constant 3 : index
    %c0_169 = arith.constant 0 : index
    %555 = memref.load %arg1[%c3_168, %c0_169] : memref<8x2xi32, #tpu.memory_space<smem>>
    %556 = vector.broadcast %555 : i32 to vector<8x128xi32>
    %557 = arith.select %554, %556, %552 : vector<8x128xi1>, vector<8x128xi32>
    %c1_i32_170 = arith.constant 1 : i32
    %558 = vector.broadcast %c1_i32_170 : i32 to vector<8x128xi32>
    %559 = arith.cmpi eq, %0, %558 : vector<8x128xi32>
    %c3_171 = arith.constant 3 : index
    %c1_172 = arith.constant 1 : index
    %560 = memref.load %arg1[%c3_171, %c1_172] : memref<8x2xi32, #tpu.memory_space<smem>>
    %561 = vector.broadcast %560 : i32 to vector<8x128xi32>
    %562 = arith.select %559, %561, %557 : vector<8x128xi1>, vector<8x128xi32>
    %563 = arith.cmpi eq, %562, %1 : vector<8x128xi32>
    %564 = arith.extui %563 : vector<8x128xi1> to vector<8x128xi32>
    %565 = arith.sitofp %564 : vector<8x128xi32> to vector<8x128xf32>
    %c3_173 = arith.constant 3 : index
    %566 = memref.load %arg2[%c3_173] : memref<8xi32, #tpu.memory_space<smem>>
    %c0_i32_174 = arith.constant 0 : i32
    %567 = arith.cmpi ne, %566, %c0_i32_174 : i32
    %568 = arith.select %567, %565, %551 : vector<8x128xf32>
    %cst_175 = arith.constant dense<0.000000e+00> : vector<8x128xf32>
    %569 = tpu.matmul %568, %13, %cst_175 {dimension_numbers = #tpu.dot_dimension_numbers<[1], [0], [0], [1], [0, 0, 1, 1], [], []>} : vector<8x128xf32>, vector<128x128xf32>, vector<8x128xf32> -> vector<8x128xf32>
    %570 = tpu.concatenate %569, %534 in 1 : vector<8x128xf32>, vector<8x128xf32> -> vector<8x256xf32>
    %cst_176 = arith.constant dense<0.000000e+00> : vector<8x512xf32>
    %571 = tpu.matmul %570, %14, %cst_176 {dimension_numbers = #tpu.dot_dimension_numbers<[1], [0], [0], [1], [0, 0, 1, 1], [], []>} : vector<8x256xf32>, vector<256x512xf32>, vector<8x512xf32> -> vector<8x512xf32>
    %572 = arith.addf %571, %7 : vector<8x512xf32>
    %573 = vector.extract_strided_slice %572 {offsets = [0, 0], sizes = [8, 128], strides = [1, 1]} : vector<8x512xf32> to vector<8x128xf32>
    %574 = arith.negf %573 : vector<8x128xf32>
    %575 = math.exp %574 : vector<8x128xf32>
    %cst_177 = arith.constant 1.000000e+00 : f32
    %576 = vector.broadcast %cst_177 : f32 to vector<8x128xf32>
    %577 = arith.addf %576, %575 : vector<8x128xf32>
    %578 = arith.divf %576, %577 : vector<8x128xf32>
    %579 = vector.extract_strided_slice %572 {offsets = [0, 128], sizes = [8, 128], strides = [1, 1]} : vector<8x512xf32> to vector<8x128xf32>
    %580 = arith.negf %579 : vector<8x128xf32>
    %581 = math.exp %580 : vector<8x128xf32>
    %cst_178 = arith.constant 1.000000e+00 : f32
    %582 = vector.broadcast %cst_178 : f32 to vector<8x128xf32>
    %583 = arith.addf %582, %581 : vector<8x128xf32>
    %584 = arith.divf %582, %583 : vector<8x128xf32>
    %585 = vector.extract_strided_slice %572 {offsets = [0, 256], sizes = [8, 128], strides = [1, 1]} : vector<8x512xf32> to vector<8x128xf32>
    %586 = math.tanh %585 : vector<8x128xf32>
    %587 = vector.extract_strided_slice %572 {offsets = [0, 384], sizes = [8, 128], strides = [1, 1]} : vector<8x512xf32> to vector<8x128xf32>
    %588 = arith.negf %587 : vector<8x128xf32>
    %589 = math.exp %588 : vector<8x128xf32>
    %cst_179 = arith.constant 1.000000e+00 : f32
    %590 = vector.broadcast %cst_179 : f32 to vector<8x128xf32>
    %591 = arith.addf %590, %589 : vector<8x128xf32>
    %592 = arith.divf %590, %591 : vector<8x128xf32>
    %593 = arith.mulf %584, %532 : vector<8x128xf32>
    %594 = arith.mulf %578, %586 : vector<8x128xf32>
    %595 = arith.addf %593, %594 : vector<8x128xf32>
    %596 = math.tanh %595 : vector<8x128xf32>
    %597 = arith.mulf %592, %596 : vector<8x128xf32>
    %cst_180 = arith.constant dense<0.000000e+00> : vector<8x128xf32>
    %598 = tpu.matmul %597, %15, %cst_180 {dimension_numbers = #tpu.dot_dimension_numbers<[1], [0], [0], [1], [0, 0, 1, 1], [], []>} : vector<8x128xf32>, vector<128x128xf32>, vector<8x128xf32> -> vector<8x128xf32>
    %599 = arith.addf %598, %10 : vector<8x128xf32>
    %c4_181 = arith.constant 4 : index
    %c0_182 = arith.constant 0 : index
    %c0_183 = arith.constant 0 : index
    %600 = vector.load %arg11[%c4_181, %c0_182, %c0_183] : memref<8x8x128xf32, #tpu.memory_space<vmem>>, vector<1x8x128xf32>
    %601 = vector.shape_cast %600 : vector<1x8x128xf32> to vector<8x128xf32>
    %602 = vector.shape_cast %599 : vector<8x128xf32> to vector<1x8x128xf32>
    tpu.vector_store %arg11[%c4_181, %c0_182, %c0_183], %602 {strides = array<i32>} : memref<8x8x128xf32, #tpu.memory_space<vmem>>, vector<1x8x128xf32>,
    %cst_184 = arith.constant dense<0xFF800000> : vector<8xf32>
    %603 = vector.multi_reduction <maximumf>, %599, %cst_184 [1] : vector<8x128xf32> to vector<8xf32>
    %604 = vector.shape_cast %603 : vector<8xf32> to vector<8x1xf32>
    %605 = vector.broadcast %604 : vector<8x1xf32> to vector<8x128xf32>
    %606 = arith.cmpf oge, %599, %605 : vector<8x128xf32>
    %c128_i32_185 = arith.constant 128 : i32
    %607 = vector.broadcast %c128_i32_185 : i32 to vector<8x128xi32>
    %608 = arith.select %606, %1, %607 : vector<8x128xi1>, vector<8x128xi32>
    %cst_186 = arith.constant dense<2147483647> : vector<8xi32>
    %609 = vector.multi_reduction <minsi>, %608, %cst_186 [1] : vector<8x128xi32> to vector<8xi32>
    %610 = vector.shape_cast %609 : vector<8xi32> to vector<8x1xi32>
    %611 = vector.broadcast %610 : vector<8x1xi32> to vector<8x128xi32>
    %612 = arith.cmpi eq, %1, %611 : vector<8x128xi32>
    %613 = arith.extui %612 : vector<8x128xi1> to vector<8x128xi32>
    %614 = arith.sitofp %613 : vector<8x128xi32> to vector<8x128xf32>
    %c-1_i32_187 = arith.constant -1 : i32
    %615 = vector.broadcast %c-1_i32_187 : i32 to vector<8x128xi32>
    %c0_i32_188 = arith.constant 0 : i32
    %616 = vector.broadcast %c0_i32_188 : i32 to vector<8x128xi32>
    %617 = arith.cmpi eq, %0, %616 : vector<8x128xi32>
    %c4_189 = arith.constant 4 : index
    %c0_190 = arith.constant 0 : index
    %618 = memref.load %arg1[%c4_189, %c0_190] : memref<8x2xi32, #tpu.memory_space<smem>>
    %619 = vector.broadcast %618 : i32 to vector<8x128xi32>
    %620 = arith.select %617, %619, %615 : vector<8x128xi1>, vector<8x128xi32>
    %c1_i32_191 = arith.constant 1 : i32
    %621 = vector.broadcast %c1_i32_191 : i32 to vector<8x128xi32>
    %622 = arith.cmpi eq, %0, %621 : vector<8x128xi32>
    %c4_192 = arith.constant 4 : index
    %c1_193 = arith.constant 1 : index
    %623 = memref.load %arg1[%c4_192, %c1_193] : memref<8x2xi32, #tpu.memory_space<smem>>
    %624 = vector.broadcast %623 : i32 to vector<8x128xi32>
    %625 = arith.select %622, %624, %620 : vector<8x128xi1>, vector<8x128xi32>
    %626 = arith.cmpi eq, %625, %1 : vector<8x128xi32>
    %627 = arith.extui %626 : vector<8x128xi1> to vector<8x128xi32>
    %628 = arith.sitofp %627 : vector<8x128xi32> to vector<8x128xf32>
    %c4_194 = arith.constant 4 : index
    %629 = memref.load %arg2[%c4_194] : memref<8xi32, #tpu.memory_space<smem>>
    %c0_i32_195 = arith.constant 0 : i32
    %630 = arith.cmpi ne, %629, %c0_i32_195 : i32
    %631 = arith.select %630, %628, %614 : vector<8x128xf32>
    %cst_196 = arith.constant dense<0.000000e+00> : vector<8x128xf32>
    %632 = tpu.matmul %631, %13, %cst_196 {dimension_numbers = #tpu.dot_dimension_numbers<[1], [0], [0], [1], [0, 0, 1, 1], [], []>} : vector<8x128xf32>, vector<128x128xf32>, vector<8x128xf32> -> vector<8x128xf32>
    %633 = tpu.concatenate %632, %597 in 1 : vector<8x128xf32>, vector<8x128xf32> -> vector<8x256xf32>
    %cst_197 = arith.constant dense<0.000000e+00> : vector<8x512xf32>
    %634 = tpu.matmul %633, %14, %cst_197 {dimension_numbers = #tpu.dot_dimension_numbers<[1], [0], [0], [1], [0, 0, 1, 1], [], []>} : vector<8x256xf32>, vector<256x512xf32>, vector<8x512xf32> -> vector<8x512xf32>
    %635 = arith.addf %634, %7 : vector<8x512xf32>
    %636 = vector.extract_strided_slice %635 {offsets = [0, 0], sizes = [8, 128], strides = [1, 1]} : vector<8x512xf32> to vector<8x128xf32>
    %637 = arith.negf %636 : vector<8x128xf32>
    %638 = math.exp %637 : vector<8x128xf32>
    %cst_198 = arith.constant 1.000000e+00 : f32
    %639 = vector.broadcast %cst_198 : f32 to vector<8x128xf32>
    %640 = arith.addf %639, %638 : vector<8x128xf32>
    %641 = arith.divf %639, %640 : vector<8x128xf32>
    %642 = vector.extract_strided_slice %635 {offsets = [0, 128], sizes = [8, 128], strides = [1, 1]} : vector<8x512xf32> to vector<8x128xf32>
    %643 = arith.negf %642 : vector<8x128xf32>
    %644 = math.exp %643 : vector<8x128xf32>
    %cst_199 = arith.constant 1.000000e+00 : f32
    %645 = vector.broadcast %cst_199 : f32 to vector<8x128xf32>
    %646 = arith.addf %645, %644 : vector<8x128xf32>
    %647 = arith.divf %645, %646 : vector<8x128xf32>
    %648 = vector.extract_strided_slice %635 {offsets = [0, 256], sizes = [8, 128], strides = [1, 1]} : vector<8x512xf32> to vector<8x128xf32>
    %649 = math.tanh %648 : vector<8x128xf32>
    %650 = vector.extract_strided_slice %635 {offsets = [0, 384], sizes = [8, 128], strides = [1, 1]} : vector<8x512xf32> to vector<8x128xf32>
    %651 = arith.negf %650 : vector<8x128xf32>
    %652 = math.exp %651 : vector<8x128xf32>
    %cst_200 = arith.constant 1.000000e+00 : f32
    %653 = vector.broadcast %cst_200 : f32 to vector<8x128xf32>
    %654 = arith.addf %653, %652 : vector<8x128xf32>
    %655 = arith.divf %653, %654 : vector<8x128xf32>
    %656 = arith.mulf %647, %595 : vector<8x128xf32>
    %657 = arith.mulf %641, %649 : vector<8x128xf32>
    %658 = arith.addf %656, %657 : vector<8x128xf32>
    %659 = math.tanh %658 : vector<8x128xf32>
    %660 = arith.mulf %655, %659 : vector<8x128xf32>
    %cst_201 = arith.constant dense<0.000000e+00> : vector<8x128xf32>
    %661 = tpu.matmul %660, %15, %cst_201 {dimension_numbers = #tpu.dot_dimension_numbers<[1], [0], [0], [1], [0, 0, 1, 1], [], []>} : vector<8x128xf32>, vector<128x128xf32>, vector<8x128xf32> -> vector<8x128xf32>
    %662 = arith.addf %661, %10 : vector<8x128xf32>
    %c5_202 = arith.constant 5 : index
    %c0_203 = arith.constant 0 : index
    %c0_204 = arith.constant 0 : index
    %663 = vector.load %arg11[%c5_202, %c0_203, %c0_204] : memref<8x8x128xf32, #tpu.memory_space<vmem>>, vector<1x8x128xf32>
    %664 = vector.shape_cast %663 : vector<1x8x128xf32> to vector<8x128xf32>
    %665 = vector.shape_cast %662 : vector<8x128xf32> to vector<1x8x128xf32>
    tpu.vector_store %arg11[%c5_202, %c0_203, %c0_204], %665 {strides = array<i32>} : memref<8x8x128xf32, #tpu.memory_space<vmem>>, vector<1x8x128xf32>,
    %cst_205 = arith.constant dense<0xFF800000> : vector<8xf32>
    %666 = vector.multi_reduction <maximumf>, %662, %cst_205 [1] : vector<8x128xf32> to vector<8xf32>
    %667 = vector.shape_cast %666 : vector<8xf32> to vector<8x1xf32>
    %668 = vector.broadcast %667 : vector<8x1xf32> to vector<8x128xf32>
    %669 = arith.cmpf oge, %662, %668 : vector<8x128xf32>
    %c128_i32_206 = arith.constant 128 : i32
    %670 = vector.broadcast %c128_i32_206 : i32 to vector<8x128xi32>
    %671 = arith.select %669, %1, %670 : vector<8x128xi1>, vector<8x128xi32>
    %cst_207 = arith.constant dense<2147483647> : vector<8xi32>
    %672 = vector.multi_reduction <minsi>, %671, %cst_207 [1] : vector<8x128xi32> to vector<8xi32>
    %673 = vector.shape_cast %672 : vector<8xi32> to vector<8x1xi32>
    %674 = vector.broadcast %673 : vector<8x1xi32> to vector<8x128xi32>
    %675 = arith.cmpi eq, %1, %674 : vector<8x128xi32>
    %676 = arith.extui %675 : vector<8x128xi1> to vector<8x128xi32>
    %677 = arith.sitofp %676 : vector<8x128xi32> to vector<8x128xf32>
    %c-1_i32_208 = arith.constant -1 : i32
    %678 = vector.broadcast %c-1_i32_208 : i32 to vector<8x128xi32>
    %c0_i32_209 = arith.constant 0 : i32
    %679 = vector.broadcast %c0_i32_209 : i32 to vector<8x128xi32>
    %680 = arith.cmpi eq, %0, %679 : vector<8x128xi32>
    %c5_210 = arith.constant 5 : index
    %c0_211 = arith.constant 0 : index
    %681 = memref.load %arg1[%c5_210, %c0_211] : memref<8x2xi32, #tpu.memory_space<smem>>
    %682 = vector.broadcast %681 : i32 to vector<8x128xi32>
    %683 = arith.select %680, %682, %678 : vector<8x128xi1>, vector<8x128xi32>
    %c1_i32_212 = arith.constant 1 : i32
    %684 = vector.broadcast %c1_i32_212 : i32 to vector<8x128xi32>
    %685 = arith.cmpi eq, %0, %684 : vector<8x128xi32>
    %c5_213 = arith.constant 5 : index
    %c1_214 = arith.constant 1 : index
    %686 = memref.load %arg1[%c5_213, %c1_214] : memref<8x2xi32, #tpu.memory_space<smem>>
    %687 = vector.broadcast %686 : i32 to vector<8x128xi32>
    %688 = arith.select %685, %687, %683 : vector<8x128xi1>, vector<8x128xi32>
    %689 = arith.cmpi eq, %688, %1 : vector<8x128xi32>
    %690 = arith.extui %689 : vector<8x128xi1> to vector<8x128xi32>
    %691 = arith.sitofp %690 : vector<8x128xi32> to vector<8x128xf32>
    %c5_215 = arith.constant 5 : index
    %692 = memref.load %arg2[%c5_215] : memref<8xi32, #tpu.memory_space<smem>>
    %c0_i32_216 = arith.constant 0 : i32
    %693 = arith.cmpi ne, %692, %c0_i32_216 : i32
    %694 = arith.select %693, %691, %677 : vector<8x128xf32>
    %cst_217 = arith.constant dense<0.000000e+00> : vector<8x128xf32>
    %695 = tpu.matmul %694, %13, %cst_217 {dimension_numbers = #tpu.dot_dimension_numbers<[1], [0], [0], [1], [0, 0, 1, 1], [], []>} : vector<8x128xf32>, vector<128x128xf32>, vector<8x128xf32> -> vector<8x128xf32>
    %696 = tpu.concatenate %695, %660 in 1 : vector<8x128xf32>, vector<8x128xf32> -> vector<8x256xf32>
    %cst_218 = arith.constant dense<0.000000e+00> : vector<8x512xf32>
    %697 = tpu.matmul %696, %14, %cst_218 {dimension_numbers = #tpu.dot_dimension_numbers<[1], [0], [0], [1], [0, 0, 1, 1], [], []>} : vector<8x256xf32>, vector<256x512xf32>, vector<8x512xf32> -> vector<8x512xf32>
    %698 = arith.addf %697, %7 : vector<8x512xf32>
    %699 = vector.extract_strided_slice %698 {offsets = [0, 0], sizes = [8, 128], strides = [1, 1]} : vector<8x512xf32> to vector<8x128xf32>
    %700 = arith.negf %699 : vector<8x128xf32>
    %701 = math.exp %700 : vector<8x128xf32>
    %cst_219 = arith.constant 1.000000e+00 : f32
    %702 = vector.broadcast %cst_219 : f32 to vector<8x128xf32>
    %703 = arith.addf %702, %701 : vector<8x128xf32>
    %704 = arith.divf %702, %703 : vector<8x128xf32>
    %705 = vector.extract_strided_slice %698 {offsets = [0, 128], sizes = [8, 128], strides = [1, 1]} : vector<8x512xf32> to vector<8x128xf32>
    %706 = arith.negf %705 : vector<8x128xf32>
    %707 = math.exp %706 : vector<8x128xf32>
    %cst_220 = arith.constant 1.000000e+00 : f32
    %708 = vector.broadcast %cst_220 : f32 to vector<8x128xf32>
    %709 = arith.addf %708, %707 : vector<8x128xf32>
    %710 = arith.divf %708, %709 : vector<8x128xf32>
    %711 = vector.extract_strided_slice %698 {offsets = [0, 256], sizes = [8, 128], strides = [1, 1]} : vector<8x512xf32> to vector<8x128xf32>
    %712 = math.tanh %711 : vector<8x128xf32>
    %713 = vector.extract_strided_slice %698 {offsets = [0, 384], sizes = [8, 128], strides = [1, 1]} : vector<8x512xf32> to vector<8x128xf32>
    %714 = arith.negf %713 : vector<8x128xf32>
    %715 = math.exp %714 : vector<8x128xf32>
    %cst_221 = arith.constant 1.000000e+00 : f32
    %716 = vector.broadcast %cst_221 : f32 to vector<8x128xf32>
    %717 = arith.addf %716, %715 : vector<8x128xf32>
    %718 = arith.divf %716, %717 : vector<8x128xf32>
    %719 = arith.mulf %710, %658 : vector<8x128xf32>
    %720 = arith.mulf %704, %712 : vector<8x128xf32>
    %721 = arith.addf %719, %720 : vector<8x128xf32>
    %722 = math.tanh %721 : vector<8x128xf32>
    %723 = arith.mulf %718, %722 : vector<8x128xf32>
    %cst_222 = arith.constant dense<0.000000e+00> : vector<8x128xf32>
    %724 = tpu.matmul %723, %15, %cst_222 {dimension_numbers = #tpu.dot_dimension_numbers<[1], [0], [0], [1], [0, 0, 1, 1], [], []>} : vector<8x128xf32>, vector<128x128xf32>, vector<8x128xf32> -> vector<8x128xf32>
    %725 = arith.addf %724, %10 : vector<8x128xf32>
    %c6_223 = arith.constant 6 : index
    %c0_224 = arith.constant 0 : index
    %c0_225 = arith.constant 0 : index
    %726 = vector.load %arg11[%c6_223, %c0_224, %c0_225] : memref<8x8x128xf32, #tpu.memory_space<vmem>>, vector<1x8x128xf32>
    %727 = vector.shape_cast %726 : vector<1x8x128xf32> to vector<8x128xf32>
    %728 = vector.shape_cast %725 : vector<8x128xf32> to vector<1x8x128xf32>
    tpu.vector_store %arg11[%c6_223, %c0_224, %c0_225], %728 {strides = array<i32>} : memref<8x8x128xf32, #tpu.memory_space<vmem>>, vector<1x8x128xf32>,
    %cst_226 = arith.constant dense<0xFF800000> : vector<8xf32>
    %729 = vector.multi_reduction <maximumf>, %725, %cst_226 [1] : vector<8x128xf32> to vector<8xf32>
    %730 = vector.shape_cast %729 : vector<8xf32> to vector<8x1xf32>
    %731 = vector.broadcast %730 : vector<8x1xf32> to vector<8x128xf32>
    %732 = arith.cmpf oge, %725, %731 : vector<8x128xf32>
    %c128_i32_227 = arith.constant 128 : i32
    %733 = vector.broadcast %c128_i32_227 : i32 to vector<8x128xi32>
    %734 = arith.select %732, %1, %733 : vector<8x128xi1>, vector<8x128xi32>
    %cst_228 = arith.constant dense<2147483647> : vector<8xi32>
    %735 = vector.multi_reduction <minsi>, %734, %cst_228 [1] : vector<8x128xi32> to vector<8xi32>
    %736 = vector.shape_cast %735 : vector<8xi32> to vector<8x1xi32>
    %737 = vector.broadcast %736 : vector<8x1xi32> to vector<8x128xi32>
    %738 = arith.cmpi eq, %1, %737 : vector<8x128xi32>
    %739 = arith.extui %738 : vector<8x128xi1> to vector<8x128xi32>
    %740 = arith.sitofp %739 : vector<8x128xi32> to vector<8x128xf32>
    %c-1_i32_229 = arith.constant -1 : i32
    %741 = vector.broadcast %c-1_i32_229 : i32 to vector<8x128xi32>
    %c0_i32_230 = arith.constant 0 : i32
    %742 = vector.broadcast %c0_i32_230 : i32 to vector<8x128xi32>
    %743 = arith.cmpi eq, %0, %742 : vector<8x128xi32>
    %c6_231 = arith.constant 6 : index
    %c0_232 = arith.constant 0 : index
    %744 = memref.load %arg1[%c6_231, %c0_232] : memref<8x2xi32, #tpu.memory_space<smem>>
    %745 = vector.broadcast %744 : i32 to vector<8x128xi32>
    %746 = arith.select %743, %745, %741 : vector<8x128xi1>, vector<8x128xi32>
    %c1_i32_233 = arith.constant 1 : i32
    %747 = vector.broadcast %c1_i32_233 : i32 to vector<8x128xi32>
    %748 = arith.cmpi eq, %0, %747 : vector<8x128xi32>
    %c6_234 = arith.constant 6 : index
    %c1_235 = arith.constant 1 : index
    %749 = memref.load %arg1[%c6_234, %c1_235] : memref<8x2xi32, #tpu.memory_space<smem>>
    %750 = vector.broadcast %749 : i32 to vector<8x128xi32>
    %751 = arith.select %748, %750, %746 : vector<8x128xi1>, vector<8x128xi32>
    %752 = arith.cmpi eq, %751, %1 : vector<8x128xi32>
    %753 = arith.extui %752 : vector<8x128xi1> to vector<8x128xi32>
    %754 = arith.sitofp %753 : vector<8x128xi32> to vector<8x128xf32>
    %c6_236 = arith.constant 6 : index
    %755 = memref.load %arg2[%c6_236] : memref<8xi32, #tpu.memory_space<smem>>
    %c0_i32_237 = arith.constant 0 : i32
    %756 = arith.cmpi ne, %755, %c0_i32_237 : i32
    %757 = arith.select %756, %754, %740 : vector<8x128xf32>
    %cst_238 = arith.constant dense<0.000000e+00> : vector<8x128xf32>
    %758 = tpu.matmul %757, %13, %cst_238 {dimension_numbers = #tpu.dot_dimension_numbers<[1], [0], [0], [1], [0, 0, 1, 1], [], []>} : vector<8x128xf32>, vector<128x128xf32>, vector<8x128xf32> -> vector<8x128xf32>
    %759 = tpu.concatenate %758, %723 in 1 : vector<8x128xf32>, vector<8x128xf32> -> vector<8x256xf32>
    %cst_239 = arith.constant dense<0.000000e+00> : vector<8x512xf32>
    %760 = tpu.matmul %759, %14, %cst_239 {dimension_numbers = #tpu.dot_dimension_numbers<[1], [0], [0], [1], [0, 0, 1, 1], [], []>} : vector<8x256xf32>, vector<256x512xf32>, vector<8x512xf32> -> vector<8x512xf32>
    %761 = arith.addf %760, %7 : vector<8x512xf32>
    %762 = vector.extract_strided_slice %761 {offsets = [0, 0], sizes = [8, 128], strides = [1, 1]} : vector<8x512xf32> to vector<8x128xf32>
    %763 = arith.negf %762 : vector<8x128xf32>
    %764 = math.exp %763 : vector<8x128xf32>
    %cst_240 = arith.constant 1.000000e+00 : f32
    %765 = vector.broadcast %cst_240 : f32 to vector<8x128xf32>
    %766 = arith.addf %765, %764 : vector<8x128xf32>
    %767 = arith.divf %765, %766 : vector<8x128xf32>
    %768 = vector.extract_strided_slice %761 {offsets = [0, 128], sizes = [8, 128], strides = [1, 1]} : vector<8x512xf32> to vector<8x128xf32>
    %769 = arith.negf %768 : vector<8x128xf32>
    %770 = math.exp %769 : vector<8x128xf32>
    %cst_241 = arith.constant 1.000000e+00 : f32
    %771 = vector.broadcast %cst_241 : f32 to vector<8x128xf32>
    %772 = arith.addf %771, %770 : vector<8x128xf32>
    %773 = arith.divf %771, %772 : vector<8x128xf32>
    %774 = vector.extract_strided_slice %761 {offsets = [0, 256], sizes = [8, 128], strides = [1, 1]} : vector<8x512xf32> to vector<8x128xf32>
    %775 = math.tanh %774 : vector<8x128xf32>
    %776 = vector.extract_strided_slice %761 {offsets = [0, 384], sizes = [8, 128], strides = [1, 1]} : vector<8x512xf32> to vector<8x128xf32>
    %777 = arith.negf %776 : vector<8x128xf32>
    %778 = math.exp %777 : vector<8x128xf32>
    %cst_242 = arith.constant 1.000000e+00 : f32
    %779 = vector.broadcast %cst_242 : f32 to vector<8x128xf32>
    %780 = arith.addf %779, %778 : vector<8x128xf32>
    %781 = arith.divf %779, %780 : vector<8x128xf32>
    %782 = arith.mulf %773, %721 : vector<8x128xf32>
    %783 = arith.mulf %767, %775 : vector<8x128xf32>
    %784 = arith.addf %782, %783 : vector<8x128xf32>
    %785 = math.tanh %784 : vector<8x128xf32>
    %786 = arith.mulf %781, %785 : vector<8x128xf32>
    %cst_243 = arith.constant dense<0.000000e+00> : vector<8x128xf32>
    %787 = tpu.matmul %786, %15, %cst_243 {dimension_numbers = #tpu.dot_dimension_numbers<[1], [0], [0], [1], [0, 0, 1, 1], [], []>} : vector<8x128xf32>, vector<128x128xf32>, vector<8x128xf32> -> vector<8x128xf32>
    %788 = arith.addf %787, %10 : vector<8x128xf32>
    %c7_244 = arith.constant 7 : index
    %c0_245 = arith.constant 0 : index
    %c0_246 = arith.constant 0 : index
    %789 = vector.load %arg11[%c7_244, %c0_245, %c0_246] : memref<8x8x128xf32, #tpu.memory_space<vmem>>, vector<1x8x128xf32>
    %790 = vector.shape_cast %789 : vector<1x8x128xf32> to vector<8x128xf32>
    %791 = vector.shape_cast %788 : vector<8x128xf32> to vector<1x8x128xf32>
    tpu.vector_store %arg11[%c7_244, %c0_245, %c0_246], %791 {strides = array<i32>} : memref<8x8x128xf32, #tpu.memory_space<vmem>>, vector<1x8x128xf32>,
    return
  }
}

</mosaic_0001>

<llo_original>
// kernel: seq2seq_forward.1
$region0: #{seq2seq_forward.1}
  #allocation0 [shape = 'u32[]', space=smem, size = 0x4, offset = 0x4, fixed_abs, tag = 'smem constant byte address 0x4 - core index']
  #allocation1 [shape = 'u32[144,128]{1,0:T(1,128)}', space=vmem, size = 0x12000, scoped, tag = 'internal scratch']
  %s0 = inlined_call_operand.vmem [shape: s32[8,2], index: 0, kind: input, shape index: {}]
  %s1 = inlined_call_operand.vmem [shape: s32[8,2], index: 1, kind: input, shape index: {}]
  %s2 = inlined_call_operand.vmem [shape: s32[8], index: 2, kind: input, shape index: {}]
  %s3 = inlined_call_operand.hbm [shape: f32[128,128], index: 3, kind: input, shape index: {}]
  %s4 = inlined_call_operand.hbm [shape: f32[256,512], index: 4, kind: input, shape index: {}]
  %s5 = inlined_call_operand.vmem [shape: f32[1,512], index: 5, kind: input, shape index: {}]
  %s6 = inlined_call_operand.hbm [shape: f32[128,128], index: 6, kind: input, shape index: {}]
  %s7 = inlined_call_operand.hbm [shape: f32[256,512], index: 7, kind: input, shape index: {}]
  %s8 = inlined_call_operand.vmem [shape: f32[1,512], index: 8, kind: input, shape index: {}]
  %s9 = inlined_call_operand.hbm [shape: f32[128,128], index: 9, kind: input, shape index: {}]
  %s10 = inlined_call_operand.vmem [shape: f32[1,128], index: 10, kind: input, shape index: {}]
  %s11 = inlined_call_operand.vmem [shape: f32[8,8,128], index: 11, kind: output, shape index: {}]
  %s12 = sld [smem:[#allocation0]]
  $region86: #{seq2seq_forward.1} parent=0
    _
  %s14 = ssub.s32 1, %s12
  %s15 = scalar_select 0, %s14, %s12
  $region1: #{seq2seq_forward.1} parent=0
    #allocation2 [shape = 'u8[4096]{0}', space=smem, size = 0x1000, scoped, tag = 'input window, operand 0, single buffered']
    #allocation3 [shape = 's32[1]{0}', space=sflag, size = 0x4, scoped, tag = 'scoped memory for seq2seq_forward.1']
    #allocation4 [shape = 's32[1]{0}', space=sflag, size = 0x4, scoped, tag = 'scoped memory for seq2seq_forward.1']
    #allocation5 [shape = 'u8[4096]{0}', space=smem, size = 0x1000, scoped, tag = 'input window, operand 1, single buffered']
    #allocation6 [shape = 's32[1]{0}', space=sflag, size = 0x4, scoped, tag = 'scoped memory for seq2seq_forward.1']
    #allocation7 [shape = 'u8[512]{0}', space=smem, size = 0x200, scoped, tag = 'input window, operand 2, single buffered']
    #allocation8 [shape = 'u8[65536]{0}', space=vmem, size = 0x10000, scoped, tag = 'input window, operand 3, single buffered']
    #allocation9 [shape = 'u8[524288]{0}', space=vmem, size = 0x80000, scoped, tag = 'input window, operand 4, single buffered']
    #allocation10 [shape = 's32[1]{0}', space=sflag, size = 0x4, scoped, tag = 'scoped memory for seq2seq_forward.1']
    #allocation11 [shape = 'u8[65536]{0}', space=vmem, size = 0x10000, scoped, tag = 'input window, operand 6, single buffered']
    #allocation12 [shape = 'u8[524288]{0}', space=vmem, size = 0x80000, scoped, tag = 'input window, operand 7, single buffered']
    #allocation13 [shape = 's32[1]{0}', space=sflag, size = 0x4, scoped, tag = 'scoped memory for seq2seq_forward.1']
    #allocation14 [shape = 'u8[65536]{0}', space=vmem, size = 0x10000, scoped, tag = 'input window, operand 9, single buffered']
    %16 = vsyncpa [#allocation4], 0
    %17 = vsyncpa [#allocation6], 0
    %18 = vsyncpa [#allocation3], 0
    %19 = vsyncpa [#allocation10], 0
    %20 = vsyncpa [#allocation13], 0
    // Predicated region
    $region2: #{seq2seq_forward.1} parent=1 // pred_check
      _
    $region3: #{seq2seq_forward.1} parent=1 // pred_check_branch
      %22 = sbr.rel (0) target = $region5
    $region4: #{seq2seq_forward.1} parent=1 // pred_region
      %s24 = ssub.s32 128, 128
      %25 = vsyncadd [#allocation4], %s24
      %s27 = sshll.u32 %s0, 4
      %s28 = int_to_ptr.vmem [resolvable:$true] %s27
      %30 = dma.vmem_to_smem %s28, 128, [#allocation2], [#allocation4]
    $region5: #{seq2seq_forward.1} parent=1 // pred_fallthru
      _
    // Predicated region
    $region6: #{seq2seq_forward.1} parent=1 // pred_check
      _
    $region7: #{seq2seq_forward.1} parent=1 // pred_check_branch
      %32 = sbr.rel (0) target = $region9
    $region8: #{seq2seq_forward.1} parent=1 // pred_region
      %s34 = ssub.s32 128, 128
      %35 = vsyncadd [#allocation6], %s34
      %s37 = sshll.u32 %s1, 4
      %s38 = int_to_ptr.vmem [resolvable:$true] %s37
      %40 = dma.vmem_to_smem %s38, 128, [#allocation5], [#allocation6]
    $region9: #{seq2seq_forward.1} parent=1 // pred_fallthru
      _
    // Predicated region
    $region10: #{seq2seq_forward.1} parent=1 // pred_check
      _
    $region11: #{seq2seq_forward.1} parent=1 // pred_check_branch
      %42 = sbr.rel (0) target = $region13
    $region12: #{seq2seq_forward.1} parent=1 // pred_region
      %s44 = ssub.s32 16, 16
      %45 = vsyncadd [#allocation6], %s44
      %s47 = sshll.u32 %s2, 4
      %s48 = int_to_ptr.vmem [resolvable:$true] %s47
      %50 = dma.vmem_to_smem %s48, 16, [#allocation7], [#allocation6]
    $region13: #{seq2seq_forward.1} parent=1 // pred_fallthru
      _
    // Predicated region
    $region14: #{seq2seq_forward.1} parent=1 // pred_check
      _
    $region15: #{seq2seq_forward.1} parent=1 // pred_check_branch
      %52 = sbr.rel (0) target = $region17
    $region16: #{seq2seq_forward.1} parent=1 // pred_region
      %s54 = ssub.s32 2048, 2048
      %55 = vsyncadd [#allocation3], %s54
      %s56 = sshll.u32 [#allocation8], 4
      %s57 = int_to_ptr.vmem [resolvable:$true] %s56
      %62 = dma.hbm_to_vmem [thread:$0]  %s3, 2048, %s57, [#allocation3], 128, 128, 8
    $region17: #{seq2seq_forward.1} parent=1 // pred_fallthru
      _
    // Predicated region
    $region18: #{seq2seq_forward.1} parent=1 // pred_check
      _
    $region19: #{seq2seq_forward.1} parent=1 // pred_check_branch
      %64 = sbr.rel (0) target = $region21
    $region20: #{seq2seq_forward.1} parent=1 // pred_region
      %s66 = ssub.s32 16384, 16384
      %67 = vsyncadd [#allocation10], %s66
      %s68 = sshll.u32 [#allocation9], 4
      %s69 = int_to_ptr.vmem [resolvable:$true] %s68
      %74 = dma.hbm_to_vmem [thread:$0]  %s4, 16384, %s69, [#allocation10], 512, 512, 32
    $region21: #{seq2seq_forward.1} parent=1 // pred_fallthru
      _
    // Predicated region
    $region22: #{seq2seq_forward.1} parent=1 // pred_check
      _
    $region23: #{seq2seq_forward.1} parent=1 // pred_check_branch
      %76 = sbr.rel (0) target = $region25
    $region24: #{seq2seq_forward.1} parent=1 // pred_region
      _
    $region25: #{seq2seq_forward.1} parent=1 // pred_fallthru
      _
    // Predicated region
    $region26: #{seq2seq_forward.1} parent=1 // pred_check
      _
    $region27: #{seq2seq_forward.1} parent=1 // pred_check_branch
      %78 = sbr.rel (0) target = $region29
    $region28: #{seq2seq_forward.1} parent=1 // pred_region
      %s80 = ssub.s32 2048, 2048
      %81 = vsyncadd [#allocation10], %s80
      %s82 = sshll.u32 [#allocation11], 4
      %s83 = int_to_ptr.vmem [resolvable:$true] %s82
      %88 = dma.hbm_to_vmem [thread:$0]  %s6, 2048, %s83, [#allocation10], 128, 128, 8
    $region29: #{seq2seq_forward.1} parent=1 // pred_fallthru
      _
    // Predicated region
    $region30: #{seq2seq_forward.1} parent=1 // pred_check
      _
    $region31: #{seq2seq_forward.1} parent=1 // pred_check_branch
      %90 = sbr.rel (0) target = $region33
    $region32: #{seq2seq_forward.1} parent=1 // pred_region
      %s92 = ssub.s32 16384, 16384
      %93 = vsyncadd [#allocation13], %s92
      %s94 = sshll.u32 [#allocation12], 4
      %s95 = int_to_ptr.vmem [resolvable:$true] %s94
      %100 = dma.hbm_to_vmem [thread:$0]  %s7, 16384, %s95, [#allocation13], 512, 512, 32
    $region33: #{seq2seq_forward.1} parent=1 // pred_fallthru
      _
    // Predicated region
    $region34: #{seq2seq_forward.1} parent=1 // pred_check
      _
    $region35: #{seq2seq_forward.1} parent=1 // pred_check_branch
      %102 = sbr.rel (0) target = $region37
    $region36: #{seq2seq_forward.1} parent=1 // pred_region
      _
    $region37: #{seq2seq_forward.1} parent=1 // pred_fallthru
      _
    // Predicated region
    $region38: #{seq2seq_forward.1} parent=1 // pred_check
      _
    $region39: #{seq2seq_forward.1} parent=1 // pred_check_branch
      %104 = sbr.rel (0) target = $region41
    $region40: #{seq2seq_forward.1} parent=1 // pred_region
      %s106 = ssub.s32 2048, 2048
      %107 = vsyncadd [#allocation13], %s106
      %s108 = sshll.u32 [#allocation14], 4
      %s109 = int_to_ptr.vmem [resolvable:$true] %s108
      %114 = dma.hbm_to_vmem [thread:$0]  %s9, 2048, %s109, [#allocation13], 128, 128, 8
    $region41: #{seq2seq_forward.1} parent=1 // pred_fallthru
      _
    // Predicated region
    $region42: #{seq2seq_forward.1} parent=1 // pred_check
      _
    $region43: #{seq2seq_forward.1} parent=1 // pred_check_branch
      %116 = sbr.rel (0) target = $region45
    $region44: #{seq2seq_forward.1} parent=1 // pred_region
      _
    $region45: #{seq2seq_forward.1} parent=1 // pred_fallthru
      _
    // Predicated region
    $region46: #{seq2seq_forward.1} parent=1 // pred_check
      _
    $region47: #{seq2seq_forward.1} parent=1 // pred_check_branch
      %118 = sbr.rel (0) target = $region49
    $region48: #{seq2seq_forward.1} parent=1 // pred_region
      %119 = dma.done [#allocation4], 128
    $region49: #{seq2seq_forward.1} parent=1 // pred_fallthru
      _
    // Predicated region
    $region50: #{seq2seq_forward.1} parent=1 // pred_check
      _
    $region51: #{seq2seq_forward.1} parent=1 // pred_check_branch
      %121 = sbr.rel (0) target = $region53
    $region52: #{seq2seq_forward.1} parent=1 // pred_region
      %122 = dma.done [#allocation6], 128
    $region53: #{seq2seq_forward.1} parent=1 // pred_fallthru
      _
    // Predicated region
    $region54: #{seq2seq_forward.1} parent=1 // pred_check
      _
    $region55: #{seq2seq_forward.1} parent=1 // pred_check_branch
      %124 = sbr.rel (0) target = $region57
    $region56: #{seq2seq_forward.1} parent=1 // pred_region
      %125 = dma.done [#allocation6], 16
    $region57: #{seq2seq_forward.1} parent=1 // pred_fallthru
      _
    // Predicated region
    $region58: #{seq2seq_forward.1} parent=1 // pred_check
      _
    $region59: #{seq2seq_forward.1} parent=1 // pred_check_branch
      %127 = sbr.rel (0) target = $region61
    $region60: #{seq2seq_forward.1} parent=1 // pred_region
      %128 = dma.done [#allocation3], 2048
    $region61: #{seq2seq_forward.1} parent=1 // pred_fallthru
      _
    // Predicated region
    $region62: #{seq2seq_forward.1} parent=1 // pred_check
      _
    $region63: #{seq2seq_forward.1} parent=1 // pred_check_branch
      %130 = sbr.rel (0) target = $region65
    $region64: #{seq2seq_forward.1} parent=1 // pred_region
      %131 = dma.done [#allocation10], 16384
    $region65: #{seq2seq_forward.1} parent=1 // pred_fallthru
      _
    // Predicated region
    $region66: #{seq2seq_forward.1} parent=1 // pred_check
      _
    $region67: #{seq2seq_forward.1} parent=1 // pred_check_branch
      %133 = sbr.rel (0) target = $region69
    $region68: #{seq2seq_forward.1} parent=1 // pred_region
      %134 = dma.done [#allocation10], 2048
    $region69: #{seq2seq_forward.1} parent=1 // pred_fallthru
      _
    // Predicated region
    $region70: #{seq2seq_forward.1} parent=1 // pred_check
      _
    $region71: #{seq2seq_forward.1} parent=1 // pred_check_branch
      %136 = sbr.rel (0) target = $region73
    $region72: #{seq2seq_forward.1} parent=1 // pred_region
      %137 = dma.done [#allocation13], 16384
    $region73: #{seq2seq_forward.1} parent=1 // pred_fallthru
      _
    // Predicated region
    $region74: #{seq2seq_forward.1} parent=1 // pred_check
      _
    $region75: #{seq2seq_forward.1} parent=1 // pred_check_branch
      %139 = sbr.rel (0) target = $region77
    $region76: #{seq2seq_forward.1} parent=1 // pred_region
      %140 = dma.done [#allocation13], 2048
    $region77: #{seq2seq_forward.1} parent=1 // pred_fallthru
      _
    %141 = sfence
    %v142 = vlaneseq
    %v143 = vshrl.u32 %v142, 7
    %v144 = vlaneseq
    %v145 = vand.u32 %v144, 127
    %v146 = vld [vmem:[%s5] sm:$0xf]
    %v148 = vlaneseq
    %v149 = vshrl.u32 %v148, 7
    %v150 = vsub.s32 0, %v149
    %v151 = vrot.slane %v146, %v150
    %v152 = vlaneseq
    %v153 = vshrl.u32 %v152, 7
    %v154 = vsub.s32 1, %v153
    %v155 = vrot.slane %v146, %v154
    %v156 = vlaneseq
    %v157 = vshrl.u32 %v156, 7
    %v158 = vsub.s32 2, %v157
    %v159 = vrot.slane %v146, %v158
    %v160 = vlaneseq
    %v161 = vshrl.u32 %v160, 7
    %v162 = vsub.s32 3, %v161
    %v163 = vrot.slane %v146, %v162
    %v168 = vld [vmem:[%s8] sm:$0xf]
    %v170 = vlaneseq
    %v171 = vshrl.u32 %v170, 7
    %v172 = vsub.s32 0, %v171
    %v173 = vrot.slane %v168, %v172
    %v174 = vlaneseq
    %v175 = vshrl.u32 %v174, 7
    %v176 = vsub.s32 1, %v175
    %v177 = vrot.slane %v168, %v176
    %v178 = vlaneseq
    %v179 = vshrl.u32 %v178, 7
    %v180 = vsub.s32 2, %v179
    %v181 = vrot.slane %v168, %v180
    %v182 = vlaneseq
    %v183 = vshrl.u32 %v182, 7
    %v184 = vsub.s32 3, %v183
    %v185 = vrot.slane %v168, %v184
    %v190 = vld [vmem:[%s10] sm:$0x1]
    %v192 = vlaneseq
    %v193 = vshrl.u32 %v192, 7
    %v194 = vsub.s32 0, %v193
    %v195 = vrot.slane %v190, %v194
    %v197 = vld [vmem:[#allocation8] sm:$0xff]
    %v198 = vld [vmem:[#allocation8 + $0x8] sm:$0xff]
    %v199 = vld [vmem:[#allocation8 + $0x10] sm:$0xff]
    %v200 = vld [vmem:[#allocation8 + $0x18] sm:$0xff]
    %v201 = vld [vmem:[#allocation8 + $0x20] sm:$0xff]
    %v202 = vld [vmem:[#allocation8 + $0x28] sm:$0xff]
    %v203 = vld [vmem:[#allocation8 + $0x30] sm:$0xff]
    %v204 = vld [vmem:[#allocation8 + $0x38] sm:$0xff]
    %v205 = vld [vmem:[#allocation8 + $0x40] sm:$0xff]
    %v206 = vld [vmem:[#allocation8 + $0x48] sm:$0xff]
    %v207 = vld [vmem:[#allocation8 + $0x50] sm:$0xff]
    %v208 = vld [vmem:[#allocation8 + $0x58] sm:$0xff]
    %v209 = vld [vmem:[#allocation8 + $0x60] sm:$0xff]
    %v210 = vld [vmem:[#allocation8 + $0x68] sm:$0xff]
    %v211 = vld [vmem:[#allocation8 + $0x70] sm:$0xff]
    %v212 = vld [vmem:[#allocation8 + $0x78] sm:$0xff]
    %v213 = vld [vmem:[#allocation9] sm:$0xff]
    %v214 = vld [vmem:[#allocation9 + $0x8] sm:$0xff]
    %v215 = vld [vmem:[#allocation9 + $0x10] sm:$0xff]
    %v216 = vld [vmem:[#allocation9 + $0x18] sm:$0xff]
    %v217 = vld [vmem:[#allocation9 + $0x20] sm:$0xff]
    %v218 = vld [vmem:[#allocation9 + $0x28] sm:$0xff]
    %v219 = vld [vmem:[#allocation9 + $0x30] sm:$0xff]
    %v220 = vld [vmem:[#allocation9 + $0x38] sm:$0xff]
    %v221 = vld [vmem:[#allocation9 + $0x40] sm:$0xff]
    %v222 = vld [vmem:[#allocation9 + $0x48] sm:$0xff]
    %v223 = vld [vmem:[#allocation9 + $0x50] sm:$0xff]
    %v224 = vld [vmem:[#allocation9 + $0x58] sm:$0xff]
    %v225 = vld [vmem:[#allocation9 + $0x60] sm:$0xff]
    %v226 = vld [vmem:[#allocation9 + $0x68] sm:$0xff]
    %v227 = vld [vmem:[#allocation9 + $0x70] sm:$0xff]
    %v228 = vld [vmem:[#allocation9 + $0x78] sm:$0xff]
    %v229 = vld [vmem:[#allocation9 + $0x80] sm:$0xff]
    %v230 = vld [vmem:[#allocation9 + $0x88] sm:$0xff]
    %v231 = vld [vmem:[#allocation9 + $0x90] sm:$0xff]
    %v232 = vld [vmem:[#allocation9 + $0x98] sm:$0xff]
    %v233 = vld [vmem:[#allocation9 + $0xa0] sm:$0xff]
    %v234 = vld [vmem:[#allocation9 + $0xa8] sm:$0xff]
    %v235 = vld [vmem:[#allocation9 + $0xb0] sm:$0xff]
    %v236 = vld [vmem:[#allocation9 + $0xb8] sm:$0xff]
    %v237 = vld [vmem:[#allocation9 + $0xc0] sm:$0xff]
    %v238 = vld [vmem:[#allocation9 + $0xc8] sm:$0xff]
    %v239 = vld [vmem:[#allocation9 + $0xd0] sm:$0xff]
    %v240 = vld [vmem:[#allocation9 + $0xd8] sm:$0xff]
    %v241 = vld [vmem:[#allocation9 + $0xe0] sm:$0xff]
    %v242 = vld [vmem:[#allocation9 + $0xe8] sm:$0xff]
    %v243 = vld [vmem:[#allocation9 + $0xf0] sm:$0xff]
    %v244 = vld [vmem:[#allocation9 + $0xf8] sm:$0xff]
    %v245 = vld [vmem:[#allocation9 + $0x100] sm:$0xff]
    %v246 = vld [vmem:[#allocation9 + $0x108] sm:$0xff]
    %v247 = vld [vmem:[#allocation9 + $0x110] sm:$0xff]
    %v248 = vld [vmem:[#allocation9 + $0x118] sm:$0xff]
    %v249 = vld [vmem:[#allocation9 + $0x120] sm:$0xff]
    %v250 = vld [vmem:[#allocation9 + $0x128] sm:$0xff]
    %v251 = vld [vmem:[#allocation9 + $0x130] sm:$0xff]
    %v252 = vld [vmem:[#allocation9 + $0x138] sm:$0xff]
    %v253 = vld [vmem:[#allocation9 + $0x140] sm:$0xff]
    %v254 = vld [vmem:[#allocation9 + $0x148] sm:$0xff]
    %v255 = vld [vmem:[#allocation9 + $0x150] sm:$0xff]
    %v256 = vld [vmem:[#allocation9 + $0x158] sm:$0xff]
    %v257 = vld [vmem:[#allocation9 + $0x160] sm:$0xff]
    %v258 = vld [vmem:[#allocation9 + $0x168] sm:$0xff]
    %v259 = vld [vmem:[#allocation9 + $0x170] sm:$0xff]
    %v260 = vld [vmem:[#allocation9 + $0x178] sm:$0xff]
    %v261 = vld [vmem:[#allocation9 + $0x180] sm:$0xff]
    %v262 = vld [vmem:[#allocation9 + $0x188] sm:$0xff]
    %v263 = vld [vmem:[#allocation9 + $0x190] sm:$0xff]
    %v264 = vld [vmem:[#allocation9 + $0x198] sm:$0xff]
    %v265 = vld [vmem:[#allocation9 + $0x1a0] sm:$0xff]
    %v266 = vld [vmem:[#allocation9 + $0x1a8] sm:$0xff]
    %v267 = vld [vmem:[#allocation9 + $0x1b0] sm:$0xff]
    %v268 = vld [vmem:[#allocation9 + $0x1b8] sm:$0xff]
    %v269 = vld [vmem:[#allocation9 + $0x1c0] sm:$0xff]
    %v270 = vld [vmem:[#allocation9 + $0x1c8] sm:$0xff]
    %v271 = vld [vmem:[#allocation9 + $0x1d0] sm:$0xff]
    %v272 = vld [vmem:[#allocation9 + $0x1d8] sm:$0xff]
    %v273 = vld [vmem:[#allocation9 + $0x1e0] sm:$0xff]
    %v274 = vld [vmem:[#allocation9 + $0x1e8] sm:$0xff]
    %v275 = vld [vmem:[#allocation9 + $0x1f0] sm:$0xff]
    %v276 = vld [vmem:[#allocation9 + $0x1f8] sm:$0xff]
    %v277 = vld [vmem:[#allocation9 + $0x200] sm:$0xff]
    %v278 = vld [vmem:[#allocation9 + $0x208] sm:$0xff]
    %v279 = vld [vmem:[#allocation9 + $0x210] sm:$0xff]
    %v280 = vld [vmem:[#allocation9 + $0x218] sm:$0xff]
    %v281 = vld [vmem:[#allocation9 + $0x220] sm:$0xff]
    %v282 = vld [vmem:[#allocation9 + $0x228] sm:$0xff]
    %v283 = vld [vmem:[#allocation9 + $0x230] sm:$0xff]
    %v284 = vld [vmem:[#allocation9 + $0x238] sm:$0xff]
    %v285 = vld [vmem:[#allocation9 + $0x240] sm:$0xff]
    %v286 = vld [vmem:[#allocation9 + $0x248] sm:$0xff]
    %v287 = vld [vmem:[#allocation9 + $0x250] sm:$0xff]
    %v288 = vld [vmem:[#allocation9 + $0x258] sm:$0xff]
    %v289 = vld [vmem:[#allocation9 + $0x260] sm:$0xff]
    %v290 = vld [vmem:[#allocation9 + $0x268] sm:$0xff]
    %v291 = vld [vmem:[#allocation9 + $0x270] sm:$0xff]
    %v292 = vld [vmem:[#allocation9 + $0x278] sm:$0xff]
    %v293 = vld [vmem:[#allocation9 + $0x280] sm:$0xff]
    %v294 = vld [vmem:[#allocation9 + $0x288] sm:$0xff]
    %v295 = vld [vmem:[#allocation9 + $0x290] sm:$0xff]
    %v296 = vld [vmem:[#allocation9 + $0x298] sm:$0xff]
    %v297 = vld [vmem:[#allocation9 + $0x2a0] sm:$0xff]
    %v298 = vld [vmem:[#allocation9 + $0x2a8] sm:$0xff]
    %v299 = vld [vmem:[#allocation9 + $0x2b0] sm:$0xff]
    %v300 = vld [vmem:[#allocation9 + $0x2b8] sm:$0xff]
    %v301 = vld [vmem:[#allocation9 + $0x2c0] sm:$0xff]
    %v302 = vld [vmem:[#allocation9 + $0x2c8] sm:$0xff]
    %v303 = vld [vmem:[#allocation9 + $0x2d0] sm:$0xff]
    %v304 = vld [vmem:[#allocation9 + $0x2d8] sm:$0xff]
    %v305 = vld [vmem:[#allocation9 + $0x2e0] sm:$0xff]
    %v306 = vld [vmem:[#allocation9 + $0x2e8] sm:$0xff]
    %v307 = vld [vmem:[#allocation9 + $0x2f0] sm:$0xff]
    %v308 = vld [vmem:[#allocation9 + $0x2f8] sm:$0xff]
    %v309 = vld [vmem:[#allocation9 + $0x300] sm:$0xff]
    %v310 = vld [vmem:[#allocation9 + $0x308] sm:$0xff]
    %v311 = vld [vmem:[#allocation9 + $0x310] sm:$0xff]
    %v312 = vld [vmem:[#allocation9 + $0x318] sm:$0xff]
    %v313 = vld [vmem:[#allocation9 + $0x320] sm:$0xff]
    %v314 = vld [vmem:[#allocation9 + $0x328] sm:$0xff]
    %v315 = vld [vmem:[#allocation9 + $0x330] sm:$0xff]
    %v316 = vld [vmem:[#allocation9 + $0x338] sm:$0xff]
    %v317 = vld [vmem:[#allocation9 + $0x340] sm:$0xff]
    %v318 = vld [vmem:[#allocation9 + $0x348] sm:$0xff]
    %v319 = vld [vmem:[#allocation9 + $0x350] sm:$0xff]
    %v320 = vld [vmem:[#allocation9 + $0x358] sm:$0xff]
    %v321 = vld [vmem:[#allocation9 + $0x360] sm:$0xff]
    %v322 = vld [vmem:[#allocation9 + $0x368] sm:$0xff]
    %v323 = vld [vmem:[#allocation9 + $0x370] sm:$0xff]
    %v324 = vld [vmem:[#allocation9 + $0x378] sm:$0xff]
    %v325 = vld [vmem:[#allocation9 + $0x380] sm:$0xff]
    %v326 = vld [vmem:[#allocation9 + $0x388] sm:$0xff]
    %v327 = vld [vmem:[#allocation9 + $0x390] sm:$0xff]
    %v328 = vld [vmem:[#allocation9 + $0x398] sm:$0xff]
    %v329 = vld [vmem:[#allocation9 + $0x3a0] sm:$0xff]
    %v330 = vld [vmem:[#allocation9 + $0x3a8] sm:$0xff]
    %v331 = vld [vmem:[#allocation9 + $0x3b0] sm:$0xff]
    %v332 = vld [vmem:[#allocation9 + $0x3b8] sm:$0xff]
    %v333 = vld [vmem:[#allocation9 + $0x3c0] sm:$0xff]
    %v334 = vld [vmem:[#allocation9 + $0x3c8] sm:$0xff]
    %v335 = vld [vmem:[#allocation9 + $0x3d0] sm:$0xff]
    %v336 = vld [vmem:[#allocation9 + $0x3d8] sm:$0xff]
    %v337 = vld [vmem:[#allocation9 + $0x3e0] sm:$0xff]
    %v338 = vld [vmem:[#allocation9 + $0x3e8] sm:$0xff]
    %v339 = vld [vmem:[#allocation9 + $0x3f0] sm:$0xff]
    %v340 = vld [vmem:[#allocation9 + $0x3f8] sm:$0xff]
    %v341 = vld [vmem:[#allocation11] sm:$0xff]
    %v342 = vld [vmem:[#allocation11 + $0x8] sm:$0xff]
    %v343 = vld [vmem:[#allocation11 + $0x10] sm:$0xff]
    %v344 = vld [vmem:[#allocation11 + $0x18] sm:$0xff]
    %v345 = vld [vmem:[#allocation11 + $0x20] sm:$0xff]
    %v346 = vld [vmem:[#allocation11 + $0x28] sm:$0xff]
    %v347 = vld [vmem:[#allocation11 + $0x30] sm:$0xff]
    %v348 = vld [vmem:[#allocation11 + $0x38] sm:$0xff]
    %v349 = vld [vmem:[#allocation11 + $0x40] sm:$0xff]
    %v350 = vld [vmem:[#allocation11 + $0x48] sm:$0xff]
    %v351 = vld [vmem:[#allocation11 + $0x50] sm:$0xff]
    %v352 = vld [vmem:[#allocation11 + $0x58] sm:$0xff]
    %v353 = vld [vmem:[#allocation11 + $0x60] sm:$0xff]
    %v354 = vld [vmem:[#allocation11 + $0x68] sm:$0xff]
    %v355 = vld [vmem:[#allocation11 + $0x70] sm:$0xff]
    %v356 = vld [vmem:[#allocation11 + $0x78] sm:$0xff]
    %v357 = vld [vmem:[#allocation12] sm:$0xff]
    %v358 = vld [vmem:[#allocation12 + $0x8] sm:$0xff]
    %v359 = vld [vmem:[#allocation12 + $0x10] sm:$0xff]
    %v360 = vld [vmem:[#allocation12 + $0x18] sm:$0xff]
    %v361 = vld [vmem:[#allocation12 + $0x20] sm:$0xff]
    %v362 = vld [vmem:[#allocation12 + $0x28] sm:$0xff]
    %v363 = vld [vmem:[#allocation12 + $0x30] sm:$0xff]
    %v364 = vld [vmem:[#allocation12 + $0x38] sm:$0xff]
    %v365 = vld [vmem:[#allocation12 + $0x40] sm:$0xff]
    %v366 = vld [vmem:[#allocation12 + $0x48] sm:$0xff]
    %v367 = vld [vmem:[#allocation12 + $0x50] sm:$0xff]
    %v368 = vld [vmem:[#allocation12 + $0x58] sm:$0xff]
    %v369 = vld [vmem:[#allocation12 + $0x60] sm:$0xff]
    %v370 = vld [vmem:[#allocation12 + $0x68] sm:$0xff]
    %v371 = vld [vmem:[#allocation12 + $0x70] sm:$0xff]
    %v372 = vld [vmem:[#allocation12 + $0x78] sm:$0xff]
    %v373 = vld [vmem:[#allocation12 + $0x80] sm:$0xff]
    %v374 = vld [vmem:[#allocation12 + $0x88] sm:$0xff]
    %v375 = vld [vmem:[#allocation12 + $0x90] sm:$0xff]
    %v376 = vld [vmem:[#allocation12 + $0x98] sm:$0xff]
    %v377 = vld [vmem:[#allocation12 + $0xa0] sm:$0xff]
    %v378 = vld [vmem:[#allocation12 + $0xa8] sm:$0xff]
    %v379 = vld [vmem:[#allocation12 + $0xb0] sm:$0xff]
    %v380 = vld [vmem:[#allocation12 + $0xb8] sm:$0xff]
    %v381 = vld [vmem:[#allocation12 + $0xc0] sm:$0xff]
    %v382 = vld [vmem:[#allocation12 + $0xc8] sm:$0xff]
    %v383 = vld [vmem:[#allocation12 + $0xd0] sm:$0xff]
    %v384 = vld [vmem:[#allocation12 + $0xd8] sm:$0xff]
    %v385 = vld [vmem:[#allocation12 + $0xe0] sm:$0xff]
    %v386 = vld [vmem:[#allocation12 + $0xe8] sm:$0xff]
    %v387 = vld [vmem:[#allocation12 + $0xf0] sm:$0xff]
    %v388 = vld [vmem:[#allocation12 + $0xf8] sm:$0xff]
    %v389 = vld [vmem:[#allocation12 + $0x100] sm:$0xff]
    %v390 = vld [vmem:[#allocation12 + $0x108] sm:$0xff]
    %v391 = vld [vmem:[#allocation12 + $0x110] sm:$0xff]
    %v392 = vld [vmem:[#allocation12 + $0x118] sm:$0xff]
    %v393 = vld [vmem:[#allocation12 + $0x120] sm:$0xff]
    %v394 = vld [vmem:[#allocation12 + $0x128] sm:$0xff]
    %v395 = vld [vmem:[#allocation12 + $0x130] sm:$0xff]
    %v396 = vld [vmem:[#allocation12 + $0x138] sm:$0xff]
    %v397 = vld [vmem:[#allocation12 + $0x140] sm:$0xff]
    %v398 = vld [vmem:[#allocation12 + $0x148] sm:$0xff]
    %v399 = vld [vmem:[#allocation12 + $0x150] sm:$0xff]
    %v400 = vld [vmem:[#allocation12 + $0x158] sm:$0xff]
    %v401 = vld [vmem:[#allocation12 + $0x160] sm:$0xff]
    %v402 = vld [vmem:[#allocation12 + $0x168] sm:$0xff]
    %v403 = vld [vmem:[#allocation12 + $0x170] sm:$0xff]
    %v404 = vld [vmem:[#allocation12 + $0x178] sm:$0xff]
    %v405 = vld [vmem:[#allocation12 + $0x180] sm:$0xff]
    %v406 = vld [vmem:[#allocation12 + $0x188] sm:$0xff]
    %v407 = vld [vmem:[#allocation12 + $0x190] sm:$0xff]
    %v408 = vld [vmem:[#allocation12 + $0x198] sm:$0xff]
    %v409 = vld [vmem:[#allocation12 + $0x1a0] sm:$0xff]
    %v410 = vld [vmem:[#allocation12 + $0x1a8] sm:$0xff]
    %v411 = vld [vmem:[#allocation12 + $0x1b0] sm:$0xff]
    %v412 = vld [vmem:[#allocation12 + $0x1b8] sm:$0xff]
    %v413 = vld [vmem:[#allocation12 + $0x1c0] sm:$0xff]
    %v414 = vld [vmem:[#allocation12 + $0x1c8] sm:$0xff]
    %v415 = vld [vmem:[#allocation12 + $0x1d0] sm:$0xff]
    %v416 = vld [vmem:[#allocation12 + $0x1d8] sm:$0xff]
    %v417 = vld [vmem:[#allocation12 + $0x1e0] sm:$0xff]
    %v418 = vld [vmem:[#allocation12 + $0x1e8] sm:$0xff]
    %v419 = vld [vmem:[#allocation12 + $0x1f0] sm:$0xff]
    %v420 = vld [vmem:[#allocation12 + $0x1f8] sm:$0xff]
    %v421 = vld [vmem:[#allocation12 + $0x200] sm:$0xff]
    %v422 = vld [vmem:[#allocation12 + $0x208] sm:$0xff]
    %v423 = vld [vmem:[#allocation12 + $0x210] sm:$0xff]
    %v424 = vld [vmem:[#allocation12 + $0x218] sm:$0xff]
    %v425 = vld [vmem:[#allocation12 + $0x220] sm:$0xff]
    %v426 = vld [vmem:[#allocation12 + $0x228] sm:$0xff]
    %v427 = vld [vmem:[#allocation12 + $0x230] sm:$0xff]
    %v428 = vld [vmem:[#allocation12 + $0x238] sm:$0xff]
    %v429 = vld [vmem:[#allocation12 + $0x240] sm:$0xff]
    %v430 = vld [vmem:[#allocation12 + $0x248] sm:$0xff]
    %v431 = vld [vmem:[#allocation12 + $0x250] sm:$0xff]
    %v432 = vld [vmem:[#allocation12 + $0x258] sm:$0xff]
    %v433 = vld [vmem:[#allocation12 + $0x260] sm:$0xff]
    %v434 = vld [vmem:[#allocation12 + $0x268] sm:$0xff]
    %v435 = vld [vmem:[#allocation12 + $0x270] sm:$0xff]
    %v436 = vld [vmem:[#allocation12 + $0x278] sm:$0xff]
    %v437 = vld [vmem:[#allocation12 + $0x280] sm:$0xff]
    %v438 = vld [vmem:[#allocation12 + $0x288] sm:$0xff]
    %v439 = vld [vmem:[#allocation12 + $0x290] sm:$0xff]
    %v440 = vld [vmem:[#allocation12 + $0x298] sm:$0xff]
    %v441 = vld [vmem:[#allocation12 + $0x2a0] sm:$0xff]
    %v442 = vld [vmem:[#allocation12 + $0x2a8] sm:$0xff]
    %v443 = vld [vmem:[#allocation12 + $0x2b0] sm:$0xff]
    %v444 = vld [vmem:[#allocation12 + $0x2b8] sm:$0xff]
    %v445 = vld [vmem:[#allocation12 + $0x2c0] sm:$0xff]
    %v446 = vld [vmem:[#allocation12 + $0x2c8] sm:$0xff]
    %v447 = vld [vmem:[#allocation12 + $0x2d0] sm:$0xff]
    %v448 = vld [vmem:[#allocation12 + $0x2d8] sm:$0xff]
    %v449 = vld [vmem:[#allocation12 + $0x2e0] sm:$0xff]
    %v450 = vld [vmem:[#allocation12 + $0x2e8] sm:$0xff]
    %v451 = vld [vmem:[#allocation12 + $0x2f0] sm:$0xff]
    %v452 = vld [vmem:[#allocation12 + $0x2f8] sm:$0xff]
    %v453 = vld [vmem:[#allocation12 + $0x300] sm:$0xff]
    %v454 = vld [vmem:[#allocation12 + $0x308] sm:$0xff]
    %v455 = vld [vmem:[#allocation12 + $0x310] sm:$0xff]
    %v456 = vld [vmem:[#allocation12 + $0x318] sm:$0xff]
    %v457 = vld [vmem:[#allocation12 + $0x320] sm:$0xff]
    %v458 = vld [vmem:[#allocation12 + $0x328] sm:$0xff]
    %v459 = vld [vmem:[#allocation12 + $0x330] sm:$0xff]
    %v460 = vld [vmem:[#allocation12 + $0x338] sm:$0xff]
    %v461 = vld [vmem:[#allocation12 + $0x340] sm:$0xff]
    %v462 = vld [vmem:[#allocation12 + $0x348] sm:$0xff]
    %v463 = vld [vmem:[#allocation12 + $0x350] sm:$0xff]
    %v464 = vld [vmem:[#allocation12 + $0x358] sm:$0xff]
    %v465 = vld [vmem:[#allocation12 + $0x360] sm:$0xff]
    %v466 = vld [vmem:[#allocation12 + $0x368] sm:$0xff]
    %v467 = vld [vmem:[#allocation12 + $0x370] sm:$0xff]
    %v468 = vld [vmem:[#allocation12 + $0x378] sm:$0xff]
    %v469 = vld [vmem:[#allocation12 + $0x380] sm:$0xff]
    %v470 = vld [vmem:[#allocation12 + $0x388] sm:$0xff]
    %v471 = vld [vmem:[#allocation12 + $0x390] sm:$0xff]
    %v472 = vld [vmem:[#allocation12 + $0x398] sm:$0xff]
    %v473 = vld [vmem:[#allocation12 + $0x3a0] sm:$0xff]
    %v474 = vld [vmem:[#allocation12 + $0x3a8] sm:$0xff]
    %v475 = vld [vmem:[#allocation12 + $0x3b0] sm:$0xff]
    %v476 = vld [vmem:[#allocation12 + $0x3b8] sm:$0xff]
    %v477 = vld [vmem:[#allocation12 + $0x3c0] sm:$0xff]
    %v478 = vld [vmem:[#allocation12 + $0x3c8] sm:$0xff]
    %v479 = vld [vmem:[#allocation12 + $0x3d0] sm:$0xff]
    %v480 = vld [vmem:[#allocation12 + $0x3d8] sm:$0xff]
    %v481 = vld [vmem:[#allocation12 + $0x3e0] sm:$0xff]
    %v482 = vld [vmem:[#allocation12 + $0x3e8] sm:$0xff]
    %v483 = vld [vmem:[#allocation12 + $0x3f0] sm:$0xff]
    %v484 = vld [vmem:[#allocation12 + $0x3f8] sm:$0xff]
    %v485 = vld [vmem:[#allocation14] sm:$0xff]
    %v486 = vld [vmem:[#allocation14 + $0x8] sm:$0xff]
    %v487 = vld [vmem:[#allocation14 + $0x10] sm:$0xff]
    %v488 = vld [vmem:[#allocation14 + $0x18] sm:$0xff]
    %v489 = vld [vmem:[#allocation14 + $0x20] sm:$0xff]
    %v490 = vld [vmem:[#allocation14 + $0x28] sm:$0xff]
    %v491 = vld [vmem:[#allocation14 + $0x30] sm:$0xff]
    %v492 = vld [vmem:[#allocation14 + $0x38] sm:$0xff]
    %v493 = vld [vmem:[#allocation14 + $0x40] sm:$0xff]
    %v494 = vld [vmem:[#allocation14 + $0x48] sm:$0xff]
    %v495 = vld [vmem:[#allocation14 + $0x50] sm:$0xff]
    %v496 = vld [vmem:[#allocation14 + $0x58] sm:$0xff]
    %v497 = vld [vmem:[#allocation14 + $0x60] sm:$0xff]
    %v498 = vld [vmem:[#allocation14 + $0x68] sm:$0xff]
    %v499 = vld [vmem:[#allocation14 + $0x70] sm:$0xff]
    %v500 = vld [vmem:[#allocation14 + $0x78] sm:$0xff]
    %vm501 = vcmp.eq.s32.totalorder %v143, 0
    %s502 = sld [smem:[#allocation2]]
    %v503 = vstv %s502
    %v504 = vsel %vm501, %v503, 4294967295
    %vm505 = vcmp.eq.s32.totalorder %v143, 1
    %s506 = sld [smem:[#allocation2 + $0x1]]
    %v507 = vstv %s506
    %v508 = vsel %vm505, %v507, %v504
    %vm509 = vcmp.eq.s32.totalorder %v508, %v145
    %v510 = vsel %vm509, 1, 0
    %v511 = vcvt.s32.f32 %v510
    %512 = vmatprep.subr.mxu0 0.0
    %513 = vmatpush1.msra.mxu0 %v212
    %514 = vmatprep.subr.mxu0 0.0
    %515 = vmatpush1.msra.mxu0 %v211
    %516 = vmatprep.subr.mxu0 0.0
    %517 = vmatpush1.msra.mxu0 %v210
    %518 = vmatprep.subr.mxu0 0.0
    %519 = vmatpush1.msra.mxu0 %v209
    %520 = vmatprep.subr.mxu0 0.0
    %521 = vmatpush1.msra.mxu0 %v208
    %522 = vmatprep.subr.mxu0 0.0
    %523 = vmatpush1.msra.mxu0 %v207
    %524 = vmatprep.subr.mxu0 0.0
    %525 = vmatpush1.msra.mxu0 %v206
    %526 = vmatprep.subr.mxu0 0.0
    %527 = vmatpush1.msra.mxu0 %v205
    %528 = vmatprep.subr.mxu0 0.0
    %529 = vmatpush1.msra.mxu0 %v204
    %530 = vmatprep.subr.mxu0 0.0
    %531 = vmatpush1.msra.mxu0 %v203
    %532 = vmatprep.subr.mxu0 0.0
    %533 = vmatpush1.msra.mxu0 %v202
    %534 = vmatprep.subr.mxu0 0.0
    %535 = vmatpush1.msra.mxu0 %v201
    %536 = vmatprep.subr.mxu0 0.0
    %537 = vmatpush1.msra.mxu0 %v200
    %538 = vmatprep.subr.mxu0 0.0
    %539 = vmatpush1.msra.mxu0 %v199
    %540 = vmatprep.subr.mxu0 0.0
    %541 = vmatpush1.msra.mxu0 %v198
    %542 = vmatprep.subr.mxu0 0.0
    %543 = vmatpush1.msra.mxu0 %v197
    %544 = vmatprep.subr.mxu0 0.0
    %545 = vmatpush2.msra.mxu0 0.0
    %546 = vmatprep.subr.mxu0 0.0
    %547 = vmatpush2.msra.mxu0 0.0
    %548 = vmatprep.subr.mxu0 0.0
    %549 = vmatpush2.msra.mxu0 0.0
    %550 = vmatprep.subr.mxu0 0.0
    %551 = vmatpush2.msra.mxu0 0.0
    %552 = vmatprep.subr.mxu0 0.0
    %553 = vmatpush2.msra.mxu0 0.0
    %554 = vmatprep.subr.mxu0 0.0
    %555 = vmatpush2.msra.mxu0 0.0
    %556 = vmatprep.subr.mxu0 0.0
    %557 = vmatpush2.msra.mxu0 0.0
    %558 = vmatprep.subr.mxu0 0.0
    %559 = vmatpush2.msra.mxu0 0.0
    %560 = vmatprep.subr.mxu0 0.0
    %561 = vmatpush2.msra.mxu0 0.0
    %562 = vmatprep.subr.mxu0 0.0
    %563 = vmatpush2.msra.mxu0 0.0
    %564 = vmatprep.subr.mxu0 0.0
    %565 = vmatpush2.msra.mxu0 0.0
    %566 = vmatprep.subr.mxu0 0.0
    %567 = vmatpush2.msra.mxu0 0.0
    %568 = vmatprep.subr.mxu0 0.0
    %569 = vmatpush2.msra.mxu0 0.0
    %570 = vmatprep.subr.mxu0 0.0
    %571 = vmatpush2.msra.mxu0 0.0
    %572 = vmatprep.subr.mxu0 0.0
    %573 = vmatpush2.msra.mxu0 0.0
    %574 = vmatprep.subr.mxu0 0.0
    %575 = vmatpush2.msra.mxu0 0.0
    %576 = vmatprep.mubr.f32.mxu0 0.0
    %577 = vmatmul.mubr.f32.gmra.mxu0 %v511
    %v578 = vpop.f32.mrf.mxu0
    %v579 = vadd.f32 0.0, %v578
    %v580 = vpop.f32.mrf.mxu0
    %581 = vdwg.mxu0
    %582 = vmatprep.subr.mxu0 %v274
    %583 = vmatpush1.msra.mxu0 %v273
    %584 = vmatprep.subr.mxu0 %v270
    %585 = vmatpush1.msra.mxu0 %v269
    %586 = vmatprep.subr.mxu0 %v266
    %587 = vmatpush1.msra.mxu0 %v265
    %588 = vmatprep.subr.mxu0 %v262
    %589 = vmatpush1.msra.mxu0 %v261
    %590 = vmatprep.subr.mxu0 %v258
    %591 = vmatpush1.msra.mxu0 %v257
    %592 = vmatprep.subr.mxu0 %v254
    %593 = vmatpush1.msra.mxu0 %v253
    %594 = vmatprep.subr.mxu0 %v250
    %595 = vmatpush1.msra.mxu0 %v249
    %596 = vmatprep.subr.mxu0 %v246
    %597 = vmatpush1.msra.mxu0 %v245
    %598 = vmatprep.subr.mxu0 %v242
    %599 = vmatpush1.msra.mxu0 %v241
    %600 = vmatprep.subr.mxu0 %v238
    %601 = vmatpush1.msra.mxu0 %v237
    %602 = vmatprep.subr.mxu0 %v234
    %603 = vmatpush1.msra.mxu0 %v233
    %604 = vmatprep.subr.mxu0 %v230
    %605 = vmatpush1.msra.mxu0 %v229
    %606 = vmatprep.subr.mxu0 %v226
    %607 = vmatpush1.msra.mxu0 %v225
    %608 = vmatprep.subr.mxu0 %v222
    %609 = vmatpush1.msra.mxu0 %v221
    %610 = vmatprep.subr.mxu0 %v218
    %611 = vmatpush1.msra.mxu0 %v217
    %612 = vmatprep.subr.mxu0 %v214
    %613 = vmatpush1.msra.mxu0 %v213
    %614 = vmatprep.subr.mxu0 %v338
    %615 = vmatpush2.msra.mxu0 %v337
    %616 = vmatprep.subr.mxu0 %v334
    %617 = vmatpush2.msra.mxu0 %v333
    %618 = vmatprep.subr.mxu0 %v330
    %619 = vmatpush2.msra.mxu0 %v329
    %620 = vmatprep.subr.mxu0 %v326
    %621 = vmatpush2.msra.mxu0 %v325
    %622 = vmatprep.subr.mxu0 %v322
    %623 = vmatpush2.msra.mxu0 %v321
    %624 = vmatprep.subr.mxu0 %v318
    %625 = vmatpush2.msra.mxu0 %v317
    %626 = vmatprep.subr.mxu0 %v314
    %627 = vmatpush2.msra.mxu0 %v313
    %628 = vmatprep.subr.mxu0 %v310
    %629 = vmatpush2.msra.mxu0 %v309
    %630 = vmatprep.subr.mxu0 %v306
    %631 = vmatpush2.msra.mxu0 %v305
    %632 = vmatprep.subr.mxu0 %v302
    %633 = vmatpush2.msra.mxu0 %v301
    %634 = vmatprep.subr.mxu0 %v298
    %635 = vmatpush2.msra.mxu0 %v297
    %636 = vmatprep.subr.mxu0 %v294
    %637 = vmatpush2.msra.mxu0 %v293
    %638 = vmatprep.subr.mxu0 %v290
    %639 = vmatpush2.msra.mxu0 %v289
    %640 = vmatprep.subr.mxu0 %v286
    %641 = vmatpush2.msra.mxu0 %v285
    %642 = vmatprep.subr.mxu0 %v282
    %643 = vmatpush2.msra.mxu0 %v281
    %644 = vmatprep.subr.mxu0 %v278
    %645 = vmatpush2.msra.mxu0 %v277
    %646 = vmatprep.mubr.f32.mxu0 0.0
    %647 = vmatmul.mubr.f32.gmra.mxu0 %v579
    %v648 = vpop.f32.mrf.mxu0
    %v649 = vadd.f32 %v151, %v648
    %v650 = vpop.f32.mrf.mxu0
    %v651 = vadd.f32 %v155, %v650
    %652 = vdwg.mxu0
    %653 = vmatprep.subr.mxu0 %v276
    %654 = vmatpush1.msra.mxu0 %v275
    %655 = vmatprep.subr.mxu0 %v272
    %656 = vmatpush1.msra.mxu0 %v271
    %657 = vmatprep.subr.mxu0 %v268
    %658 = vmatpush1.msra.mxu0 %v267
    %659 = vmatprep.subr.mxu0 %v264
    %660 = vmatpush1.msra.mxu0 %v263
    %661 = vmatprep.subr.mxu0 %v260
    %662 = vmatpush1.msra.mxu0 %v259
    %663 = vmatprep.subr.mxu0 %v256
    %664 = vmatpush1.msra.mxu0 %v255
    %665 = vmatprep.subr.mxu0 %v252
    %666 = vmatpush1.msra.mxu0 %v251
    %667 = vmatprep.subr.mxu0 %v248
    %668 = vmatpush1.msra.mxu0 %v247
    %669 = vmatprep.subr.mxu0 %v244
    %670 = vmatpush1.msra.mxu0 %v243
    %671 = vmatprep.subr.mxu0 %v240
    %672 = vmatpush1.msra.mxu0 %v239
    %673 = vmatprep.subr.mxu0 %v236
    %674 = vmatpush1.msra.mxu0 %v235
    %675 = vmatprep.subr.mxu0 %v232
    %676 = vmatpush1.msra.mxu0 %v231
    %677 = vmatprep.subr.mxu0 %v228
    %678 = vmatpush1.msra.mxu0 %v227
    %679 = vmatprep.subr.mxu0 %v224
    %680 = vmatpush1.msra.mxu0 %v223
    %681 = vmatprep.subr.mxu0 %v220
    %682 = vmatpush1.msra.mxu0 %v219
    %683 = vmatprep.subr.mxu0 %v216
    %684 = vmatpush1.msra.mxu0 %v215
    %685 = vmatprep.subr.mxu0 %v340
    %686 = vmatpush2.msra.mxu0 %v339
    %687 = vmatprep.subr.mxu0 %v336
    %688 = vmatpush2.msra.mxu0 %v335
    %689 = vmatprep.subr.mxu0 %v332
    %690 = vmatpush2.msra.mxu0 %v331
    %691 = vmatprep.subr.mxu0 %v328
    %692 = vmatpush2.msra.mxu0 %v327
    %693 = vmatprep.subr.mxu0 %v324
    %694 = vmatpush2.msra.mxu0 %v323
    %695 = vmatprep.subr.mxu0 %v320
    %696 = vmatpush2.msra.mxu0 %v319
    %697 = vmatprep.subr.mxu0 %v316
    %698 = vmatpush2.msra.mxu0 %v315
    %699 = vmatprep.subr.mxu0 %v312
    %700 = vmatpush2.msra.mxu0 %v311
    %701 = vmatprep.subr.mxu0 %v308
    %702 = vmatpush2.msra.mxu0 %v307
    %703 = vmatprep.subr.mxu0 %v304
    %704 = vmatpush2.msra.mxu0 %v303
    %705 = vmatprep.subr.mxu0 %v300
    %706 = vmatpush2.msra.mxu0 %v299
    %707 = vmatprep.subr.mxu0 %v296
    %708 = vmatpush2.msra.mxu0 %v295
    %709 = vmatprep.subr.mxu0 %v292
    %710 = vmatpush2.msra.mxu0 %v291
    %711 = vmatprep.subr.mxu0 %v288
    %712 = vmatpush2.msra.mxu0 %v287
    %713 = vmatprep.subr.mxu0 %v284
    %714 = vmatpush2.msra.mxu0 %v283
    %715 = vmatprep.subr.mxu0 %v280
    %716 = vmatpush2.msra.mxu0 %v279
    %717 = vmatprep.mubr.f32.mxu0 0.0
    %718 = vmatmul.mubr.f32.gmra.mxu0 %v579
    %v719 = vpop.f32.mrf.mxu0
    %v720 = vadd.f32 %v159, %v719
    %v721 = vpop.f32.mrf.mxu0
    %v722 = vadd.f32 %v163, %v721
    %723 = vdwg.mxu0
    %v724 = vxor.u32 %v649, 2147483648
    %v725 = vmul.f32 %v724, 1.442695
    %v726 = vpow.pop %v725
    %v727 = vadd.f32 %v726, 1.0
    %v728 = vrcp.pop %v727
    %v729 = vmul.f32 1.0, %v728
    %v730 = vxor.u32 %v651, 2147483648
    %v731 = vmul.f32 %v730, 1.442695
    %v732 = vpow.pop %v731
    %v733 = vadd.f32 %v732, 1.0
    %v734 = vrcp.pop %v733
    %v735 = vmul.f32 1.0, %v734
    %v736 = vtanh.pop %v720
    %v737 = vxor.u32 %v722, 2147483648
    %v738 = vmul.f32 %v737, 1.442695
    %v739 = vpow.pop %v738
    %v740 = vadd.f32 %v739, 1.0
    %v741 = vrcp.pop %v740
    %v742 = vmul.f32 1.0, %v741
    %v743 = vmul.f32 %v735, 0.0
    %v744 = vmul.f32 %v729, %v736
    %v745 = vadd.f32 %v743, %v744
    %v746 = vtanh.pop %v745
    %v747 = vmul.f32 %v742, %v746
    %s748 = sld [smem:[#allocation2 + $0x80]]
    %v749 = vstv %s748
    %v750 = vsel %vm501, %v749, 4294967295
    %s751 = sld [smem:[#allocation2 + $0x81]]
    %v752 = vstv %s751
    %v753 = vsel %vm505, %v752, %v750
    %vm754 = vcmp.eq.s32.totalorder %v753, %v145
    %v755 = vsel %vm754, 1, 0
    %v756 = vcvt.s32.f32 %v755
    %757 = vmatprep.subr.mxu0 0.0
    %758 = vmatpush1.msra.mxu0 %v212
    %759 = vmatprep.subr.mxu0 0.0
    %760 = vmatpush1.msra.mxu0 %v211
    %761 = vmatprep.subr.mxu0 0.0
    %762 = vmatpush1.msra.mxu0 %v210
    %763 = vmatprep.subr.mxu0 0.0
    %764 = vmatpush1.msra.mxu0 %v209
    %765 = vmatprep.subr.mxu0 0.0
    %766 = vmatpush1.msra.mxu0 %v208
    %767 = vmatprep.subr.mxu0 0.0
    %768 = vmatpush1.msra.mxu0 %v207
    %769 = vmatprep.subr.mxu0 0.0
    %770 = vmatpush1.msra.mxu0 %v206
    %771 = vmatprep.subr.mxu0 0.0
    %772 = vmatpush1.msra.mxu0 %v205
    %773 = vmatprep.subr.mxu0 0.0
    %774 = vmatpush1.msra.mxu0 %v204
    %775 = vmatprep.subr.mxu0 0.0
    %776 = vmatpush1.msra.mxu0 %v203
    %777 = vmatprep.subr.mxu0 0.0
    %778 = vmatpush1.msra.mxu0 %v202
    %779 = vmatprep.subr.mxu0 0.0
    %780 = vmatpush1.msra.mxu0 %v201
    %781 = vmatprep.subr.mxu0 0.0
    %782 = vmatpush1.msra.mxu0 %v200
    %783 = vmatprep.subr.mxu0 0.0
    %784 = vmatpush1.msra.mxu0 %v199
    %785 = vmatprep.subr.mxu0 0.0
    %786 = vmatpush1.msra.mxu0 %v198
    %787 = vmatprep.subr.mxu0 0.0
    %788 = vmatpush1.msra.mxu0 %v197
    %789 = vmatprep.subr.mxu0 0.0
    %790 = vmatpush2.msra.mxu0 0.0
    %791 = vmatprep.subr.mxu0 0.0
    %792 = vmatpush2.msra.mxu0 0.0
    %793 = vmatprep.subr.mxu0 0.0
    %794 = vmatpush2.msra.mxu0 0.0
    %795 = vmatprep.subr.mxu0 0.0
    %796 = vmatpush2.msra.mxu0 0.0
    %797 = vmatprep.subr.mxu0 0.0
    %798 = vmatpush2.msra.mxu0 0.0
    %799 = vmatprep.subr.mxu0 0.0
    %800 = vmatpush2.msra.mxu0 0.0
    %801 = vmatprep.subr.mxu0 0.0
    %802 = vmatpush2.msra.mxu0 0.0
    %803 = vmatprep.subr.mxu0 0.0
    %804 = vmatpush2.msra.mxu0 0.0
    %805 = vmatprep.subr.mxu0 0.0
    %806 = vmatpush2.msra.mxu0 0.0
    %807 = vmatprep.subr.mxu0 0.0
    %808 = vmatpush2.msra.mxu0 0.0
    %809 = vmatprep.subr.mxu0 0.0
    %810 = vmatpush2.msra.mxu0 0.0
    %811 = vmatprep.subr.mxu0 0.0
    %812 = vmatpush2.msra.mxu0 0.0
    %813 = vmatprep.subr.mxu0 0.0
    %814 = vmatpush2.msra.mxu0 0.0
    %815 = vmatprep.subr.mxu0 0.0
    %816 = vmatpush2.msra.mxu0 0.0
    %817 = vmatprep.subr.mxu0 0.0
    %818 = vmatpush2.msra.mxu0 0.0
    %819 = vmatprep.subr.mxu0 0.0
    %820 = vmatpush2.msra.mxu0 0.0
    %821 = vmatprep.mubr.f32.mxu0 0.0
    %822 = vmatmul.mubr.f32.gmra.mxu0 %v756
    %v823 = vpop.f32.mrf.mxu0
    %v824 = vadd.f32 0.0, %v823
    %v825 = vpop.f32.mrf.mxu0
    %826 = vdwg.mxu0
    %827 = vmatprep.subr.mxu0 %v274
    %828 = vmatpush1.msra.mxu0 %v273
    %829 = vmatprep.subr.mxu0 %v270
    %830 = vmatpush1.msra.mxu0 %v269
    %831 = vmatprep.subr.mxu0 %v266
    %832 = vmatpush1.msra.mxu0 %v265
    %833 = vmatprep.subr.mxu0 %v262
    %834 = vmatpush1.msra.mxu0 %v261
    %835 = vmatprep.subr.mxu0 %v258
    %836 = vmatpush1.msra.mxu0 %v257
    %837 = vmatprep.subr.mxu0 %v254
    %838 = vmatpush1.msra.mxu0 %v253
    %839 = vmatprep.subr.mxu0 %v250
    %840 = vmatpush1.msra.mxu0 %v249
    %841 = vmatprep.subr.mxu0 %v246
    %842 = vmatpush1.msra.mxu0 %v245
    %843 = vmatprep.subr.mxu0 %v242
    %844 = vmatpush1.msra.mxu0 %v241
    %845 = vmatprep.subr.mxu0 %v238
    %846 = vmatpush1.msra.mxu0 %v237
    %847 = vmatprep.subr.mxu0 %v234
    %848 = vmatpush1.msra.mxu0 %v233
    %849 = vmatprep.subr.mxu0 %v230
    %850 = vmatpush1.msra.mxu0 %v229
    %851 = vmatprep.subr.mxu0 %v226
    %852 = vmatpush1.msra.mxu0 %v225
    %853 = vmatprep.subr.mxu0 %v222
    %854 = vmatpush1.msra.mxu0 %v221
    %855 = vmatprep.subr.mxu0 %v218
    %856 = vmatpush1.msra.mxu0 %v217
    %857 = vmatprep.subr.mxu0 %v214
    %858 = vmatpush1.msra.mxu0 %v213
    %859 = vmatprep.subr.mxu0 %v338
    %860 = vmatpush2.msra.mxu0 %v337
    %861 = vmatprep.subr.mxu0 %v334
    %862 = vmatpush2.msra.mxu0 %v333
    %863 = vmatprep.subr.mxu0 %v330
    %864 = vmatpush2.msra.mxu0 %v329
    %865 = vmatprep.subr.mxu0 %v326
    %866 = vmatpush2.msra.mxu0 %v325
    %867 = vmatprep.subr.mxu0 %v322
    %868 = vmatpush2.msra.mxu0 %v321
    %869 = vmatprep.subr.mxu0 %v318
    %870 = vmatpush2.msra.mxu0 %v317
    %871 = vmatprep.subr.mxu0 %v314
    %872 = vmatpush2.msra.mxu0 %v313
    %873 = vmatprep.subr.mxu0 %v310
    %874 = vmatpush2.msra.mxu0 %v309
    %875 = vmatprep.subr.mxu0 %v306
    %876 = vmatpush2.msra.mxu0 %v305
    %877 = vmatprep.subr.mxu0 %v302
    %878 = vmatpush2.msra.mxu0 %v301
    %879 = vmatprep.subr.mxu0 %v298
    %880 = vmatpush2.msra.mxu0 %v297
    %881 = vmatprep.subr.mxu0 %v294
    %882 = vmatpush2.msra.mxu0 %v293
    %883 = vmatprep.subr.mxu0 %v290
    %884 = vmatpush2.msra.mxu0 %v289
    %885 = vmatprep.subr.mxu0 %v286
    %886 = vmatpush2.msra.mxu0 %v285
    %887 = vmatprep.subr.mxu0 %v282
    %888 = vmatpush2.msra.mxu0 %v281
    %889 = vmatprep.subr.mxu0 %v278
    %890 = vmatpush2.msra.mxu0 %v277
    %891 = vmatprep.mubr.f32.mxu0 %v747
    %892 = vmatmul.mubr.f32.gmra.mxu0 %v824
    %v893 = vpop.f32.mrf.mxu0
    %v894 = vadd.f32 %v151, %v893
    %v895 = vpop.f32.mrf.mxu0
    %v896 = vadd.f32 %v155, %v895
    %897 = vdwg.mxu0
    %898 = vmatprep.subr.mxu0 %v276
    %899 = vmatpush1.msra.mxu0 %v275
    %900 = vmatprep.subr.mxu0 %v272
    %901 = vmatpush1.msra.mxu0 %v271
    %902 = vmatprep.subr.mxu0 %v268
    %903 = vmatpush1.msra.mxu0 %v267
    %904 = vmatprep.subr.mxu0 %v264
    %905 = vmatpush1.msra.mxu0 %v263
    %906 = vmatprep.subr.mxu0 %v260
    %907 = vmatpush1.msra.mxu0 %v259
    %908 = vmatprep.subr.mxu0 %v256
    %909 = vmatpush1.msra.mxu0 %v255
    %910 = vmatprep.subr.mxu0 %v252
    %911 = vmatpush1.msra.mxu0 %v251
    %912 = vmatprep.subr.mxu0 %v248
    %913 = vmatpush1.msra.mxu0 %v247
    %914 = vmatprep.subr.mxu0 %v244
    %915 = vmatpush1.msra.mxu0 %v243
    %916 = vmatprep.subr.mxu0 %v240
    %917 = vmatpush1.msra.mxu0 %v239
    %918 = vmatprep.subr.mxu0 %v236
    %919 = vmatpush1.msra.mxu0 %v235
    %920 = vmatprep.subr.mxu0 %v232
    %921 = vmatpush1.msra.mxu0 %v231
    %922 = vmatprep.subr.mxu0 %v228
    %923 = vmatpush1.msra.mxu0 %v227
    %924 = vmatprep.subr.mxu0 %v224
    %925 = vmatpush1.msra.mxu0 %v223
    %926 = vmatprep.subr.mxu0 %v220
    %927 = vmatpush1.msra.mxu0 %v219
    %928 = vmatprep.subr.mxu0 %v216
    %929 = vmatpush1.msra.mxu0 %v215
    %930 = vmatprep.subr.mxu0 %v340
    %931 = vmatpush2.msra.mxu0 %v339
    %932 = vmatprep.subr.mxu0 %v336
    %933 = vmatpush2.msra.mxu0 %v335
    %934 = vmatprep.subr.mxu0 %v332
    %935 = vmatpush2.msra.mxu0 %v331
    %936 = vmatprep.subr.mxu0 %v328
    %937 = vmatpush2.msra.mxu0 %v327
    %938 = vmatprep.subr.mxu0 %v324
    %939 = vmatpush2.msra.mxu0 %v323
    %940 = vmatprep.subr.mxu0 %v320
    %941 = vmatpush2.msra.mxu0 %v319
    %942 = vmatprep.subr.mxu0 %v316
    %943 = vmatpush2.msra.mxu0 %v315
    %944 = vmatprep.subr.mxu0 %v312
    %945 = vmatpush2.msra.mxu0 %v311
    %946 = vmatprep.subr.mxu0 %v308
    %947 = vmatpush2.msra.mxu0 %v307
    %948 = vmatprep.subr.mxu0 %v304
    %949 = vmatpush2.msra.mxu0 %v303
    %950 = vmatprep.subr.mxu0 %v300
    %951 = vmatpush2.msra.mxu0 %v299
    %952 = vmatprep.subr.mxu0 %v296
    %953 = vmatpush2.msra.mxu0 %v295
    %954 = vmatprep.subr.mxu0 %v292
    %955 = vmatpush2.msra.mxu0 %v291
    %956 = vmatprep.subr.mxu0 %v288
    %957 = vmatpush2.msra.mxu0 %v287
    %958 = vmatprep.subr.mxu0 %v284
    %959 = vmatpush2.msra.mxu0 %v283
    %960 = vmatprep.subr.mxu0 %v280
    %961 = vmatpush2.msra.mxu0 %v279
    %962 = vmatprep.mubr.f32.mxu0 %v747
    %963 = vmatmul.mubr.f32.gmra.mxu0 %v824
    %v964 = vpop.f32.mrf.mxu0
    %v965 = vadd.f32 %v159, %v964
    %v966 = vpop.f32.mrf.mxu0
    %v967 = vadd.f32 %v163, %v966
    %968 = vdwg.mxu0
    %v969 = vxor.u32 %v894, 2147483648
    %v970 = vmul.f32 %v969, 1.442695
    %v971 = vpow.pop %v970
    %v972 = vadd.f32 %v971, 1.0
    %v973 = vrcp.pop %v972
    %v974 = vmul.f32 1.0, %v973
    %v975 = vxor.u32 %v896, 2147483648
    %v976 = vmul.f32 %v975, 1.442695
    %v977 = vpow.pop %v976
    %v978 = vadd.f32 %v977, 1.0
    %v979 = vrcp.pop %v978
    %v980 = vmul.f32 1.0, %v979
    %v981 = vtanh.pop %v965
    %v982 = vxor.u32 %v967, 2147483648
    %v983 = vmul.f32 %v982, 1.442695
    %v984 = vpow.pop %v983
    %v985 = vadd.f32 %v984, 1.0
    %v986 = vrcp.pop %v985
    %v987 = vmul.f32 1.0, %v986
    %v988 = vmul.f32 %v980, %v745
    %v989 = vmul.f32 %v974, %v981
    %v990 = vadd.f32 %v988, %v989
    %v991 = vtanh.pop %v990
    %v992 = vmul.f32 %v987, %v991
    %s993 = sld [smem:[#allocation2 + $0x100]]
    %v994 = vstv %s993
    %v995 = vsel %vm501, %v994, 4294967295
    %s996 = sld [smem:[#allocation2 + $0x101]]
    %v997 = vstv %s996
    %v998 = vsel %vm505, %v997, %v995
    %vm999 = vcmp.eq.s32.totalorder %v998, %v145
    %v1000 = vsel %vm999, 1, 0
    %v1001 = vcvt.s32.f32 %v1000
    %1002 = vmatprep.subr.mxu0 0.0
    %1003 = vmatpush1.msra.mxu0 %v212
    %1004 = vmatprep.subr.mxu0 0.0
    %1005 = vmatpush1.msra.mxu0 %v211
    %1006 = vmatprep.subr.mxu0 0.0
    %1007 = vmatpush1.msra.mxu0 %v210
    %1008 = vmatprep.subr.mxu0 0.0
    %1009 = vmatpush1.msra.mxu0 %v209
    %1010 = vmatprep.subr.mxu0 0.0
    %1011 = vmatpush1.msra.mxu0 %v208
    %1012 = vmatprep.subr.mxu0 0.0
    %1013 = vmatpush1.msra.mxu0 %v207
    %1014 = vmatprep.subr.mxu0 0.0
    %1015 = vmatpush1.msra.mxu0 %v206
    %1016 = vmatprep.subr.mxu0 0.0
    %1017 = vmatpush1.msra.mxu0 %v205
    %1018 = vmatprep.subr.mxu0 0.0
    %1019 = vmatpush1.msra.mxu0 %v204
    %1020 = vmatprep.subr.mxu0 0.0
    %1021 = vmatpush1.msra.mxu0 %v203
    %1022 = vmatprep.subr.mxu0 0.0
    %1023 = vmatpush1.msra.mxu0 %v202
    %1024 = vmatprep.subr.mxu0 0.0
    %1025 = vmatpush1.msra.mxu0 %v201
    %1026 = vmatprep.subr.mxu0 0.0
    %1027 = vmatpush1.msra.mxu0 %v200
    %1028 = vmatprep.subr.mxu0 0.0
    %1029 = vmatpush1.msra.mxu0 %v199
    %1030 = vmatprep.subr.mxu0 0.0
    %1031 = vmatpush1.msra.mxu0 %v198
    %1032 = vmatprep.subr.mxu0 0.0
    %1033 = vmatpush1.msra.mxu0 %v197
    %1034 = vmatprep.subr.mxu0 0.0
    %1035 = vmatpush2.msra.mxu0 0.0
    %1036 = vmatprep.subr.mxu0 0.0
    %1037 = vmatpush2.msra.mxu0 0.0
    %1038 = vmatprep.subr.mxu0 0.0
    %1039 = vmatpush2.msra.mxu0 0.0
    %1040 = vmatprep.subr.mxu0 0.0
    %1041 = vmatpush2.msra.mxu0 0.0
    %1042 = vmatprep.subr.mxu0 0.0
    %1043 = vmatpush2.msra.mxu0 0.0
    %1044 = vmatprep.subr.mxu0 0.0
    %1045 = vmatpush2.msra.mxu0 0.0
    %1046 = vmatprep.subr.mxu0 0.0
    %1047 = vmatpush2.msra.mxu0 0.0
    %1048 = vmatprep.subr.mxu0 0.0
    %1049 = vmatpush2.msra.mxu0 0.0
    %1050 = vmatprep.subr.mxu0 0.0
    %1051 = vmatpush2.msra.mxu0 0.0
    %1052 = vmatprep.subr.mxu0 0.0
    %1053 = vmatpush2.msra.mxu0 0.0
    %1054 = vmatprep.subr.mxu0 0.0
    %1055 = vmatpush2.msra.mxu0 0.0
    %1056 = vmatprep.subr.mxu0 0.0
    %1057 = vmatpush2.msra.mxu0 0.0
    %1058 = vmatprep.subr.mxu0 0.0
    %1059 = vmatpush2.msra.mxu0 0.0
    %1060 = vmatprep.subr.mxu0 0.0
    %1061 = vmatpush2.msra.mxu0 0.0
    %1062 = vmatprep.subr.mxu0 0.0
    %1063 = vmatpush2.msra.mxu0 0.0
    %1064 = vmatprep.subr.mxu0 0.0
    %1065 = vmatpush2.msra.mxu0 0.0
    %1066 = vmatprep.mubr.f32.mxu0 0.0
    %1067 = vmatmul.mubr.f32.gmra.mxu0 %v1001
    %v1068 = vpop.f32.mrf.mxu0
    %v1069 = vadd.f32 0.0, %v1068
    %v1070 = vpop.f32.mrf.mxu0
    %1071 = vdwg.mxu0
    %1072 = vmatprep.subr.mxu0 %v274
    %1073 = vmatpush1.msra.mxu0 %v273
    %1074 = vmatprep.subr.mxu0 %v270
    %1075 = vmatpush1.msra.mxu0 %v269
    %1076 = vmatprep.subr.mxu0 %v266
    %1077 = vmatpush1.msra.mxu0 %v265
    %1078 = vmatprep.subr.mxu0 %v262
    %1079 = vmatpush1.msra.mxu0 %v261
    %1080 = vmatprep.subr.mxu0 %v258
    %1081 = vmatpush1.msra.mxu0 %v257
    %1082 = vmatprep.subr.mxu0 %v254
    %1083 = vmatpush1.msra.mxu0 %v253
    %1084 = vmatprep.subr.mxu0 %v250
    %1085 = vmatpush1.msra.mxu0 %v249
    %1086 = vmatprep.subr.mxu0 %v246
    %1087 = vmatpush1.msra.mxu0 %v245
    %1088 = vmatprep.subr.mxu0 %v242
    %1089 = vmatpush1.msra.mxu0 %v241
    %1090 = vmatprep.subr.mxu0 %v238
    %1091 = vmatpush1.msra.mxu0 %v237
    %1092 = vmatprep.subr.mxu0 %v234
    %1093 = vmatpush1.msra.mxu0 %v233
    %1094 = vmatprep.subr.mxu0 %v230
    %1095 = vmatpush1.msra.mxu0 %v229
    %1096 = vmatprep.subr.mxu0 %v226
    %1097 = vmatpush1.msra.mxu0 %v225
    %1098 = vmatprep.subr.mxu0 %v222
    %1099 = vmatpush1.msra.mxu0 %v221
    %1100 = vmatprep.subr.mxu0 %v218
    %1101 = vmatpush1.msra.mxu0 %v217
    %1102 = vmatprep.subr.mxu0 %v214
    %1103 = vmatpush1.msra.mxu0 %v213
    %1104 = vmatprep.subr.mxu0 %v338
    %1105 = vmatpush2.msra.mxu0 %v337
    %1106 = vmatprep.subr.mxu0 %v334
    %1107 = vmatpush2.msra.mxu0 %v333
    %1108 = vmatprep.subr.mxu0 %v330
    %1109 = vmatpush2.msra.mxu0 %v329
    %1110 = vmatprep.subr.mxu0 %v326
    %1111 = vmatpush2.msra.mxu0 %v325
    %1112 = vmatprep.subr.mxu0 %v322
    %1113 = vmatpush2.msra.mxu0 %v321
    %1114 = vmatprep.subr.mxu0 %v318
    %1115 = vmatpush2.msra.mxu0 %v317
    %1116 = vmatprep.subr.mxu0 %v314
    %1117 = vmatpush2.msra.mxu0 %v313
    %1118 = vmatprep.subr.mxu0 %v310
    %1119 = vmatpush2.msra.mxu0 %v309
    %1120 = vmatprep.subr.mxu0 %v306
    %1121 = vmatpush2.msra.mxu0 %v305
    %1122 = vmatprep.subr.mxu0 %v302
    %1123 = vmatpush2.msra.mxu0 %v301
    %1124 = vmatprep.subr.mxu0 %v298
    %1125 = vmatpush2.msra.mxu0 %v297
    %1126 = vmatprep.subr.mxu0 %v294
    %1127 = vmatpush2.msra.mxu0 %v293
    %1128 = vmatprep.subr.mxu0 %v290
    %1129 = vmatpush2.msra.mxu0 %v289
    %1130 = vmatprep.subr.mxu0 %v286
    %1131 = vmatpush2.msra.mxu0 %v285
    %1132 = vmatprep.subr.mxu0 %v282
    %1133 = vmatpush2.msra.mxu0 %v281
    %1134 = vmatprep.subr.mxu0 %v278
    %1135 = vmatpush2.msra.mxu0 %v277
    %1136 = vmatprep.mubr.f32.mxu0 %v992
    %1137 = vmatmul.mubr.f32.gmra.mxu0 %v1069
    %v1138 = vpop.f32.mrf.mxu0
    %v1139 = vadd.f32 %v151, %v1138
    %v1140 = vpop.f32.mrf.mxu0
    %v1141 = vadd.f32 %v155, %v1140
    %1142 = vdwg.mxu0
    %1143 = vmatprep.subr.mxu0 %v276
    %1144 = vmatpush1.msra.mxu0 %v275
    %1145 = vmatprep.subr.mxu0 %v272
    %1146 = vmatpush1.msra.mxu0 %v271
    %1147 = vmatprep.subr.mxu0 %v268
    %1148 = vmatpush1.msra.mxu0 %v267
    %1149 = vmatprep.subr.mxu0 %v264
    %1150 = vmatpush1.msra.mxu0 %v263
    %1151 = vmatprep.subr.mxu0 %v260
    %1152 = vmatpush1.msra.mxu0 %v259
    %1153 = vmatprep.subr.mxu0 %v256
    %1154 = vmatpush1.msra.mxu0 %v255
    %1155 = vmatprep.subr.mxu0 %v252
    %1156 = vmatpush1.msra.mxu0 %v251
    %1157 = vmatprep.subr.mxu0 %v248
    %1158 = vmatpush1.msra.mxu0 %v247
    %1159 = vmatprep.subr.mxu0 %v244
    %1160 = vmatpush1.msra.mxu0 %v243
    %1161 = vmatprep.subr.mxu0 %v240
    %1162 = vmatpush1.msra.mxu0 %v239
    %1163 = vmatprep.subr.mxu0 %v236
    %1164 = vmatpush1.msra.mxu0 %v235
    %1165 = vmatprep.subr.mxu0 %v232
    %1166 = vmatpush1.msra.mxu0 %v231
    %1167 = vmatprep.subr.mxu0 %v228
    %1168 = vmatpush1.msra.mxu0 %v227
    %1169 = vmatprep.subr.mxu0 %v224
    %1170 = vmatpush1.msra.mxu0 %v223
    %1171 = vmatprep.subr.mxu0 %v220
    %1172 = vmatpush1.msra.mxu0 %v219
    %1173 = vmatprep.subr.mxu0 %v216
    %1174 = vmatpush1.msra.mxu0 %v215
    %1175 = vmatprep.subr.mxu0 %v340
    %1176 = vmatpush2.msra.mxu0 %v339
    %1177 = vmatprep.subr.mxu0 %v336
    %1178 = vmatpush2.msra.mxu0 %v335
    %1179 = vmatprep.subr.mxu0 %v332
    %1180 = vmatpush2.msra.mxu0 %v331
    %1181 = vmatprep.subr.mxu0 %v328
    %1182 = vmatpush2.msra.mxu0 %v327
    %1183 = vmatprep.subr.mxu0 %v324
    %1184 = vmatpush2.msra.mxu0 %v323
    %1185 = vmatprep.subr.mxu0 %v320
    %1186 = vmatpush2.msra.mxu0 %v319
    %1187 = vmatprep.subr.mxu0 %v316
    %1188 = vmatpush2.msra.mxu0 %v315
    %1189 = vmatprep.subr.mxu0 %v312
    %1190 = vmatpush2.msra.mxu0 %v311
    %1191 = vmatprep.subr.mxu0 %v308
    %1192 = vmatpush2.msra.mxu0 %v307
    %1193 = vmatprep.subr.mxu0 %v304
    %1194 = vmatpush2.msra.mxu0 %v303
    %1195 = vmatprep.subr.mxu0 %v300
    %1196 = vmatpush2.msra.mxu0 %v299
    %1197 = vmatprep.subr.mxu0 %v296
    %1198 = vmatpush2.msra.mxu0 %v295
    %1199 = vmatprep.subr.mxu0 %v292
    %1200 = vmatpush2.msra.mxu0 %v291
    %1201 = vmatprep.subr.mxu0 %v288
    %1202 = vmatpush2.msra.mxu0 %v287
    %1203 = vmatprep.subr.mxu0 %v284
    %1204 = vmatpush2.msra.mxu0 %v283
    %1205 = vmatprep.subr.mxu0 %v280
    %1206 = vmatpush2.msra.mxu0 %v279
    %1207 = vmatprep.mubr.f32.mxu0 %v992
    %1208 = vmatmul.mubr.f32.gmra.mxu0 %v1069
    %v1209 = vpop.f32.mrf.mxu0
    %v1210 = vadd.f32 %v159, %v1209
    %v1211 = vpop.f32.mrf.mxu0
    %v1212 = vadd.f32 %v163, %v1211
    %1213 = vdwg.mxu0
    %v1214 = vxor.u32 %v1139, 2147483648
    %v1215 = vmul.f32 %v1214, 1.442695
    %v1216 = vpow.pop %v1215
    %v1217 = vadd.f32 %v1216, 1.0
    %v1218 = vrcp.pop %v1217
    %v1219 = vmul.f32 1.0, %v1218
    %v1220 = vxor.u32 %v1141, 2147483648
    %v1221 = vmul.f32 %v1220, 1.442695
    %v1222 = vpow.pop %v1221
    %v1223 = vadd.f32 %v1222, 1.0
    %v1224 = vrcp.pop %v1223
    %v1225 = vmul.f32 1.0, %v1224
    %v1226 = vtanh.pop %v1210
    %v1227 = vxor.u32 %v1212, 2147483648
    %v1228 = vmul.f32 %v1227, 1.442695
    %v1229 = vpow.pop %v1228
    %v1230 = vadd.f32 %v1229, 1.0
    %v1231 = vrcp.pop %v1230
    %v1232 = vmul.f32 1.0, %v1231
    %v1233 = vmul.f32 %v1225, %v990
    %v1234 = vmul.f32 %v1219, %v1226
    %v1235 = vadd.f32 %v1233, %v1234
    %v1236 = vtanh.pop %v1235
    %v1237 = vmul.f32 %v1232, %v1236
    %s1238 = sld [smem:[#allocation2 + $0x180]]
    %v1239 = vstv %s1238
    %v1240 = vsel %vm501, %v1239, 4294967295
    %s1241 = sld [smem:[#allocation2 + $0x181]]
    %v1242 = vstv %s1241
    %v1243 = vsel %vm505, %v1242, %v1240
    %vm1244 = vcmp.eq.s32.totalorder %v1243, %v145
    %v1245 = vsel %vm1244, 1, 0
    %v1246 = vcvt.s32.f32 %v1245
    %1247 = vmatprep.subr.mxu0 0.0
    %1248 = vmatpush1.msra.mxu0 %v212
    %1249 = vmatprep.subr.mxu0 0.0
    %1250 = vmatpush1.msra.mxu0 %v211
    %1251 = vmatprep.subr.mxu0 0.0
    %1252 = vmatpush1.msra.mxu0 %v210
    %1253 = vmatprep.subr.mxu0 0.0
    %1254 = vmatpush1.msra.mxu0 %v209
    %1255 = vmatprep.subr.mxu0 0.0
    %1256 = vmatpush1.msra.mxu0 %v208
    %1257 = vmatprep.subr.mxu0 0.0
    %1258 = vmatpush1.msra.mxu0 %v207
    %1259 = vmatprep.subr.mxu0 0.0
    %1260 = vmatpush1.msra.mxu0 %v206
    %1261 = vmatprep.subr.mxu0 0.0
    %1262 = vmatpush1.msra.mxu0 %v205
    %1263 = vmatprep.subr.mxu0 0.0
    %1264 = vmatpush1.msra.mxu0 %v204
    %1265 = vmatprep.subr.mxu0 0.0
    %1266 = vmatpush1.msra.mxu0 %v203
    %1267 = vmatprep.subr.mxu0 0.0
    %1268 = vmatpush1.msra.mxu0 %v202
    %1269 = vmatprep.subr.mxu0 0.0
    %1270 = vmatpush1.msra.mxu0 %v201
    %1271 = vmatprep.subr.mxu0 0.0
    %1272 = vmatpush1.msra.mxu0 %v200
    %1273 = vmatprep.subr.mxu0 0.0
    %1274 = vmatpush1.msra.mxu0 %v199
    %1275 = vmatprep.subr.mxu0 0.0
    %1276 = vmatpush1.msra.mxu0 %v198
    %1277 = vmatprep.subr.mxu0 0.0
    %1278 = vmatpush1.msra.mxu0 %v197
    %1279 = vmatprep.subr.mxu0 0.0
    %1280 = vmatpush2.msra.mxu0 0.0
    %1281 = vmatprep.subr.mxu0 0.0
    %1282 = vmatpush2.msra.mxu0 0.0
    %1283 = vmatprep.subr.mxu0 0.0
    %1284 = vmatpush2.msra.mxu0 0.0
    %1285 = vmatprep.subr.mxu0 0.0
    %1286 = vmatpush2.msra.mxu0 0.0
    %1287 = vmatprep.subr.mxu0 0.0
    %1288 = vmatpush2.msra.mxu0 0.0
    %1289 = vmatprep.subr.mxu0 0.0
    %1290 = vmatpush2.msra.mxu0 0.0
    %1291 = vmatprep.subr.mxu0 0.0
    %1292 = vmatpush2.msra.mxu0 0.0
    %1293 = vmatprep.subr.mxu0 0.0
    %1294 = vmatpush2.msra.mxu0 0.0
    %1295 = vmatprep.subr.mxu0 0.0
    %1296 = vmatpush2.msra.mxu0 0.0
    %1297 = vmatprep.subr.mxu0 0.0
    %1298 = vmatpush2.msra.mxu0 0.0
    %1299 = vmatprep.subr.mxu0 0.0
    %1300 = vmatpush2.msra.mxu0 0.0
    %1301 = vmatprep.subr.mxu0 0.0
    %1302 = vmatpush2.msra.mxu0 0.0
    %1303 = vmatprep.subr.mxu0 0.0
    %1304 = vmatpush2.msra.mxu0 0.0
    %1305 = vmatprep.subr.mxu0 0.0
    %1306 = vmatpush2.msra.mxu0 0.0
    %1307 = vmatprep.subr.mxu0 0.0
    %1308 = vmatpush2.msra.mxu0 0.0
    %1309 = vmatprep.subr.mxu0 0.0
    %1310 = vmatpush2.msra.mxu0 0.0
    %1311 = vmatprep.mubr.f32.mxu0 0.0
    %1312 = vmatmul.mubr.f32.gmra.mxu0 %v1246
    %v1313 = vpop.f32.mrf.mxu0
    %v1314 = vadd.f32 0.0, %v1313
    %v1315 = vpop.f32.mrf.mxu0
    %1316 = vdwg.mxu0
    %1317 = vmatprep.subr.mxu0 %v274
    %1318 = vmatpush1.msra.mxu0 %v273
    %1319 = vmatprep.subr.mxu0 %v270
    %1320 = vmatpush1.msra.mxu0 %v269
    %1321 = vmatprep.subr.mxu0 %v266
    %1322 = vmatpush1.msra.mxu0 %v265
    %1323 = vmatprep.subr.mxu0 %v262
    %1324 = vmatpush1.msra.mxu0 %v261
    %1325 = vmatprep.subr.mxu0 %v258
    %1326 = vmatpush1.msra.mxu0 %v257
    %1327 = vmatprep.subr.mxu0 %v254
    %1328 = vmatpush1.msra.mxu0 %v253
    %1329 = vmatprep.subr.mxu0 %v250
    %1330 = vmatpush1.msra.mxu0 %v249
    %1331 = vmatprep.subr.mxu0 %v246
    %1332 = vmatpush1.msra.mxu0 %v245
    %1333 = vmatprep.subr.mxu0 %v242
    %1334 = vmatpush1.msra.mxu0 %v241
    %1335 = vmatprep.subr.mxu0 %v238
    %1336 = vmatpush1.msra.mxu0 %v237
    %1337 = vmatprep.subr.mxu0 %v234
    %1338 = vmatpush1.msra.mxu0 %v233
    %1339 = vmatprep.subr.mxu0 %v230
    %1340 = vmatpush1.msra.mxu0 %v229
    %1341 = vmatprep.subr.mxu0 %v226
    %1342 = vmatpush1.msra.mxu0 %v225
    %1343 = vmatprep.subr.mxu0 %v222
    %1344 = vmatpush1.msra.mxu0 %v221
    %1345 = vmatprep.subr.mxu0 %v218
    %1346 = vmatpush1.msra.mxu0 %v217
    %1347 = vmatprep.subr.mxu0 %v214
    %1348 = vmatpush1.msra.mxu0 %v213
    %1349 = vmatprep.subr.mxu0 %v338
    %1350 = vmatpush2.msra.mxu0 %v337
    %1351 = vmatprep.subr.mxu0 %v334
    %1352 = vmatpush2.msra.mxu0 %v333
    %1353 = vmatprep.subr.mxu0 %v330
    %1354 = vmatpush2.msra.mxu0 %v329
    %1355 = vmatprep.subr.mxu0 %v326
    %1356 = vmatpush2.msra.mxu0 %v325
    %1357 = vmatprep.subr.mxu0 %v322
    %1358 = vmatpush2.msra.mxu0 %v321
    %1359 = vmatprep.subr.mxu0 %v318
    %1360 = vmatpush2.msra.mxu0 %v317
    %1361 = vmatprep.subr.mxu0 %v314
    %1362 = vmatpush2.msra.mxu0 %v313
    %1363 = vmatprep.subr.mxu0 %v310
    %1364 = vmatpush2.msra.mxu0 %v309
    %1365 = vmatprep.subr.mxu0 %v306
    %1366 = vmatpush2.msra.mxu0 %v305
    %1367 = vmatprep.subr.mxu0 %v302
    %1368 = vmatpush2.msra.mxu0 %v301
    %1369 = vmatprep.subr.mxu0 %v298
    %1370 = vmatpush2.msra.mxu0 %v297
    %1371 = vmatprep.subr.mxu0 %v294
    %1372 = vmatpush2.msra.mxu0 %v293
    %1373 = vmatprep.subr.mxu0 %v290
    %1374 = vmatpush2.msra.mxu0 %v289
    %1375 = vmatprep.subr.mxu0 %v286
    %1376 = vmatpush2.msra.mxu0 %v285
    %1377 = vmatprep.subr.mxu0 %v282
    %1378 = vmatpush2.msra.mxu0 %v281
    %1379 = vmatprep.subr.mxu0 %v278
    %1380 = vmatpush2.msra.mxu0 %v277
    %1381 = vmatprep.mubr.f32.mxu0 %v1237
    %1382 = vmatmul.mubr.f32.gmra.mxu0 %v1314
    %v1383 = vpop.f32.mrf.mxu0
    %v1384 = vadd.f32 %v151, %v1383
    %v1385 = vpop.f32.mrf.mxu0
    %v1386 = vadd.f32 %v155, %v1385
    %1387 = vdwg.mxu0
    %1388 = vmatprep.subr.mxu0 %v276
    %1389 = vmatpush1.msra.mxu0 %v275
    %1390 = vmatprep.subr.mxu0 %v272
    %1391 = vmatpush1.msra.mxu0 %v271
    %1392 = vmatprep.subr.mxu0 %v268
    %1393 = vmatpush1.msra.mxu0 %v267
    %1394 = vmatprep.subr.mxu0 %v264
    %1395 = vmatpush1.msra.mxu0 %v263
    %1396 = vmatprep.subr.mxu0 %v260
    %1397 = vmatpush1.msra.mxu0 %v259
    %1398 = vmatprep.subr.mxu0 %v256
    %1399 = vmatpush1.msra.mxu0 %v255
    %1400 = vmatprep.subr.mxu0 %v252
    %1401 = vmatpush1.msra.mxu0 %v251
    %1402 = vmatprep.subr.mxu0 %v248
    %1403 = vmatpush1.msra.mxu0 %v247
    %1404 = vmatprep.subr.mxu0 %v244
    %1405 = vmatpush1.msra.mxu0 %v243
    %1406 = vmatprep.subr.mxu0 %v240
    %1407 = vmatpush1.msra.mxu0 %v239
    %1408 = vmatprep.subr.mxu0 %v236
    %1409 = vmatpush1.msra.mxu0 %v235
    %1410 = vmatprep.subr.mxu0 %v232
    %1411 = vmatpush1.msra.mxu0 %v231
    %1412 = vmatprep.subr.mxu0 %v228
    %1413 = vmatpush1.msra.mxu0 %v227
    %1414 = vmatprep.subr.mxu0 %v224
    %1415 = vmatpush1.msra.mxu0 %v223
    %1416 = vmatprep.subr.mxu0 %v220
    %1417 = vmatpush1.msra.mxu0 %v219
    %1418 = vmatprep.subr.mxu0 %v216
    %1419 = vmatpush1.msra.mxu0 %v215
    %1420 = vmatprep.subr.mxu0 %v340
    %1421 = vmatpush2.msra.mxu0 %v339
    %1422 = vmatprep.subr.mxu0 %v336
    %1423 = vmatpush2.msra.mxu0 %v335
    %1424 = vmatprep.subr.mxu0 %v332
    %1425 = vmatpush2.msra.mxu0 %v331
    %1426 = vmatprep.subr.mxu0 %v328
    %1427 = vmatpush2.msra.mxu0 %v327
    %1428 = vmatprep.subr.mxu0 %v324
    %1429 = vmatpush2.msra.mxu0 %v323
    %1430 = vmatprep.subr.mxu0 %v320
    %1431 = vmatpush2.msra.mxu0 %v319
    %1432 = vmatprep.subr.mxu0 %v316
    %1433 = vmatpush2.msra.mxu0 %v315
    %1434 = vmatprep.subr.mxu0 %v312
    %1435 = vmatpush2.msra.mxu0 %v311
    %1436 = vmatprep.subr.mxu0 %v308
    %1437 = vmatpush2.msra.mxu0 %v307
    %1438 = vmatprep.subr.mxu0 %v304
    %1439 = vmatpush2.msra.mxu0 %v303
    %1440 = vmatprep.subr.mxu0 %v300
    %1441 = vmatpush2.msra.mxu0 %v299
    %1442 = vmatprep.subr.mxu0 %v296
    %1443 = vmatpush2.msra.mxu0 %v295
    %1444 = vmatprep.subr.mxu0 %v292
    %1445 = vmatpush2.msra.mxu0 %v291
    %1446 = vmatprep.subr.mxu0 %v288
    %1447 = vmatpush2.msra.mxu0 %v287
    %1448 = vmatprep.subr.mxu0 %v284
    %1449 = vmatpush2.msra.mxu0 %v283
    %1450 = vmatprep.subr.mxu0 %v280
    %1451 = vmatpush2.msra.mxu0 %v279
    %1452 = vmatprep.mubr.f32.mxu0 %v1237
    %1453 = vmatmul.mubr.f32.gmra.mxu0 %v1314
    %v1454 = vpop.f32.mrf.mxu0
    %v1455 = vadd.f32 %v159, %v1454
    %v1456 = vpop.f32.mrf.mxu0
    %v1457 = vadd.f32 %v163, %v1456
    %1458 = vdwg.mxu0
    %v1459 = vxor.u32 %v1384, 2147483648
    %v1460 = vmul.f32 %v1459, 1.442695
    %v1461 = vpow.pop %v1460
    %v1462 = vadd.f32 %v1461, 1.0
    %v1463 = vrcp.pop %v1462
    %v1464 = vmul.f32 1.0, %v1463
    %v1465 = vxor.u32 %v1386, 2147483648
    %v1466 = vmul.f32 %v1465, 1.442695
    %v1467 = vpow.pop %v1466
    %v1468 = vadd.f32 %v1467, 1.0
    %v1469 = vrcp.pop %v1468
    %v1470 = vmul.f32 1.0, %v1469
    %v1471 = vtanh.pop %v1455
    %v1472 = vxor.u32 %v1457, 2147483648
    %v1473 = vmul.f32 %v1472, 1.442695
    %v1474 = vpow.pop %v1473
    %v1475 = vadd.f32 %v1474, 1.0
    %v1476 = vrcp.pop %v1475
    %v1477 = vmul.f32 1.0, %v1476
    %v1478 = vmul.f32 %v1470, %v1235
    %v1479 = vmul.f32 %v1464, %v1471
    %v1480 = vadd.f32 %v1478, %v1479
    %v1481 = vtanh.pop %v1480
    %v1482 = vmul.f32 %v1477, %v1481
    %s1483 = sld [smem:[#allocation2 + $0x200]]
    %v1484 = vstv %s1483
    %v1485 = vsel %vm501, %v1484, 4294967295
    %s1486 = sld [smem:[#allocation2 + $0x201]]
    %v1487 = vstv %s1486
    %v1488 = vsel %vm505, %v1487, %v1485
    %vm1489 = vcmp.eq.s32.totalorder %v1488, %v145
    %v1490 = vsel %vm1489, 1, 0
    %v1491 = vcvt.s32.f32 %v1490
    %1492 = vmatprep.subr.mxu0 0.0
    %1493 = vmatpush1.msra.mxu0 %v212
    %1494 = vmatprep.subr.mxu0 0.0
    %1495 = vmatpush1.msra.mxu0 %v211
    %1496 = vmatprep.subr.mxu0 0.0
    %1497 = vmatpush1.msra.mxu0 %v210
    %1498 = vmatprep.subr.mxu0 0.0
    %1499 = vmatpush1.msra.mxu0 %v209
    %1500 = vmatprep.subr.mxu0 0.0
    %1501 = vmatpush1.msra.mxu0 %v208
    %1502 = vmatprep.subr.mxu0 0.0
    %1503 = vmatpush1.msra.mxu0 %v207
    %1504 = vmatprep.subr.mxu0 0.0
    %1505 = vmatpush1.msra.mxu0 %v206
    %1506 = vmatprep.subr.mxu0 0.0
    %1507 = vmatpush1.msra.mxu0 %v205
    %1508 = vmatprep.subr.mxu0 0.0
    %1509 = vmatpush1.msra.mxu0 %v204
    %1510 = vmatprep.subr.mxu0 0.0
    %1511 = vmatpush1.msra.mxu0 %v203
    %1512 = vmatprep.subr.mxu0 0.0
    %1513 = vmatpush1.msra.mxu0 %v202
    %1514 = vmatprep.subr.mxu0 0.0
    %1515 = vmatpush1.msra.mxu0 %v201
    %1516 = vmatprep.subr.mxu0 0.0
    %1517 = vmatpush1.msra.mxu0 %v200
    %1518 = vmatprep.subr.mxu0 0.0
    %1519 = vmatpush1.msra.mxu0 %v199
    %1520 = vmatprep.subr.mxu0 0.0
    %1521 = vmatpush1.msra.mxu0 %v198
    %1522 = vmatprep.subr.mxu0 0.0
    %1523 = vmatpush1.msra.mxu0 %v197
    %1524 = vmatprep.subr.mxu0 0.0
    %1525 = vmatpush2.msra.mxu0 0.0
    %1526 = vmatprep.subr.mxu0 0.0
    %1527 = vmatpush2.msra.mxu0 0.0
    %1528 = vmatprep.subr.mxu0 0.0
    %1529 = vmatpush2.msra.mxu0 0.0
    %1530 = vmatprep.subr.mxu0 0.0
    %1531 = vmatpush2.msra.mxu0 0.0
    %1532 = vmatprep.subr.mxu0 0.0
    %1533 = vmatpush2.msra.mxu0 0.0
    %1534 = vmatprep.subr.mxu0 0.0
    %1535 = vmatpush2.msra.mxu0 0.0
    %1536 = vmatprep.subr.mxu0 0.0
    %1537 = vmatpush2.msra.mxu0 0.0
    %1538 = vmatprep.subr.mxu0 0.0
    %1539 = vmatpush2.msra.mxu0 0.0
    %1540 = vmatprep.subr.mxu0 0.0
    %1541 = vmatpush2.msra.mxu0 0.0
    %1542 = vmatprep.subr.mxu0 0.0
    %1543 = vmatpush2.msra.mxu0 0.0
    %1544 = vmatprep.subr.mxu0 0.0
    %1545 = vmatpush2.msra.mxu0 0.0
    %1546 = vmatprep.subr.mxu0 0.0
    %1547 = vmatpush2.msra.mxu0 0.0
    %1548 = vmatprep.subr.mxu0 0.0
    %1549 = vmatpush2.msra.mxu0 0.0
    %1550 = vmatprep.subr.mxu0 0.0
    %1551 = vmatpush2.msra.mxu0 0.0
    %1552 = vmatprep.subr.mxu0 0.0
    %1553 = vmatpush2.msra.mxu0 0.0
    %1554 = vmatprep.subr.mxu0 0.0
    %1555 = vmatpush2.msra.mxu0 0.0
    %1556 = vmatprep.mubr.f32.mxu0 0.0
    %1557 = vmatmul.mubr.f32.gmra.mxu0 %v1491
    %v1558 = vpop.f32.mrf.mxu0
    %v1559 = vadd.f32 0.0, %v1558
    %v1560 = vpop.f32.mrf.mxu0
    %1561 = vdwg.mxu0
    %1562 = vmatprep.subr.mxu0 %v274
    %1563 = vmatpush1.msra.mxu0 %v273
    %1564 = vmatprep.subr.mxu0 %v270
    %1565 = vmatpush1.msra.mxu0 %v269
    %1566 = vmatprep.subr.mxu0 %v266
    %1567 = vmatpush1.msra.mxu0 %v265
    %1568 = vmatprep.subr.mxu0 %v262
    %1569 = vmatpush1.msra.mxu0 %v261
    %1570 = vmatprep.subr.mxu0 %v258
    %1571 = vmatpush1.msra.mxu0 %v257
    %1572 = vmatprep.subr.mxu0 %v254
    %1573 = vmatpush1.msra.mxu0 %v253
    %1574 = vmatprep.subr.mxu0 %v250
    %1575 = vmatpush1.msra.mxu0 %v249
    %1576 = vmatprep.subr.mxu0 %v246
    %1577 = vmatpush1.msra.mxu0 %v245
    %1578 = vmatprep.subr.mxu0 %v242
    %1579 = vmatpush1.msra.mxu0 %v241
    %1580 = vmatprep.subr.mxu0 %v238
    %1581 = vmatpush1.msra.mxu0 %v237
    %1582 = vmatprep.subr.mxu0 %v234
    %1583 = vmatpush1.msra.mxu0 %v233
    %1584 = vmatprep.subr.mxu0 %v230
    %1585 = vmatpush1.msra.mxu0 %v229
    %1586 = vmatprep.subr.mxu0 %v226
    %1587 = vmatpush1.msra.mxu0 %v225
    %1588 = vmatprep.subr.mxu0 %v222
    %1589 = vmatpush1.msra.mxu0 %v221
    %1590 = vmatprep.subr.mxu0 %v218
    %1591 = vmatpush1.msra.mxu0 %v217
    %1592 = vmatprep.subr.mxu0 %v214
    %1593 = vmatpush1.msra.mxu0 %v213
    %1594 = vmatprep.subr.mxu0 %v338
    %1595 = vmatpush2.msra.mxu0 %v337
    %1596 = vmatprep.subr.mxu0 %v334
    %1597 = vmatpush2.msra.mxu0 %v333
    %1598 = vmatprep.subr.mxu0 %v330
    %1599 = vmatpush2.msra.mxu0 %v329
    %1600 = vmatprep.subr.mxu0 %v326
    %1601 = vmatpush2.msra.mxu0 %v325
    %1602 = vmatprep.subr.mxu0 %v322
    %1603 = vmatpush2.msra.mxu0 %v321
    %1604 = vmatprep.subr.mxu0 %v318
    %1605 = vmatpush2.msra.mxu0 %v317
    %1606 = vmatprep.subr.mxu0 %v314
    %1607 = vmatpush2.msra.mxu0 %v313
    %1608 = vmatprep.subr.mxu0 %v310
    %1609 = vmatpush2.msra.mxu0 %v309
    %1610 = vmatprep.subr.mxu0 %v306
    %1611 = vmatpush2.msra.mxu0 %v305
    %1612 = vmatprep.subr.mxu0 %v302
    %1613 = vmatpush2.msra.mxu0 %v301
    %1614 = vmatprep.subr.mxu0 %v298
    %1615 = vmatpush2.msra.mxu0 %v297
    %1616 = vmatprep.subr.mxu0 %v294
    %1617 = vmatpush2.msra.mxu0 %v293
    %1618 = vmatprep.subr.mxu0 %v290
    %1619 = vmatpush2.msra.mxu0 %v289
    %1620 = vmatprep.subr.mxu0 %v286
    %1621 = vmatpush2.msra.mxu0 %v285
    %1622 = vmatprep.subr.mxu0 %v282
    %1623 = vmatpush2.msra.mxu0 %v281
    %1624 = vmatprep.subr.mxu0 %v278
    %1625 = vmatpush2.msra.mxu0 %v277
    %1626 = vmatprep.mubr.f32.mxu0 %v1482
    %1627 = vmatmul.mubr.f32.gmra.mxu0 %v1559
    %v1628 = vpop.f32.mrf.mxu0
    %v1629 = vadd.f32 %v151, %v1628
    %v1630 = vpop.f32.mrf.mxu0
    %v1631 = vadd.f32 %v155, %v1630
    %1632 = vdwg.mxu0
    %1633 = vmatprep.subr.mxu0 %v276
    %1634 = vmatpush1.msra.mxu0 %v275
    %1635 = vmatprep.subr.mxu0 %v272
    %1636 = vmatpush1.msra.mxu0 %v271
    %1637 = vmatprep.subr.mxu0 %v268
    %1638 = vmatpush1.msra.mxu0 %v267
    %1639 = vmatprep.subr.mxu0 %v264
    %1640 = vmatpush1.msra.mxu0 %v263
    %1641 = vmatprep.subr.mxu0 %v260
    %1642 = vmatpush1.msra.mxu0 %v259
    %1643 = vmatprep.subr.mxu0 %v256
    %1644 = vmatpush1.msra.mxu0 %v255
    %1645 = vmatprep.subr.mxu0 %v252
    %1646 = vmatpush1.msra.mxu0 %v251
    %1647 = vmatprep.subr.mxu0 %v248
    %1648 = vmatpush1.msra.mxu0 %v247
    %1649 = vmatprep.subr.mxu0 %v244
    %1650 = vmatpush1.msra.mxu0 %v243
    %1651 = vmatprep.subr.mxu0 %v240
    %1652 = vmatpush1.msra.mxu0 %v239
    %1653 = vmatprep.subr.mxu0 %v236
    %1654 = vmatpush1.msra.mxu0 %v235
    %1655 = vmatprep.subr.mxu0 %v232
    %1656 = vmatpush1.msra.mxu0 %v231
    %1657 = vmatprep.subr.mxu0 %v228
    %1658 = vmatpush1.msra.mxu0 %v227
    %1659 = vmatprep.subr.mxu0 %v224
    %1660 = vmatpush1.msra.mxu0 %v223
    %1661 = vmatprep.subr.mxu0 %v220
    %1662 = vmatpush1.msra.mxu0 %v219
    %1663 = vmatprep.subr.mxu0 %v216
    %1664 = vmatpush1.msra.mxu0 %v215
    %1665 = vmatprep.subr.mxu0 %v340
    %1666 = vmatpush2.msra.mxu0 %v339
    %1667 = vmatprep.subr.mxu0 %v336
    %1668 = vmatpush2.msra.mxu0 %v335
    %1669 = vmatprep.subr.mxu0 %v332
    %1670 = vmatpush2.msra.mxu0 %v331
    %1671 = vmatprep.subr.mxu0 %v328
    %1672 = vmatpush2.msra.mxu0 %v327
    %1673 = vmatprep.subr.mxu0 %v324
    %1674 = vmatpush2.msra.mxu0 %v323
    %1675 = vmatprep.subr.mxu0 %v320
    %1676 = vmatpush2.msra.mxu0 %v319
    %1677 = vmatprep.subr.mxu0 %v316
    %1678 = vmatpush2.msra.mxu0 %v315
    %1679 = vmatprep.subr.mxu0 %v312
    %1680 = vmatpush2.msra.mxu0 %v311
    %1681 = vmatprep.subr.mxu0 %v308
    %1682 = vmatpush2.msra.mxu0 %v307
    %1683 = vmatprep.subr.mxu0 %v304
    %1684 = vmatpush2.msra.mxu0 %v303
    %1685 = vmatprep.subr.mxu0 %v300
    %1686 = vmatpush2.msra.mxu0 %v299
    %1687 = vmatprep.subr.mxu0 %v296
    %1688 = vmatpush2.msra.mxu0 %v295
    %1689 = vmatprep.subr.mxu0 %v292
    %1690 = vmatpush2.msra.mxu0 %v291
    %1691 = vmatprep.subr.mxu0 %v288
    %1692 = vmatpush2.msra.mxu0 %v287
    %1693 = vmatprep.subr.mxu0 %v284
    %1694 = vmatpush2.msra.mxu0 %v283
    %1695 = vmatprep.subr.mxu0 %v280
    %1696 = vmatpush2.msra.mxu0 %v279
    %1697 = vmatprep.mubr.f32.mxu0 %v1482
    %1698 = vmatmul.mubr.f32.gmra.mxu0 %v1559
    %v1699 = vpop.f32.mrf.mxu0
    %v1700 = vadd.f32 %v159, %v1699
    %v1701 = vpop.f32.mrf.mxu0
    %v1702 = vadd.f32 %v163, %v1701
    %1703 = vdwg.mxu0
    %v1704 = vxor.u32 %v1629, 2147483648
    %v1705 = vmul.f32 %v1704, 1.442695
    %v1706 = vpow.pop %v1705
    %v1707 = vadd.f32 %v1706, 1.0
    %v1708 = vrcp.pop %v1707
    %v1709 = vmul.f32 1.0, %v1708
    %v1710 = vxor.u32 %v1631, 2147483648
    %v1711 = vmul.f32 %v1710, 1.442695
    %v1712 = vpow.pop %v1711
    %v1713 = vadd.f32 %v1712, 1.0
    %v1714 = vrcp.pop %v1713
    %v1715 = vmul.f32 1.0, %v1714
    %v1716 = vtanh.pop %v1700
    %v1717 = vxor.u32 %v1702, 2147483648
    %v1718 = vmul.f32 %v1717, 1.442695
    %v1719 = vpow.pop %v1718
    %v1720 = vadd.f32 %v1719, 1.0
    %v1721 = vrcp.pop %v1720
    %v1722 = vmul.f32 1.0, %v1721
    %v1723 = vmul.f32 %v1715, %v1480
    %v1724 = vmul.f32 %v1709, %v1716
    %v1725 = vadd.f32 %v1723, %v1724
    %v1726 = vtanh.pop %v1725
    %v1727 = vmul.f32 %v1722, %v1726
    %s1728 = sld [smem:[#allocation2 + $0x280]]
    %v1729 = vstv %s1728
    %v1730 = vsel %vm501, %v1729, 4294967295
    %s1731 = sld [smem:[#allocation2 + $0x281]]
    %v1732 = vstv %s1731
    %v1733 = vsel %vm505, %v1732, %v1730
    %vm1734 = vcmp.eq.s32.totalorder %v1733, %v145
    %v1735 = vsel %vm1734, 1, 0
    %v1736 = vcvt.s32.f32 %v1735
    %1737 = vmatprep.subr.mxu0 0.0
    %1738 = vmatpush1.msra.mxu0 %v212
    %1739 = vmatprep.subr.mxu0 0.0
    %1740 = vmatpush1.msra.mxu0 %v211
    %1741 = vmatprep.subr.mxu0 0.0
    %1742 = vmatpush1.msra.mxu0 %v210
    %1743 = vmatprep.subr.mxu0 0.0
    %1744 = vmatpush1.msra.mxu0 %v209
    %1745 = vmatprep.subr.mxu0 0.0
    %1746 = vmatpush1.msra.mxu0 %v208
    %1747 = vmatprep.subr.mxu0 0.0
    %1748 = vmatpush1.msra.mxu0 %v207
    %1749 = vmatprep.subr.mxu0 0.0
    %1750 = vmatpush1.msra.mxu0 %v206
    %1751 = vmatprep.subr.mxu0 0.0
    %1752 = vmatpush1.msra.mxu0 %v205
    %1753 = vmatprep.subr.mxu0 0.0
    %1754 = vmatpush1.msra.mxu0 %v204
    %1755 = vmatprep.subr.mxu0 0.0
    %1756 = vmatpush1.msra.mxu0 %v203
    %1757 = vmatprep.subr.mxu0 0.0
    %1758 = vmatpush1.msra.mxu0 %v202
    %1759 = vmatprep.subr.mxu0 0.0
    %1760 = vmatpush1.msra.mxu0 %v201
    %1761 = vmatprep.subr.mxu0 0.0
    %1762 = vmatpush1.msra.mxu0 %v200
    %1763 = vmatprep.subr.mxu0 0.0
    %1764 = vmatpush1.msra.mxu0 %v199
    %1765 = vmatprep.subr.mxu0 0.0
    %1766 = vmatpush1.msra.mxu0 %v198
    %1767 = vmatprep.subr.mxu0 0.0
    %1768 = vmatpush1.msra.mxu0 %v197
    %1769 = vmatprep.subr.mxu0 0.0
    %1770 = vmatpush2.msra.mxu0 0.0
    %1771 = vmatprep.subr.mxu0 0.0
    %1772 = vmatpush2.msra.mxu0 0.0
    %1773 = vmatprep.subr.mxu0 0.0
    %1774 = vmatpush2.msra.mxu0 0.0
    %1775 = vmatprep.subr.mxu0 0.0
    %1776 = vmatpush2.msra.mxu0 0.0
    %1777 = vmatprep.subr.mxu0 0.0
    %1778 = vmatpush2.msra.mxu0 0.0
    %1779 = vmatprep.subr.mxu0 0.0
    %1780 = vmatpush2.msra.mxu0 0.0
    %1781 = vmatprep.subr.mxu0 0.0
    %1782 = vmatpush2.msra.mxu0 0.0
    %1783 = vmatprep.subr.mxu0 0.0
    %1784 = vmatpush2.msra.mxu0 0.0
    %1785 = vmatprep.subr.mxu0 0.0
    %1786 = vmatpush2.msra.mxu0 0.0
    %1787 = vmatprep.subr.mxu0 0.0
    %1788 = vmatpush2.msra.mxu0 0.0
    %1789 = vmatprep.subr.mxu0 0.0
    %1790 = vmatpush2.msra.mxu0 0.0
    %1791 = vmatprep.subr.mxu0 0.0
    %1792 = vmatpush2.msra.mxu0 0.0
    %1793 = vmatprep.subr.mxu0 0.0
    %1794 = vmatpush2.msra.mxu0 0.0
    %1795 = vmatprep.subr.mxu0 0.0
    %1796 = vmatpush2.msra.mxu0 0.0
    %1797 = vmatprep.subr.mxu0 0.0
    %1798 = vmatpush2.msra.mxu0 0.0
    %1799 = vmatprep.subr.mxu0 0.0
    %1800 = vmatpush2.msra.mxu0 0.0
    %1801 = vmatprep.mubr.f32.mxu0 0.0
    %1802 = vmatmul.mubr.f32.gmra.mxu0 %v1736
    %v1803 = vpop.f32.mrf.mxu0
    %v1804 = vadd.f32 0.0, %v1803
    %v1805 = vpop.f32.mrf.mxu0
    %1806 = vdwg.mxu0
    %1807 = vmatprep.subr.mxu0 %v274
    %1808 = vmatpush1.msra.mxu0 %v273
    %1809 = vmatprep.subr.mxu0 %v270
    %1810 = vmatpush1.msra.mxu0 %v269
    %1811 = vmatprep.subr.mxu0 %v266
    %1812 = vmatpush1.msra.mxu0 %v265
    %1813 = vmatprep.subr.mxu0 %v262
    %1814 = vmatpush1.msra.mxu0 %v261
    %1815 = vmatprep.subr.mxu0 %v258
    %1816 = vmatpush1.msra.mxu0 %v257
    %1817 = vmatprep.subr.mxu0 %v254
    %1818 = vmatpush1.msra.mxu0 %v253
    %1819 = vmatprep.subr.mxu0 %v250
    %1820 = vmatpush1.msra.mxu0 %v249
    %1821 = vmatprep.subr.mxu0 %v246
    %1822 = vmatpush1.msra.mxu0 %v245
    %1823 = vmatprep.subr.mxu0 %v242
    %1824 = vmatpush1.msra.mxu0 %v241
    %1825 = vmatprep.subr.mxu0 %v238
    %1826 = vmatpush1.msra.mxu0 %v237
    %1827 = vmatprep.subr.mxu0 %v234
    %1828 = vmatpush1.msra.mxu0 %v233
    %1829 = vmatprep.subr.mxu0 %v230
    %1830 = vmatpush1.msra.mxu0 %v229
    %1831 = vmatprep.subr.mxu0 %v226
    %1832 = vmatpush1.msra.mxu0 %v225
    %1833 = vmatprep.subr.mxu0 %v222
    %1834 = vmatpush1.msra.mxu0 %v221
    %1835 = vmatprep.subr.mxu0 %v218
    %1836 = vmatpush1.msra.mxu0 %v217
    %1837 = vmatprep.subr.mxu0 %v214
    %1838 = vmatpush1.msra.mxu0 %v213
    %1839 = vmatprep.subr.mxu0 %v338
    %1840 = vmatpush2.msra.mxu0 %v337
    %1841 = vmatprep.subr.mxu0 %v334
    %1842 = vmatpush2.msra.mxu0 %v333
    %1843 = vmatprep.subr.mxu0 %v330
    %1844 = vmatpush2.msra.mxu0 %v329
    %1845 = vmatprep.subr.mxu0 %v326
    %1846 = vmatpush2.msra.mxu0 %v325
    %1847 = vmatprep.subr.mxu0 %v322
    %1848 = vmatpush2.msra.mxu0 %v321
    %1849 = vmatprep.subr.mxu0 %v318
    %1850 = vmatpush2.msra.mxu0 %v317
    %1851 = vmatprep.subr.mxu0 %v314
    %1852 = vmatpush2.msra.mxu0 %v313
    %1853 = vmatprep.subr.mxu0 %v310
    %1854 = vmatpush2.msra.mxu0 %v309
    %1855 = vmatprep.subr.mxu0 %v306
    %1856 = vmatpush2.msra.mxu0 %v305
    %1857 = vmatprep.subr.mxu0 %v302
    %1858 = vmatpush2.msra.mxu0 %v301
    %1859 = vmatprep.subr.mxu0 %v298
    %1860 = vmatpush2.msra.mxu0 %v297
    %1861 = vmatprep.subr.mxu0 %v294
    %1862 = vmatpush2.msra.mxu0 %v293
    %1863 = vmatprep.subr.mxu0 %v290
    %1864 = vmatpush2.msra.mxu0 %v289
    %1865 = vmatprep.subr.mxu0 %v286
    %1866 = vmatpush2.msra.mxu0 %v285
    %1867 = vmatprep.subr.mxu0 %v282
    %1868 = vmatpush2.msra.mxu0 %v281
    %1869 = vmatprep.subr.mxu0 %v278
    %1870 = vmatpush2.msra.mxu0 %v277
    %1871 = vmatprep.mubr.f32.mxu0 %v1727
    %1872 = vmatmul.mubr.f32.gmra.mxu0 %v1804
    %v1873 = vpop.f32.mrf.mxu0
    %v1874 = vadd.f32 %v151, %v1873
    %v1875 = vpop.f32.mrf.mxu0
    %v1876 = vadd.f32 %v155, %v1875
    %1877 = vdwg.mxu0
    %1878 = vmatprep.subr.mxu0 %v276
    %1879 = vmatpush1.msra.mxu0 %v275
    %1880 = vmatprep.subr.mxu0 %v272
    %1881 = vmatpush1.msra.mxu0 %v271
    %1882 = vmatprep.subr.mxu0 %v268
    %1883 = vmatpush1.msra.mxu0 %v267
    %1884 = vmatprep.subr.mxu0 %v264
    %1885 = vmatpush1.msra.mxu0 %v263
    %1886 = vmatprep.subr.mxu0 %v260
    %1887 = vmatpush1.msra.mxu0 %v259
    %1888 = vmatprep.subr.mxu0 %v256
    %1889 = vmatpush1.msra.mxu0 %v255
    %1890 = vmatprep.subr.mxu0 %v252
    %1891 = vmatpush1.msra.mxu0 %v251
    %1892 = vmatprep.subr.mxu0 %v248
    %1893 = vmatpush1.msra.mxu0 %v247
    %1894 = vmatprep.subr.mxu0 %v244
    %1895 = vmatpush1.msra.mxu0 %v243
    %1896 = vmatprep.subr.mxu0 %v240
    %1897 = vmatpush1.msra.mxu0 %v239
    %1898 = vmatprep.subr.mxu0 %v236
    %1899 = vmatpush1.msra.mxu0 %v235
    %1900 = vmatprep.subr.mxu0 %v232
    %1901 = vmatpush1.msra.mxu0 %v231
    %1902 = vmatprep.subr.mxu0 %v228
    %1903 = vmatpush1.msra.mxu0 %v227
    %1904 = vmatprep.subr.mxu0 %v224
    %1905 = vmatpush1.msra.mxu0 %v223
    %1906 = vmatprep.subr.mxu0 %v220
    %1907 = vmatpush1.msra.mxu0 %v219
    %1908 = vmatprep.subr.mxu0 %v216
    %1909 = vmatpush1.msra.mxu0 %v215
    %1910 = vmatprep.subr.mxu0 %v340
    %1911 = vmatpush2.msra.mxu0 %v339
    %1912 = vmatprep.subr.mxu0 %v336
    %1913 = vmatpush2.msra.mxu0 %v335
    %1914 = vmatprep.subr.mxu0 %v332
    %1915 = vmatpush2.msra.mxu0 %v331
    %1916 = vmatprep.subr.mxu0 %v328
    %1917 = vmatpush2.msra.mxu0 %v327
    %1918 = vmatprep.subr.mxu0 %v324
    %1919 = vmatpush2.msra.mxu0 %v323
    %1920 = vmatprep.subr.mxu0 %v320
    %1921 = vmatpush2.msra.mxu0 %v319
    %1922 = vmatprep.subr.mxu0 %v316
    %1923 = vmatpush2.msra.mxu0 %v315
    %1924 = vmatprep.subr.mxu0 %v312
    %1925 = vmatpush2.msra.mxu0 %v311
    %1926 = vmatprep.subr.mxu0 %v308
    %1927 = vmatpush2.msra.mxu0 %v307
    %1928 = vmatprep.subr.mxu0 %v304
    %1929 = vmatpush2.msra.mxu0 %v303
    %1930 = vmatprep.subr.mxu0 %v300
    %1931 = vmatpush2.msra.mxu0 %v299
    %1932 = vmatprep.subr.mxu0 %v296
    %1933 = vmatpush2.msra.mxu0 %v295
    %1934 = vmatprep.subr.mxu0 %v292
    %1935 = vmatpush2.msra.mxu0 %v291
    %1936 = vmatprep.subr.mxu0 %v288
    %1937 = vmatpush2.msra.mxu0 %v287
    %1938 = vmatprep.subr.mxu0 %v284
    %1939 = vmatpush2.msra.mxu0 %v283
    %1940 = vmatprep.subr.mxu0 %v280
    %1941 = vmatpush2.msra.mxu0 %v279
    %1942 = vmatprep.mubr.f32.mxu0 %v1727
    %1943 = vmatmul.mubr.f32.gmra.mxu0 %v1804
    %v1944 = vpop.f32.mrf.mxu0
    %v1945 = vadd.f32 %v159, %v1944
    %v1946 = vpop.f32.mrf.mxu0
    %v1947 = vadd.f32 %v163, %v1946
    %1948 = vdwg.mxu0
    %v1949 = vxor.u32 %v1874, 2147483648
    %v1950 = vmul.f32 %v1949, 1.442695
    %v1951 = vpow.pop %v1950
    %v1952 = vadd.f32 %v1951, 1.0
    %v1953 = vrcp.pop %v1952
    %v1954 = vmul.f32 1.0, %v1953
    %v1955 = vxor.u32 %v1876, 2147483648
    %v1956 = vmul.f32 %v1955, 1.442695
    %v1957 = vpow.pop %v1956
    %v1958 = vadd.f32 %v1957, 1.0
    %v1959 = vrcp.pop %v1958
    %v1960 = vmul.f32 1.0, %v1959
    %v1961 = vtanh.pop %v1945
    %v1962 = vxor.u32 %v1947, 2147483648
    %v1963 = vmul.f32 %v1962, 1.442695
    %v1964 = vpow.pop %v1963
    %v1965 = vadd.f32 %v1964, 1.0
    %v1966 = vrcp.pop %v1965
    %v1967 = vmul.f32 1.0, %v1966
    %v1968 = vmul.f32 %v1960, %v1725
    %v1969 = vmul.f32 %v1954, %v1961
    %v1970 = vadd.f32 %v1968, %v1969
    %v1971 = vtanh.pop %v1970
    %v1972 = vmul.f32 %v1967, %v1971
    %s1973 = sld [smem:[#allocation2 + $0x300]]
    %v1974 = vstv %s1973
    %v1975 = vsel %vm501, %v1974, 4294967295
    %s1976 = sld [smem:[#allocation2 + $0x301]]
    %v1977 = vstv %s1976
    %v1978 = vsel %vm505, %v1977, %v1975
    %vm1979 = vcmp.eq.s32.totalorder %v1978, %v145
    %v1980 = vsel %vm1979, 1, 0
    %v1981 = vcvt.s32.f32 %v1980
    %1982 = vmatprep.subr.mxu0 0.0
    %1983 = vmatpush1.msra.mxu0 %v212
    %1984 = vmatprep.subr.mxu0 0.0
    %1985 = vmatpush1.msra.mxu0 %v211
    %1986 = vmatprep.subr.mxu0 0.0
    %1987 = vmatpush1.msra.mxu0 %v210
    %1988 = vmatprep.subr.mxu0 0.0
    %1989 = vmatpush1.msra.mxu0 %v209
    %1990 = vmatprep.subr.mxu0 0.0
    %1991 = vmatpush1.msra.mxu0 %v208
    %1992 = vmatprep.subr.mxu0 0.0
    %1993 = vmatpush1.msra.mxu0 %v207
    %1994 = vmatprep.subr.mxu0 0.0
    %1995 = vmatpush1.msra.mxu0 %v206
    %1996 = vmatprep.subr.mxu0 0.0
    %1997 = vmatpush1.msra.mxu0 %v205
    %1998 = vmatprep.subr.mxu0 0.0
    %1999 = vmatpush1.msra.mxu0 %v204
    %2000 = vmatprep.subr.mxu0 0.0
    %2001 = vmatpush1.msra.mxu0 %v203
    %2002 = vmatprep.subr.mxu0 0.0
    %2003 = vmatpush1.msra.mxu0 %v202
    %2004 = vmatprep.subr.mxu0 0.0
    %2005 = vmatpush1.msra.mxu0 %v201
    %2006 = vmatprep.subr.mxu0 0.0
    %2007 = vmatpush1.msra.mxu0 %v200
    %2008 = vmatprep.subr.mxu0 0.0
    %2009 = vmatpush1.msra.mxu0 %v199
    %2010 = vmatprep.subr.mxu0 0.0
    %2011 = vmatpush1.msra.mxu0 %v198
    %2012 = vmatprep.subr.mxu0 0.0
    %2013 = vmatpush1.msra.mxu0 %v197
    %2014 = vmatprep.subr.mxu0 0.0
    %2015 = vmatpush2.msra.mxu0 0.0
    %2016 = vmatprep.subr.mxu0 0.0
    %2017 = vmatpush2.msra.mxu0 0.0
    %2018 = vmatprep.subr.mxu0 0.0
    %2019 = vmatpush2.msra.mxu0 0.0
    %2020 = vmatprep.subr.mxu0 0.0
    %2021 = vmatpush2.msra.mxu0 0.0
    %2022 = vmatprep.subr.mxu0 0.0
    %2023 = vmatpush2.msra.mxu0 0.0
    %2024 = vmatprep.subr.mxu0 0.0
    %2025 = vmatpush2.msra.mxu0 0.0
    %2026 = vmatprep.subr.mxu0 0.0
    %2027 = vmatpush2.msra.mxu0 0.0
    %2028 = vmatprep.subr.mxu0 0.0
    %2029 = vmatpush2.msra.mxu0 0.0
    %2030 = vmatprep.subr.mxu0 0.0
    %2031 = vmatpush2.msra.mxu0 0.0
    %2032 = vmatprep.subr.mxu0 0.0
    %2033 = vmatpush2.msra.mxu0 0.0
    %2034 = vmatprep.subr.mxu0 0.0
    %2035 = vmatpush2.msra.mxu0 0.0
    %2036 = vmatprep.subr.mxu0 0.0
    %2037 = vmatpush2.msra.mxu0 0.0
    %2038 = vmatprep.subr.mxu0 0.0
    %2039 = vmatpush2.msra.mxu0 0.0
    %2040 = vmatprep.subr.mxu0 0.0
    %2041 = vmatpush2.msra.mxu0 0.0
    %2042 = vmatprep.subr.mxu0 0.0
    %2043 = vmatpush2.msra.mxu0 0.0
    %2044 = vmatprep.subr.mxu0 0.0
    %2045 = vmatpush2.msra.mxu0 0.0
    %2046 = vmatprep.mubr.f32.mxu0 0.0
    %2047 = vmatmul.mubr.f32.gmra.mxu0 %v1981
    %v2048 = vpop.f32.mrf.mxu0
    %v2049 = vadd.f32 0.0, %v2048
    %v2050 = vpop.f32.mrf.mxu0
    %2051 = vdwg.mxu0
    %2052 = vmatprep.subr.mxu0 %v274
    %2053 = vmatpush1.msra.mxu0 %v273
    %2054 = vmatprep.subr.mxu0 %v270
    %2055 = vmatpush1.msra.mxu0 %v269
    %2056 = vmatprep.subr.mxu0 %v266
    %2057 = vmatpush1.msra.mxu0 %v265
    %2058 = vmatprep.subr.mxu0 %v262
    %2059 = vmatpush1.msra.mxu0 %v261
    %2060 = vmatprep.subr.mxu0 %v258
    %2061 = vmatpush1.msra.mxu0 %v257
    %2062 = vmatprep.subr.mxu0 %v254
    %2063 = vmatpush1.msra.mxu0 %v253
    %2064 = vmatprep.subr.mxu0 %v250
    %2065 = vmatpush1.msra.mxu0 %v249
    %2066 = vmatprep.subr.mxu0 %v246
    %2067 = vmatpush1.msra.mxu0 %v245
    %2068 = vmatprep.subr.mxu0 %v242
    %2069 = vmatpush1.msra.mxu0 %v241
    %2070 = vmatprep.subr.mxu0 %v238
    %2071 = vmatpush1.msra.mxu0 %v237
    %2072 = vmatprep.subr.mxu0 %v234
    %2073 = vmatpush1.msra.mxu0 %v233
    %2074 = vmatprep.subr.mxu0 %v230
    %2075 = vmatpush1.msra.mxu0 %v229
    %2076 = vmatprep.subr.mxu0 %v226
    %2077 = vmatpush1.msra.mxu0 %v225
    %2078 = vmatprep.subr.mxu0 %v222
    %2079 = vmatpush1.msra.mxu0 %v221
    %2080 = vmatprep.subr.mxu0 %v218
    %2081 = vmatpush1.msra.mxu0 %v217
    %2082 = vmatprep.subr.mxu0 %v214
    %2083 = vmatpush1.msra.mxu0 %v213
    %2084 = vmatprep.subr.mxu0 %v338
    %2085 = vmatpush2.msra.mxu0 %v337
    %2086 = vmatprep.subr.mxu0 %v334
    %2087 = vmatpush2.msra.mxu0 %v333
    %2088 = vmatprep.subr.mxu0 %v330
    %2089 = vmatpush2.msra.mxu0 %v329
    %2090 = vmatprep.subr.mxu0 %v326
    %2091 = vmatpush2.msra.mxu0 %v325
    %2092 = vmatprep.subr.mxu0 %v322
    %2093 = vmatpush2.msra.mxu0 %v321
    %2094 = vmatprep.subr.mxu0 %v318
    %2095 = vmatpush2.msra.mxu0 %v317
    %2096 = vmatprep.subr.mxu0 %v314
    %2097 = vmatpush2.msra.mxu0 %v313
    %2098 = vmatprep.subr.mxu0 %v310
    %2099 = vmatpush2.msra.mxu0 %v309
    %2100 = vmatprep.subr.mxu0 %v306
    %2101 = vmatpush2.msra.mxu0 %v305
    %2102 = vmatprep.subr.mxu0 %v302
    %2103 = vmatpush2.msra.mxu0 %v301
    %2104 = vmatprep.subr.mxu0 %v298
    %2105 = vmatpush2.msra.mxu0 %v297
    %2106 = vmatprep.subr.mxu0 %v294
    %2107 = vmatpush2.msra.mxu0 %v293
    %2108 = vmatprep.subr.mxu0 %v290
    %2109 = vmatpush2.msra.mxu0 %v289
    %2110 = vmatprep.subr.mxu0 %v286
    %2111 = vmatpush2.msra.mxu0 %v285
    %2112 = vmatprep.subr.mxu0 %v282
    %2113 = vmatpush2.msra.mxu0 %v281
    %2114 = vmatprep.subr.mxu0 %v278
    %2115 = vmatpush2.msra.mxu0 %v277
    %2116 = vmatprep.mubr.f32.mxu0 %v1972
    %2117 = vmatmul.mubr.f32.gmra.mxu0 %v2049
    %v2118 = vpop.f32.mrf.mxu0
    %v2119 = vadd.f32 %v151, %v2118
    %v2120 = vpop.f32.mrf.mxu0
    %v2121 = vadd.f32 %v155, %v2120
    %2122 = vdwg.mxu0
    %2123 = vmatprep.subr.mxu0 %v276
    %2124 = vmatpush1.msra.mxu0 %v275
    %2125 = vmatprep.subr.mxu0 %v272
    %2126 = vmatpush1.msra.mxu0 %v271
    %2127 = vmatprep.subr.mxu0 %v268
    %2128 = vmatpush1.msra.mxu0 %v267
    %2129 = vmatprep.subr.mxu0 %v264
    %2130 = vmatpush1.msra.mxu0 %v263
    %2131 = vmatprep.subr.mxu0 %v260
    %2132 = vmatpush1.msra.mxu0 %v259
    %2133 = vmatprep.subr.mxu0 %v256
    %2134 = vmatpush1.msra.mxu0 %v255
    %2135 = vmatprep.subr.mxu0 %v252
    %2136 = vmatpush1.msra.mxu0 %v251
    %2137 = vmatprep.subr.mxu0 %v248
    %2138 = vmatpush1.msra.mxu0 %v247
    %2139 = vmatprep.subr.mxu0 %v244
    %2140 = vmatpush1.msra.mxu0 %v243
    %2141 = vmatprep.subr.mxu0 %v240
    %2142 = vmatpush1.msra.mxu0 %v239
    %2143 = vmatprep.subr.mxu0 %v236
    %2144 = vmatpush1.msra.mxu0 %v235
    %2145 = vmatprep.subr.mxu0 %v232
    %2146 = vmatpush1.msra.mxu0 %v231
    %2147 = vmatprep.subr.mxu0 %v228
    %2148 = vmatpush1.msra.mxu0 %v227
    %2149 = vmatprep.subr.mxu0 %v224
    %2150 = vmatpush1.msra.mxu0 %v223
    %2151 = vmatprep.subr.mxu0 %v220
    %2152 = vmatpush1.msra.mxu0 %v219
    %2153 = vmatprep.subr.mxu0 %v216
    %2154 = vmatpush1.msra.mxu0 %v215
    %2155 = vmatprep.subr.mxu0 %v340
    %2156 = vmatpush2.msra.mxu0 %v339
    %2157 = vmatprep.subr.mxu0 %v336
    %2158 = vmatpush2.msra.mxu0 %v335
    %2159 = vmatprep.subr.mxu0 %v332
    %2160 = vmatpush2.msra.mxu0 %v331
    %2161 = vmatprep.subr.mxu0 %v328
    %2162 = vmatpush2.msra.mxu0 %v327
    %2163 = vmatprep.subr.mxu0 %v324
    %2164 = vmatpush2.msra.mxu0 %v323
    %2165 = vmatprep.subr.mxu0 %v320
    %2166 = vmatpush2.msra.mxu0 %v319
    %2167 = vmatprep.subr.mxu0 %v316
    %2168 = vmatpush2.msra.mxu0 %v315
    %2169 = vmatprep.subr.mxu0 %v312
    %2170 = vmatpush2.msra.mxu0 %v311
    %2171 = vmatprep.subr.mxu0 %v308
    %2172 = vmatpush2.msra.mxu0 %v307
    %2173 = vmatprep.subr.mxu0 %v304
    %2174 = vmatpush2.msra.mxu0 %v303
    %2175 = vmatprep.subr.mxu0 %v300
    %2176 = vmatpush2.msra.mxu0 %v299
    %2177 = vmatprep.subr.mxu0 %v296
    %2178 = vmatpush2.msra.mxu0 %v295
    %2179 = vmatprep.subr.mxu0 %v292
    %2180 = vmatpush2.msra.mxu0 %v291
    %2181 = vmatprep.subr.mxu0 %v288
    %2182 = vmatpush2.msra.mxu0 %v287
    %2183 = vmatprep.subr.mxu0 %v284
    %2184 = vmatpush2.msra.mxu0 %v283
    %2185 = vmatprep.subr.mxu0 %v280
    %2186 = vmatpush2.msra.mxu0 %v279
    %2187 = vmatprep.mubr.f32.mxu0 %v1972
    %2188 = vmatmul.mubr.f32.gmra.mxu0 %v2049
    %v2189 = vpop.f32.mrf.mxu0
    %v2190 = vadd.f32 %v159, %v2189
    %v2191 = vpop.f32.mrf.mxu0
    %v2192 = vadd.f32 %v163, %v2191
    %2193 = vdwg.mxu0
    %v2194 = vxor.u32 %v2119, 2147483648
    %v2195 = vmul.f32 %v2194, 1.442695
    %v2196 = vpow.pop %v2195
    %v2197 = vadd.f32 %v2196, 1.0
    %v2198 = vrcp.pop %v2197
    %v2199 = vmul.f32 1.0, %v2198
    %v2200 = vxor.u32 %v2121, 2147483648
    %v2201 = vmul.f32 %v2200, 1.442695
    %v2202 = vpow.pop %v2201
    %v2203 = vadd.f32 %v2202, 1.0
    %v2204 = vrcp.pop %v2203
    %v2205 = vmul.f32 1.0, %v2204
    %v2206 = vtanh.pop %v2190
    %v2207 = vxor.u32 %v2192, 2147483648
    %v2208 = vmul.f32 %v2207, 1.442695
    %v2209 = vpow.pop %v2208
    %v2210 = vadd.f32 %v2209, 1.0
    %v2211 = vrcp.pop %v2210
    %v2212 = vmul.f32 1.0, %v2211
    %v2213 = vmul.f32 %v2205, %v1970
    %v2214 = vmul.f32 %v2199, %v2206
    %v2215 = vadd.f32 %v2213, %v2214
    %v2216 = vtanh.pop %v2215
    %v2217 = vmul.f32 %v2212, %v2216
    %s2218 = sld [smem:[#allocation2 + $0x380]]
    %v2219 = vstv %s2218
    %v2220 = vsel %vm501, %v2219, 4294967295
    %s2221 = sld [smem:[#allocation2 + $0x381]]
    %v2222 = vstv %s2221
    %v2223 = vsel %vm505, %v2222, %v2220
    %vm2224 = vcmp.eq.s32.totalorder %v2223, %v145
    %v2225 = vsel %vm2224, 1, 0
    %v2226 = vcvt.s32.f32 %v2225
    %2227 = vmatprep.subr.mxu0 0.0
    %2228 = vmatpush1.msra.mxu0 %v212
    %2229 = vmatprep.subr.mxu0 0.0
    %2230 = vmatpush1.msra.mxu0 %v211
    %2231 = vmatprep.subr.mxu0 0.0
    %2232 = vmatpush1.msra.mxu0 %v210
    %2233 = vmatprep.subr.mxu0 0.0
    %2234 = vmatpush1.msra.mxu0 %v209
    %2235 = vmatprep.subr.mxu0 0.0
    %2236 = vmatpush1.msra.mxu0 %v208
    %2237 = vmatprep.subr.mxu0 0.0
    %2238 = vmatpush1.msra.mxu0 %v207
    %2239 = vmatprep.subr.mxu0 0.0
    %2240 = vmatpush1.msra.mxu0 %v206
    %2241 = vmatprep.subr.mxu0 0.0
    %2242 = vmatpush1.msra.mxu0 %v205
    %2243 = vmatprep.subr.mxu0 0.0
    %2244 = vmatpush1.msra.mxu0 %v204
    %2245 = vmatprep.subr.mxu0 0.0
    %2246 = vmatpush1.msra.mxu0 %v203
    %2247 = vmatprep.subr.mxu0 0.0
    %2248 = vmatpush1.msra.mxu0 %v202
    %2249 = vmatprep.subr.mxu0 0.0
    %2250 = vmatpush1.msra.mxu0 %v201
    %2251 = vmatprep.subr.mxu0 0.0
    %2252 = vmatpush1.msra.mxu0 %v200
    %2253 = vmatprep.subr.mxu0 0.0
    %2254 = vmatpush1.msra.mxu0 %v199
    %2255 = vmatprep.subr.mxu0 0.0
    %2256 = vmatpush1.msra.mxu0 %v198
    %2257 = vmatprep.subr.mxu0 0.0
    %2258 = vmatpush1.msra.mxu0 %v197
    %2259 = vmatprep.subr.mxu0 0.0
    %2260 = vmatpush2.msra.mxu0 0.0
    %2261 = vmatprep.subr.mxu0 0.0
    %2262 = vmatpush2.msra.mxu0 0.0
    %2263 = vmatprep.subr.mxu0 0.0
    %2264 = vmatpush2.msra.mxu0 0.0
    %2265 = vmatprep.subr.mxu0 0.0
    %2266 = vmatpush2.msra.mxu0 0.0
    %2267 = vmatprep.subr.mxu0 0.0
    %2268 = vmatpush2.msra.mxu0 0.0
    %2269 = vmatprep.subr.mxu0 0.0
    %2270 = vmatpush2.msra.mxu0 0.0
    %2271 = vmatprep.subr.mxu0 0.0
    %2272 = vmatpush2.msra.mxu0 0.0
    %2273 = vmatprep.subr.mxu0 0.0
    %2274 = vmatpush2.msra.mxu0 0.0
    %2275 = vmatprep.subr.mxu0 0.0
    %2276 = vmatpush2.msra.mxu0 0.0
    %2277 = vmatprep.subr.mxu0 0.0
    %2278 = vmatpush2.msra.mxu0 0.0
    %2279 = vmatprep.subr.mxu0 0.0
    %2280 = vmatpush2.msra.mxu0 0.0
    %2281 = vmatprep.subr.mxu0 0.0
    %2282 = vmatpush2.msra.mxu0 0.0
    %2283 = vmatprep.subr.mxu0 0.0
    %2284 = vmatpush2.msra.mxu0 0.0
    %2285 = vmatprep.subr.mxu0 0.0
    %2286 = vmatpush2.msra.mxu0 0.0
    %2287 = vmatprep.subr.mxu0 0.0
    %2288 = vmatpush2.msra.mxu0 0.0
    %2289 = vmatprep.subr.mxu0 0.0
    %2290 = vmatpush2.msra.mxu0 0.0
    %2291 = vmatprep.mubr.f32.mxu0 0.0
    %2292 = vmatmul.mubr.f32.gmra.mxu0 %v2226
    %v2293 = vpop.f32.mrf.mxu0
    %v2294 = vadd.f32 0.0, %v2293
    %v2295 = vpop.f32.mrf.mxu0
    %2296 = vdwg.mxu0
    %2297 = vmatprep.subr.mxu0 %v274
    %2298 = vmatpush1.msra.mxu0 %v273
    %2299 = vmatprep.subr.mxu0 %v270
    %2300 = vmatpush1.msra.mxu0 %v269
    %2301 = vmatprep.subr.mxu0 %v266
    %2302 = vmatpush1.msra.mxu0 %v265
    %2303 = vmatprep.subr.mxu0 %v262
    %2304 = vmatpush1.msra.mxu0 %v261
    %2305 = vmatprep.subr.mxu0 %v258
    %2306 = vmatpush1.msra.mxu0 %v257
    %2307 = vmatprep.subr.mxu0 %v254
    %2308 = vmatpush1.msra.mxu0 %v253
    %2309 = vmatprep.subr.mxu0 %v250
    %2310 = vmatpush1.msra.mxu0 %v249
    %2311 = vmatprep.subr.mxu0 %v246
    %2312 = vmatpush1.msra.mxu0 %v245
    %2313 = vmatprep.subr.mxu0 %v242
    %2314 = vmatpush1.msra.mxu0 %v241
    %2315 = vmatprep.subr.mxu0 %v238
    %2316 = vmatpush1.msra.mxu0 %v237
    %2317 = vmatprep.subr.mxu0 %v234
    %2318 = vmatpush1.msra.mxu0 %v233
    %2319 = vmatprep.subr.mxu0 %v230
    %2320 = vmatpush1.msra.mxu0 %v229
    %2321 = vmatprep.subr.mxu0 %v226
    %2322 = vmatpush1.msra.mxu0 %v225
    %2323 = vmatprep.subr.mxu0 %v222
    %2324 = vmatpush1.msra.mxu0 %v221
    %2325 = vmatprep.subr.mxu0 %v218
    %2326 = vmatpush1.msra.mxu0 %v217
    %2327 = vmatprep.subr.mxu0 %v214
    %2328 = vmatpush1.msra.mxu0 %v213
    %2329 = vmatprep.subr.mxu0 %v338
    %2330 = vmatpush2.msra.mxu0 %v337
    %2331 = vmatprep.subr.mxu0 %v334
    %2332 = vmatpush2.msra.mxu0 %v333
    %2333 = vmatprep.subr.mxu0 %v330
    %2334 = vmatpush2.msra.mxu0 %v329
    %2335 = vmatprep.subr.mxu0 %v326
    %2336 = vmatpush2.msra.mxu0 %v325
    %2337 = vmatprep.subr.mxu0 %v322
    %2338 = vmatpush2.msra.mxu0 %v321
    %2339 = vmatprep.subr.mxu0 %v318
    %2340 = vmatpush2.msra.mxu0 %v317
    %2341 = vmatprep.subr.mxu0 %v314
    %2342 = vmatpush2.msra.mxu0 %v313
    %2343 = vmatprep.subr.mxu0 %v310
    %2344 = vmatpush2.msra.mxu0 %v309
    %2345 = vmatprep.subr.mxu0 %v306
    %2346 = vmatpush2.msra.mxu0 %v305
    %2347 = vmatprep.subr.mxu0 %v302
    %2348 = vmatpush2.msra.mxu0 %v301
    %2349 = vmatprep.subr.mxu0 %v298
    %2350 = vmatpush2.msra.mxu0 %v297
    %2351 = vmatprep.subr.mxu0 %v294
    %2352 = vmatpush2.msra.mxu0 %v293
    %2353 = vmatprep.subr.mxu0 %v290
    %2354 = vmatpush2.msra.mxu0 %v289
    %2355 = vmatprep.subr.mxu0 %v286
    %2356 = vmatpush2.msra.mxu0 %v285
    %2357 = vmatprep.subr.mxu0 %v282
    %2358 = vmatpush2.msra.mxu0 %v281
    %2359 = vmatprep.subr.mxu0 %v278
    %2360 = vmatpush2.msra.mxu0 %v277
    %2361 = vmatprep.mubr.f32.mxu0 %v2217
    %2362 = vmatmul.mubr.f32.gmra.mxu0 %v2294
    %v2363 = vpop.f32.mrf.mxu0
    %v2364 = vadd.f32 %v151, %v2363
    %v2365 = vpop.f32.mrf.mxu0
    %v2366 = vadd.f32 %v155, %v2365
    %2367 = vdwg.mxu0
    %2368 = vmatprep.subr.mxu0 %v276
    %2369 = vmatpush1.msra.mxu0 %v275
    %2370 = vmatprep.subr.mxu0 %v272
    %2371 = vmatpush1.msra.mxu0 %v271
    %2372 = vmatprep.subr.mxu0 %v268
    %2373 = vmatpush1.msra.mxu0 %v267
    %2374 = vmatprep.subr.mxu0 %v264
    %2375 = vmatpush1.msra.mxu0 %v263
    %2376 = vmatprep.subr.mxu0 %v260
    %2377 = vmatpush1.msra.mxu0 %v259
    %2378 = vmatprep.subr.mxu0 %v256
    %2379 = vmatpush1.msra.mxu0 %v255
    %2380 = vmatprep.subr.mxu0 %v252
    %2381 = vmatpush1.msra.mxu0 %v251
    %2382 = vmatprep.subr.mxu0 %v248
    %2383 = vmatpush1.msra.mxu0 %v247
    %2384 = vmatprep.subr.mxu0 %v244
    %2385 = vmatpush1.msra.mxu0 %v243
    %2386 = vmatprep.subr.mxu0 %v240
    %2387 = vmatpush1.msra.mxu0 %v239
    %2388 = vmatprep.subr.mxu0 %v236
    %2389 = vmatpush1.msra.mxu0 %v235
    %2390 = vmatprep.subr.mxu0 %v232
    %2391 = vmatpush1.msra.mxu0 %v231
    %2392 = vmatprep.subr.mxu0 %v228
    %2393 = vmatpush1.msra.mxu0 %v227
    %2394 = vmatprep.subr.mxu0 %v224
    %2395 = vmatpush1.msra.mxu0 %v223
    %2396 = vmatprep.subr.mxu0 %v220
    %2397 = vmatpush1.msra.mxu0 %v219
    %2398 = vmatprep.subr.mxu0 %v216
    %2399 = vmatpush1.msra.mxu0 %v215
    %2400 = vmatprep.subr.mxu0 %v340
    %2401 = vmatpush2.msra.mxu0 %v339
    %2402 = vmatprep.subr.mxu0 %v336
    %2403 = vmatpush2.msra.mxu0 %v335
    %2404 = vmatprep.subr.mxu0 %v332
    %2405 = vmatpush2.msra.mxu0 %v331
    %2406 = vmatprep.subr.mxu0 %v328
    %2407 = vmatpush2.msra.mxu0 %v327
    %2408 = vmatprep.subr.mxu0 %v324
    %2409 = vmatpush2.msra.mxu0 %v323
    %2410 = vmatprep.subr.mxu0 %v320
    %2411 = vmatpush2.msra.mxu0 %v319
    %2412 = vmatprep.subr.mxu0 %v316
    %2413 = vmatpush2.msra.mxu0 %v315
    %2414 = vmatprep.subr.mxu0 %v312
    %2415 = vmatpush2.msra.mxu0 %v311
    %2416 = vmatprep.subr.mxu0 %v308
    %2417 = vmatpush2.msra.mxu0 %v307
    %2418 = vmatprep.subr.mxu0 %v304
    %2419 = vmatpush2.msra.mxu0 %v303
    %2420 = vmatprep.subr.mxu0 %v300
    %2421 = vmatpush2.msra.mxu0 %v299
    %2422 = vmatprep.subr.mxu0 %v296
    %2423 = vmatpush2.msra.mxu0 %v295
    %2424 = vmatprep.subr.mxu0 %v292
    %2425 = vmatpush2.msra.mxu0 %v291
    %2426 = vmatprep.subr.mxu0 %v288
    %2427 = vmatpush2.msra.mxu0 %v287
    %2428 = vmatprep.subr.mxu0 %v284
    %2429 = vmatpush2.msra.mxu0 %v283
    %2430 = vmatprep.subr.mxu0 %v280
    %2431 = vmatpush2.msra.mxu0 %v279
    %2432 = vmatprep.mubr.f32.mxu0 %v2217
    %2433 = vmatmul.mubr.f32.gmra.mxu0 %v2294
    %v2434 = vpop.f32.mrf.mxu0
    %v2435 = vadd.f32 %v159, %v2434
    %v2436 = vpop.f32.mrf.mxu0
    %v2437 = vadd.f32 %v163, %v2436
    %2438 = vdwg.mxu0
    %v2439 = vxor.u32 %v2364, 2147483648
    %v2440 = vmul.f32 %v2439, 1.442695
    %v2441 = vpow.pop %v2440
    %v2442 = vadd.f32 %v2441, 1.0
    %v2443 = vrcp.pop %v2442
    %v2444 = vmul.f32 1.0, %v2443
    %v2445 = vxor.u32 %v2366, 2147483648
    %v2446 = vmul.f32 %v2445, 1.442695
    %v2447 = vpow.pop %v2446
    %v2448 = vadd.f32 %v2447, 1.0
    %v2449 = vrcp.pop %v2448
    %v2450 = vmul.f32 1.0, %v2449
    %v2451 = vtanh.pop %v2435
    %v2452 = vxor.u32 %v2437, 2147483648
    %v2453 = vmul.f32 %v2452, 1.442695
    %v2454 = vpow.pop %v2453
    %v2455 = vadd.f32 %v2454, 1.0
    %v2456 = vrcp.pop %v2455
    %v2457 = vmul.f32 1.0, %v2456
    %v2458 = vmul.f32 %v2450, %v2215
    %v2459 = vmul.f32 %v2444, %v2451
    %v2460 = vadd.f32 %v2458, %v2459
    %v2461 = vtanh.pop %v2460
    %v2462 = vmul.f32 %v2457, %v2461
    %2463 = vst [vmem:[%s11] sm:$0xff] 0.0
    %s2464 = sld [smem:[#allocation5]]
    %v2465 = vstv %s2464
    %v2466 = vsel %vm501, %v2465, 4294967295
    %s2467 = sld [smem:[#allocation5 + $0x1]]
    %v2468 = vstv %s2467
    %v2469 = vsel %vm505, %v2468, %v2466
    %vm2470 = vcmp.eq.s32.totalorder %v2469, %v145
    %v2471 = vsel %vm2470, 1, 0
    %v2472 = vcvt.s32.f32 %v2471
    %2473 = vmatprep.subr.mxu0 0.0
    %2474 = vmatpush1.msra.mxu0 %v356
    %2475 = vmatprep.subr.mxu0 0.0
    %2476 = vmatpush1.msra.mxu0 %v355
    %2477 = vmatprep.subr.mxu0 0.0
    %2478 = vmatpush1.msra.mxu0 %v354
    %2479 = vmatprep.subr.mxu0 0.0
    %2480 = vmatpush1.msra.mxu0 %v353
    %2481 = vmatprep.subr.mxu0 0.0
    %2482 = vmatpush1.msra.mxu0 %v352
    %2483 = vmatprep.subr.mxu0 0.0
    %2484 = vmatpush1.msra.mxu0 %v351
    %2485 = vmatprep.subr.mxu0 0.0
    %2486 = vmatpush1.msra.mxu0 %v350
    %2487 = vmatprep.subr.mxu0 0.0
    %2488 = vmatpush1.msra.mxu0 %v349
    %2489 = vmatprep.subr.mxu0 0.0
    %2490 = vmatpush1.msra.mxu0 %v348
    %2491 = vmatprep.subr.mxu0 0.0
    %2492 = vmatpush1.msra.mxu0 %v347
    %2493 = vmatprep.subr.mxu0 0.0
    %2494 = vmatpush1.msra.mxu0 %v346
    %2495 = vmatprep.subr.mxu0 0.0
    %2496 = vmatpush1.msra.mxu0 %v345
    %2497 = vmatprep.subr.mxu0 0.0
    %2498 = vmatpush1.msra.mxu0 %v344
    %2499 = vmatprep.subr.mxu0 0.0
    %2500 = vmatpush1.msra.mxu0 %v343
    %2501 = vmatprep.subr.mxu0 0.0
    %2502 = vmatpush1.msra.mxu0 %v342
    %2503 = vmatprep.subr.mxu0 0.0
    %2504 = vmatpush1.msra.mxu0 %v341
    %2505 = vmatprep.subr.mxu0 0.0
    %2506 = vmatpush2.msra.mxu0 0.0
    %2507 = vmatprep.subr.mxu0 0.0
    %2508 = vmatpush2.msra.mxu0 0.0
    %2509 = vmatprep.subr.mxu0 0.0
    %2510 = vmatpush2.msra.mxu0 0.0
    %2511 = vmatprep.subr.mxu0 0.0
    %2512 = vmatpush2.msra.mxu0 0.0
    %2513 = vmatprep.subr.mxu0 0.0
    %2514 = vmatpush2.msra.mxu0 0.0
    %2515 = vmatprep.subr.mxu0 0.0
    %2516 = vmatpush2.msra.mxu0 0.0
    %2517 = vmatprep.subr.mxu0 0.0
    %2518 = vmatpush2.msra.mxu0 0.0
    %2519 = vmatprep.subr.mxu0 0.0
    %2520 = vmatpush2.msra.mxu0 0.0
    %2521 = vmatprep.subr.mxu0 0.0
    %2522 = vmatpush2.msra.mxu0 0.0
    %2523 = vmatprep.subr.mxu0 0.0
    %2524 = vmatpush2.msra.mxu0 0.0
    %2525 = vmatprep.subr.mxu0 0.0
    %2526 = vmatpush2.msra.mxu0 0.0
    %2527 = vmatprep.subr.mxu0 0.0
    %2528 = vmatpush2.msra.mxu0 0.0
    %2529 = vmatprep.subr.mxu0 0.0
    %2530 = vmatpush2.msra.mxu0 0.0
    %2531 = vmatprep.subr.mxu0 0.0
    %2532 = vmatpush2.msra.mxu0 0.0
    %2533 = vmatprep.subr.mxu0 0.0
    %2534 = vmatpush2.msra.mxu0 0.0
    %2535 = vmatprep.subr.mxu0 0.0
    %2536 = vmatpush2.msra.mxu0 0.0
    %2537 = vmatprep.mubr.f32.mxu0 0.0
    %2538 = vmatmul.mubr.f32.gmra.mxu0 %v2472
    %v2539 = vpop.f32.mrf.mxu0
    %v2540 = vadd.f32 0.0, %v2539
    %v2541 = vpop.f32.mrf.mxu0
    %2542 = vdwg.mxu0
    %2543 = vmatprep.subr.mxu0 %v418
    %2544 = vmatpush1.msra.mxu0 %v417
    %2545 = vmatprep.subr.mxu0 %v414
    %2546 = vmatpush1.msra.mxu0 %v413
    %2547 = vmatprep.subr.mxu0 %v410
    %2548 = vmatpush1.msra.mxu0 %v409
    %2549 = vmatprep.subr.mxu0 %v406
    %2550 = vmatpush1.msra.mxu0 %v405
    %2551 = vmatprep.subr.mxu0 %v402
    %2552 = vmatpush1.msra.mxu0 %v401
    %2553 = vmatprep.subr.mxu0 %v398
    %2554 = vmatpush1.msra.mxu0 %v397
    %2555 = vmatprep.subr.mxu0 %v394
    %2556 = vmatpush1.msra.mxu0 %v393
    %2557 = vmatprep.subr.mxu0 %v390
    %2558 = vmatpush1.msra.mxu0 %v389
    %2559 = vmatprep.subr.mxu0 %v386
    %2560 = vmatpush1.msra.mxu0 %v385
    %2561 = vmatprep.subr.mxu0 %v382
    %2562 = vmatpush1.msra.mxu0 %v381
    %2563 = vmatprep.subr.mxu0 %v378
    %2564 = vmatpush1.msra.mxu0 %v377
    %2565 = vmatprep.subr.mxu0 %v374
    %2566 = vmatpush1.msra.mxu0 %v373
    %2567 = vmatprep.subr.mxu0 %v370
    %2568 = vmatpush1.msra.mxu0 %v369
    %2569 = vmatprep.subr.mxu0 %v366
    %2570 = vmatpush1.msra.mxu0 %v365
    %2571 = vmatprep.subr.mxu0 %v362
    %2572 = vmatpush1.msra.mxu0 %v361
    %2573 = vmatprep.subr.mxu0 %v358
    %2574 = vmatpush1.msra.mxu0 %v357
    %2575 = vmatprep.subr.mxu0 %v482
    %2576 = vmatpush2.msra.mxu0 %v481
    %2577 = vmatprep.subr.mxu0 %v478
    %2578 = vmatpush2.msra.mxu0 %v477
    %2579 = vmatprep.subr.mxu0 %v474
    %2580 = vmatpush2.msra.mxu0 %v473
    %2581 = vmatprep.subr.mxu0 %v470
    %2582 = vmatpush2.msra.mxu0 %v469
    %2583 = vmatprep.subr.mxu0 %v466
    %2584 = vmatpush2.msra.mxu0 %v465
    %2585 = vmatprep.subr.mxu0 %v462
    %2586 = vmatpush2.msra.mxu0 %v461
    %2587 = vmatprep.subr.mxu0 %v458
    %2588 = vmatpush2.msra.mxu0 %v457
    %2589 = vmatprep.subr.mxu0 %v454
    %2590 = vmatpush2.msra.mxu0 %v453
    %2591 = vmatprep.subr.mxu0 %v450
    %2592 = vmatpush2.msra.mxu0 %v449
    %2593 = vmatprep.subr.mxu0 %v446
    %2594 = vmatpush2.msra.mxu0 %v445
    %2595 = vmatprep.subr.mxu0 %v442
    %2596 = vmatpush2.msra.mxu0 %v441
    %2597 = vmatprep.subr.mxu0 %v438
    %2598 = vmatpush2.msra.mxu0 %v437
    %2599 = vmatprep.subr.mxu0 %v434
    %2600 = vmatpush2.msra.mxu0 %v433
    %2601 = vmatprep.subr.mxu0 %v430
    %2602 = vmatpush2.msra.mxu0 %v429
    %2603 = vmatprep.subr.mxu0 %v426
    %2604 = vmatpush2.msra.mxu0 %v425
    %2605 = vmatprep.subr.mxu0 %v422
    %2606 = vmatpush2.msra.mxu0 %v421
    %2607 = vmatprep.mubr.f32.mxu0 %v2462
    %2608 = vmatmul.mubr.f32.gmra.mxu0 %v2540
    %v2609 = vpop.f32.mrf.mxu0
    %v2610 = vadd.f32 %v173, %v2609
    %v2611 = vpop.f32.mrf.mxu0
    %v2612 = vadd.f32 %v177, %v2611
    %2613 = vdwg.mxu0
    %2614 = vmatprep.subr.mxu0 %v420
    %2615 = vmatpush1.msra.mxu0 %v419
    %2616 = vmatprep.subr.mxu0 %v416
    %2617 = vmatpush1.msra.mxu0 %v415
    %2618 = vmatprep.subr.mxu0 %v412
    %2619 = vmatpush1.msra.mxu0 %v411
    %2620 = vmatprep.subr.mxu0 %v408
    %2621 = vmatpush1.msra.mxu0 %v407
    %2622 = vmatprep.subr.mxu0 %v404
    %2623 = vmatpush1.msra.mxu0 %v403
    %2624 = vmatprep.subr.mxu0 %v400
    %2625 = vmatpush1.msra.mxu0 %v399
    %2626 = vmatprep.subr.mxu0 %v396
    %2627 = vmatpush1.msra.mxu0 %v395
    %2628 = vmatprep.subr.mxu0 %v392
    %2629 = vmatpush1.msra.mxu0 %v391
    %2630 = vmatprep.subr.mxu0 %v388
    %2631 = vmatpush1.msra.mxu0 %v387
    %2632 = vmatprep.subr.mxu0 %v384
    %2633 = vmatpush1.msra.mxu0 %v383
    %2634 = vmatprep.subr.mxu0 %v380
    %2635 = vmatpush1.msra.mxu0 %v379
    %2636 = vmatprep.subr.mxu0 %v376
    %2637 = vmatpush1.msra.mxu0 %v375
    %2638 = vmatprep.subr.mxu0 %v372
    %2639 = vmatpush1.msra.mxu0 %v371
    %2640 = vmatprep.subr.mxu0 %v368
    %2641 = vmatpush1.msra.mxu0 %v367
    %2642 = vmatprep.subr.mxu0 %v364
    %2643 = vmatpush1.msra.mxu0 %v363
    %2644 = vmatprep.subr.mxu0 %v360
    %2645 = vmatpush1.msra.mxu0 %v359
    %2646 = vmatprep.subr.mxu0 %v484
    %2647 = vmatpush2.msra.mxu0 %v483
    %2648 = vmatprep.subr.mxu0 %v480
    %2649 = vmatpush2.msra.mxu0 %v479
    %2650 = vmatprep.subr.mxu0 %v476
    %2651 = vmatpush2.msra.mxu0 %v475
    %2652 = vmatprep.subr.mxu0 %v472
    %2653 = vmatpush2.msra.mxu0 %v471
    %2654 = vmatprep.subr.mxu0 %v468
    %2655 = vmatpush2.msra.mxu0 %v467
    %2656 = vmatprep.subr.mxu0 %v464
    %2657 = vmatpush2.msra.mxu0 %v463
    %2658 = vmatprep.subr.mxu0 %v460
    %2659 = vmatpush2.msra.mxu0 %v459
    %2660 = vmatprep.subr.mxu0 %v456
    %2661 = vmatpush2.msra.mxu0 %v455
    %2662 = vmatprep.subr.mxu0 %v452
    %2663 = vmatpush2.msra.mxu0 %v451
    %2664 = vmatprep.subr.mxu0 %v448
    %2665 = vmatpush2.msra.mxu0 %v447
    %2666 = vmatprep.subr.mxu0 %v444
    %2667 = vmatpush2.msra.mxu0 %v443
    %2668 = vmatprep.subr.mxu0 %v440
    %2669 = vmatpush2.msra.mxu0 %v439
    %2670 = vmatprep.subr.mxu0 %v436
    %2671 = vmatpush2.msra.mxu0 %v435
    %2672 = vmatprep.subr.mxu0 %v432
    %2673 = vmatpush2.msra.mxu0 %v431
    %2674 = vmatprep.subr.mxu0 %v428
    %2675 = vmatpush2.msra.mxu0 %v427
    %2676 = vmatprep.subr.mxu0 %v424
    %2677 = vmatpush2.msra.mxu0 %v423
    %2678 = vmatprep.mubr.f32.mxu0 %v2462
    %2679 = vmatmul.mubr.f32.gmra.mxu0 %v2540
    %v2680 = vpop.f32.mrf.mxu0
    %v2681 = vadd.f32 %v181, %v2680
    %v2682 = vpop.f32.mrf.mxu0
    %v2683 = vadd.f32 %v185, %v2682
    %2684 = vdwg.mxu0
    %v2685 = vxor.u32 %v2610, 2147483648
    %v2686 = vmul.f32 %v2685, 1.442695
    %v2687 = vpow.pop %v2686
    %v2688 = vadd.f32 %v2687, 1.0
    %v2689 = vrcp.pop %v2688
    %v2690 = vmul.f32 1.0, %v2689
    %v2691 = vxor.u32 %v2612, 2147483648
    %v2692 = vmul.f32 %v2691, 1.442695
    %v2693 = vpow.pop %v2692
    %v2694 = vadd.f32 %v2693, 1.0
    %v2695 = vrcp.pop %v2694
    %v2696 = vmul.f32 1.0, %v2695
    %v2697 = vtanh.pop %v2681
    %v2698 = vxor.u32 %v2683, 2147483648
    %v2699 = vmul.f32 %v2698, 1.442695
    %v2700 = vpow.pop %v2699
    %v2701 = vadd.f32 %v2700, 1.0
    %v2702 = vrcp.pop %v2701
    %v2703 = vmul.f32 1.0, %v2702
    %v2704 = vmul.f32 %v2696, %v2460
    %v2705 = vmul.f32 %v2690, %v2697
    %v2706 = vadd.f32 %v2704, %v2705
    %v2707 = vtanh.pop %v2706
    %v2708 = vmul.f32 %v2703, %v2707
    %2709 = vmatprep.subr.mxu0 0.0
    %2710 = vmatpush1.msra.mxu0 %v500
    %2711 = vmatprep.subr.mxu0 0.0
    %2712 = vmatpush1.msra.mxu0 %v499
    %2713 = vmatprep.subr.mxu0 0.0
    %2714 = vmatpush1.msra.mxu0 %v498
    %2715 = vmatprep.subr.mxu0 0.0
    %2716 = vmatpush1.msra.mxu0 %v497
    %2717 = vmatprep.subr.mxu0 0.0
    %2718 = vmatpush1.msra.mxu0 %v496
    %2719 = vmatprep.subr.mxu0 0.0
    %2720 = vmatpush1.msra.mxu0 %v495
    %2721 = vmatprep.subr.mxu0 0.0
    %2722 = vmatpush1.msra.mxu0 %v494
    %2723 = vmatprep.subr.mxu0 0.0
    %2724 = vmatpush1.msra.mxu0 %v493
    %2725 = vmatprep.subr.mxu0 0.0
    %2726 = vmatpush1.msra.mxu0 %v492
    %2727 = vmatprep.subr.mxu0 0.0
    %2728 = vmatpush1.msra.mxu0 %v491
    %2729 = vmatprep.subr.mxu0 0.0
    %2730 = vmatpush1.msra.mxu0 %v490
    %2731 = vmatprep.subr.mxu0 0.0
    %2732 = vmatpush1.msra.mxu0 %v489
    %2733 = vmatprep.subr.mxu0 0.0
    %2734 = vmatpush1.msra.mxu0 %v488
    %2735 = vmatprep.subr.mxu0 0.0
    %2736 = vmatpush1.msra.mxu0 %v487
    %2737 = vmatprep.subr.mxu0 0.0
    %2738 = vmatpush1.msra.mxu0 %v486
    %2739 = vmatprep.subr.mxu0 0.0
    %2740 = vmatpush1.msra.mxu0 %v485
    %2741 = vmatprep.subr.mxu0 0.0
    %2742 = vmatpush2.msra.mxu0 0.0
    %2743 = vmatprep.subr.mxu0 0.0
    %2744 = vmatpush2.msra.mxu0 0.0
    %2745 = vmatprep.subr.mxu0 0.0
    %2746 = vmatpush2.msra.mxu0 0.0
    %2747 = vmatprep.subr.mxu0 0.0
    %2748 = vmatpush2.msra.mxu0 0.0
    %2749 = vmatprep.subr.mxu0 0.0
    %2750 = vmatpush2.msra.mxu0 0.0
    %2751 = vmatprep.subr.mxu0 0.0
    %2752 = vmatpush2.msra.mxu0 0.0
    %2753 = vmatprep.subr.mxu0 0.0
    %2754 = vmatpush2.msra.mxu0 0.0
    %2755 = vmatprep.subr.mxu0 0.0
    %2756 = vmatpush2.msra.mxu0 0.0
    %2757 = vmatprep.subr.mxu0 0.0
    %2758 = vmatpush2.msra.mxu0 0.0
    %2759 = vmatprep.subr.mxu0 0.0
    %2760 = vmatpush2.msra.mxu0 0.0
    %2761 = vmatprep.subr.mxu0 0.0
    %2762 = vmatpush2.msra.mxu0 0.0
    %2763 = vmatprep.subr.mxu0 0.0
    %2764 = vmatpush2.msra.mxu0 0.0
    %2765 = vmatprep.subr.mxu0 0.0
    %2766 = vmatpush2.msra.mxu0 0.0
    %2767 = vmatprep.subr.mxu0 0.0
    %2768 = vmatpush2.msra.mxu0 0.0
    %2769 = vmatprep.subr.mxu0 0.0
    %2770 = vmatpush2.msra.mxu0 0.0
    %2771 = vmatprep.subr.mxu0 0.0
    %2772 = vmatpush2.msra.mxu0 0.0
    %2773 = vmatprep.mubr.f32.mxu0 0.0
    %2774 = vmatmul.mubr.f32.gmra.mxu0 %v2708
    %v2775 = vpop.f32.mrf.mxu0
    %v2776 = vadd.f32 %v195, %v2775
    %v2777 = vpop.f32.mrf.mxu0
    %2778 = vdwg.mxu0
    %s2779 = scalar_lea.vmem %s11, 8
    %2780 = vst [vmem:[%s2779] sm:$0xff] %v2776
    %2781 = vmax.xlane.f32.xlu0 %v2776
    %v2782 = vpop.xlane.xlu0 %2781
    %vm2783 = vcmp.ge.f32.partialorder %v2776, %v2782
    %v2784 = vsel %vm2783, %v145, 128
    %v2785 = vand.u32 %v2784, 65535
    %v2786 = vshra.s32 %v2784, 16
    %v2787 = vcvt.s32.f32 %v2785
    %v2788 = vcvt.s32.f32 %v2786
    %2789 = vmin.xlane.f32.xlu0 %v2788
    %v2790 = vpop.xlane.xlu0 %2789
    %vm2791 = vcmp.eq.f32.partialorder %v2788, %v2790
    %v2792 = vsel %vm2791, %v2787, inf
    %2793 = vmin.xlane.f32.xlu0 %v2792
    %v2794 = vpop.xlane.xlu0 %2793
    %v2795 = vcvt.f32.s32 %v2794
    %v2796 = vcvt.f32.s32 %v2790
    %v2797 = vshll.u32 %v2796, 16
    %v2798 = vadd.s32 %v2797, %v2795
    %vm2799 = vcmp.eq.s32.totalorder %v145, %v2798
    %v2800 = vsel %vm2799, 1, 0
    %v2801 = vcvt.s32.f32 %v2800
    %s2802 = sld [smem:[#allocation5 + $0x80]]
    %v2803 = vstv %s2802
    %v2804 = vsel %vm501, %v2803, 4294967295
    %s2805 = sld [smem:[#allocation5 + $0x81]]
    %v2806 = vstv %s2805
    %v2807 = vsel %vm505, %v2806, %v2804
    %vm2808 = vcmp.eq.s32.totalorder %v2807, %v145
    %v2809 = vsel %vm2808, 1, 0
    %v2810 = vcvt.s32.f32 %v2809
    %s2811 = sld [smem:[#allocation7 + $0x1]]
    %p2812 = scmp.ne.s32.totalorder %s2811, 0
    %s2813 = scalar_select %p2812, 1, 0
    %v2814 = vstv %s2813
    %vm2815 = vcmp.eq.s32.totalorder %v2814, 1
    %v2816 = vsel %vm2815, %v2810, %v2801
    %2817 = vmatprep.subr.mxu0 0.0
    %2818 = vmatpush1.msra.mxu0 %v356
    %2819 = vmatprep.subr.mxu0 0.0
    %2820 = vmatpush1.msra.mxu0 %v355
    %2821 = vmatprep.subr.mxu0 0.0
    %2822 = vmatpush1.msra.mxu0 %v354
    %2823 = vmatprep.subr.mxu0 0.0
    %2824 = vmatpush1.msra.mxu0 %v353
    %2825 = vmatprep.subr.mxu0 0.0
    %2826 = vmatpush1.msra.mxu0 %v352
    %2827 = vmatprep.subr.mxu0 0.0
    %2828 = vmatpush1.msra.mxu0 %v351
    %2829 = vmatprep.subr.mxu0 0.0
    %2830 = vmatpush1.msra.mxu0 %v350
    %2831 = vmatprep.subr.mxu0 0.0
    %2832 = vmatpush1.msra.mxu0 %v349
    %2833 = vmatprep.subr.mxu0 0.0
    %2834 = vmatpush1.msra.mxu0 %v348
    %2835 = vmatprep.subr.mxu0 0.0
    %2836 = vmatpush1.msra.mxu0 %v347
    %2837 = vmatprep.subr.mxu0 0.0
    %2838 = vmatpush1.msra.mxu0 %v346
    %2839 = vmatprep.subr.mxu0 0.0
    %2840 = vmatpush1.msra.mxu0 %v345
    %2841 = vmatprep.subr.mxu0 0.0
    %2842 = vmatpush1.msra.mxu0 %v344
    %2843 = vmatprep.subr.mxu0 0.0
    %2844 = vmatpush1.msra.mxu0 %v343
    %2845 = vmatprep.subr.mxu0 0.0
    %2846 = vmatpush1.msra.mxu0 %v342
    %2847 = vmatprep.subr.mxu0 0.0
    %2848 = vmatpush1.msra.mxu0 %v341
    %2849 = vmatprep.subr.mxu0 0.0
    %2850 = vmatpush2.msra.mxu0 0.0
    %2851 = vmatprep.subr.mxu0 0.0
    %2852 = vmatpush2.msra.mxu0 0.0
    %2853 = vmatprep.subr.mxu0 0.0
    %2854 = vmatpush2.msra.mxu0 0.0
    %2855 = vmatprep.subr.mxu0 0.0
    %2856 = vmatpush2.msra.mxu0 0.0
    %2857 = vmatprep.subr.mxu0 0.0
    %2858 = vmatpush2.msra.mxu0 0.0
    %2859 = vmatprep.subr.mxu0 0.0
    %2860 = vmatpush2.msra.mxu0 0.0
    %2861 = vmatprep.subr.mxu0 0.0
    %2862 = vmatpush2.msra.mxu0 0.0
    %2863 = vmatprep.subr.mxu0 0.0
    %2864 = vmatpush2.msra.mxu0 0.0
    %2865 = vmatprep.subr.mxu0 0.0
    %2866 = vmatpush2.msra.mxu0 0.0
    %2867 = vmatprep.subr.mxu0 0.0
    %2868 = vmatpush2.msra.mxu0 0.0
    %2869 = vmatprep.subr.mxu0 0.0
    %2870 = vmatpush2.msra.mxu0 0.0
    %2871 = vmatprep.subr.mxu0 0.0
    %2872 = vmatpush2.msra.mxu0 0.0
    %2873 = vmatprep.subr.mxu0 0.0
    %2874 = vmatpush2.msra.mxu0 0.0
    %2875 = vmatprep.subr.mxu0 0.0
    %2876 = vmatpush2.msra.mxu0 0.0
    %2877 = vmatprep.subr.mxu0 0.0
    %2878 = vmatpush2.msra.mxu0 0.0
    %2879 = vmatprep.subr.mxu0 0.0
    %2880 = vmatpush2.msra.mxu0 0.0
    %2881 = vmatprep.mubr.f32.mxu0 0.0
    %2882 = vmatmul.mubr.f32.gmra.mxu0 %v2816
    %v2883 = vpop.f32.mrf.mxu0
    %v2884 = vadd.f32 0.0, %v2883
    %v2885 = vpop.f32.mrf.mxu0
    %2886 = vdwg.mxu0
    %2887 = vmatprep.subr.mxu0 %v418
    %2888 = vmatpush1.msra.mxu0 %v417
    %2889 = vmatprep.subr.mxu0 %v414
    %2890 = vmatpush1.msra.mxu0 %v413
    %2891 = vmatprep.subr.mxu0 %v410
    %2892 = vmatpush1.msra.mxu0 %v409
    %2893 = vmatprep.subr.mxu0 %v406
    %2894 = vmatpush1.msra.mxu0 %v405
    %2895 = vmatprep.subr.mxu0 %v402
    %2896 = vmatpush1.msra.mxu0 %v401
    %2897 = vmatprep.subr.mxu0 %v398
    %2898 = vmatpush1.msra.mxu0 %v397
    %2899 = vmatprep.subr.mxu0 %v394
    %2900 = vmatpush1.msra.mxu0 %v393
    %2901 = vmatprep.subr.mxu0 %v390
    %2902 = vmatpush1.msra.mxu0 %v389
    %2903 = vmatprep.subr.mxu0 %v386
    %2904 = vmatpush1.msra.mxu0 %v385
    %2905 = vmatprep.subr.mxu0 %v382
    %2906 = vmatpush1.msra.mxu0 %v381
    %2907 = vmatprep.subr.mxu0 %v378
    %2908 = vmatpush1.msra.mxu0 %v377
    %2909 = vmatprep.subr.mxu0 %v374
    %2910 = vmatpush1.msra.mxu0 %v373
    %2911 = vmatprep.subr.mxu0 %v370
    %2912 = vmatpush1.msra.mxu0 %v369
    %2913 = vmatprep.subr.mxu0 %v366
    %2914 = vmatpush1.msra.mxu0 %v365
    %2915 = vmatprep.subr.mxu0 %v362
    %2916 = vmatpush1.msra.mxu0 %v361
    %2917 = vmatprep.subr.mxu0 %v358
    %2918 = vmatpush1.msra.mxu0 %v357
    %2919 = vmatprep.subr.mxu0 %v482
    %2920 = vmatpush2.msra.mxu0 %v481
    %2921 = vmatprep.subr.mxu0 %v478
    %2922 = vmatpush2.msra.mxu0 %v477
    %2923 = vmatprep.subr.mxu0 %v474
    %2924 = vmatpush2.msra.mxu0 %v473
    %2925 = vmatprep.subr.mxu0 %v470
    %2926 = vmatpush2.msra.mxu0 %v469
    %2927 = vmatprep.subr.mxu0 %v466
    %2928 = vmatpush2.msra.mxu0 %v465
    %2929 = vmatprep.subr.mxu0 %v462
    %2930 = vmatpush2.msra.mxu0 %v461
    %2931 = vmatprep.subr.mxu0 %v458
    %2932 = vmatpush2.msra.mxu0 %v457
    %2933 = vmatprep.subr.mxu0 %v454
    %2934 = vmatpush2.msra.mxu0 %v453
    %2935 = vmatprep.subr.mxu0 %v450
    %2936 = vmatpush2.msra.mxu0 %v449
    %2937 = vmatprep.subr.mxu0 %v446
    %2938 = vmatpush2.msra.mxu0 %v445
    %2939 = vmatprep.subr.mxu0 %v442
    %2940 = vmatpush2.msra.mxu0 %v441
    %2941 = vmatprep.subr.mxu0 %v438
    %2942 = vmatpush2.msra.mxu0 %v437
    %2943 = vmatprep.subr.mxu0 %v434
    %2944 = vmatpush2.msra.mxu0 %v433
    %2945 = vmatprep.subr.mxu0 %v430
    %2946 = vmatpush2.msra.mxu0 %v429
    %2947 = vmatprep.subr.mxu0 %v426
    %2948 = vmatpush2.msra.mxu0 %v425
    %2949 = vmatprep.subr.mxu0 %v422
    %2950 = vmatpush2.msra.mxu0 %v421
    %2951 = vmatprep.mubr.f32.mxu0 %v2708
    %2952 = vmatmul.mubr.f32.gmra.mxu0 %v2884
    %v2953 = vpop.f32.mrf.mxu0
    %v2954 = vadd.f32 %v173, %v2953
    %v2955 = vpop.f32.mrf.mxu0
    %v2956 = vadd.f32 %v177, %v2955
    %2957 = vdwg.mxu0
    %2958 = vmatprep.subr.mxu0 %v420
    %2959 = vmatpush1.msra.mxu0 %v419
    %2960 = vmatprep.subr.mxu0 %v416
    %2961 = vmatpush1.msra.mxu0 %v415
    %2962 = vmatprep.subr.mxu0 %v412
    %2963 = vmatpush1.msra.mxu0 %v411
    %2964 = vmatprep.subr.mxu0 %v408
    %2965 = vmatpush1.msra.mxu0 %v407
    %2966 = vmatprep.subr.mxu0 %v404
    %2967 = vmatpush1.msra.mxu0 %v403
    %2968 = vmatprep.subr.mxu0 %v400
    %2969 = vmatpush1.msra.mxu0 %v399
    %2970 = vmatprep.subr.mxu0 %v396
    %2971 = vmatpush1.msra.mxu0 %v395
    %2972 = vmatprep.subr.mxu0 %v392
    %2973 = vmatpush1.msra.mxu0 %v391
    %2974 = vmatprep.subr.mxu0 %v388
    %2975 = vmatpush1.msra.mxu0 %v387
    %2976 = vmatprep.subr.mxu0 %v384
    %2977 = vmatpush1.msra.mxu0 %v383
    %2978 = vmatprep.subr.mxu0 %v380
    %2979 = vmatpush1.msra.mxu0 %v379
    %2980 = vmatprep.subr.mxu0 %v376
    %2981 = vmatpush1.msra.mxu0 %v375
    %2982 = vmatprep.subr.mxu0 %v372
    %2983 = vmatpush1.msra.mxu0 %v371
    %2984 = vmatprep.subr.mxu0 %v368
    %2985 = vmatpush1.msra.mxu0 %v367
    %2986 = vmatprep.subr.mxu0 %v364
    %2987 = vmatpush1.msra.mxu0 %v363
    %2988 = vmatprep.subr.mxu0 %v360
    %2989 = vmatpush1.msra.mxu0 %v359
    %2990 = vmatprep.subr.mxu0 %v484
    %2991 = vmatpush2.msra.mxu0 %v483
    %2992 = vmatprep.subr.mxu0 %v480
    %2993 = vmatpush2.msra.mxu0 %v479
    %2994 = vmatprep.subr.mxu0 %v476
    %2995 = vmatpush2.msra.mxu0 %v475
    %2996 = vmatprep.subr.mxu0 %v472
    %2997 = vmatpush2.msra.mxu0 %v471
    %2998 = vmatprep.subr.mxu0 %v468
    %2999 = vmatpush2.msra.mxu0 %v467
    %3000 = vmatprep.subr.mxu0 %v464
    %3001 = vmatpush2.msra.mxu0 %v463
    %3002 = vmatprep.subr.mxu0 %v460
    %3003 = vmatpush2.msra.mxu0 %v459
    %3004 = vmatprep.subr.mxu0 %v456
    %3005 = vmatpush2.msra.mxu0 %v455
    %3006 = vmatprep.subr.mxu0 %v452
    %3007 = vmatpush2.msra.mxu0 %v451
    %3008 = vmatprep.subr.mxu0 %v448
    %3009 = vmatpush2.msra.mxu0 %v447
    %3010 = vmatprep.subr.mxu0 %v444
    %3011 = vmatpush2.msra.mxu0 %v443
    %3012 = vmatprep.subr.mxu0 %v440
    %3013 = vmatpush2.msra.mxu0 %v439
    %3014 = vmatprep.subr.mxu0 %v436
    %3015 = vmatpush2.msra.mxu0 %v435
    %3016 = vmatprep.subr.mxu0 %v432
    %3017 = vmatpush2.msra.mxu0 %v431
    %3018 = vmatprep.subr.mxu0 %v428
    %3019 = vmatpush2.msra.mxu0 %v427
    %3020 = vmatprep.subr.mxu0 %v424
    %3021 = vmatpush2.msra.mxu0 %v423
    %3022 = vmatprep.mubr.f32.mxu0 %v2708
    %3023 = vmatmul.mubr.f32.gmra.mxu0 %v2884
    %v3024 = vpop.f32.mrf.mxu0
    %v3025 = vadd.f32 %v181, %v3024
    %v3026 = vpop.f32.mrf.mxu0
    %v3027 = vadd.f32 %v185, %v3026
    %3028 = vdwg.mxu0
    %v3029 = vxor.u32 %v2954, 2147483648
    %v3030 = vmul.f32 %v3029, 1.442695
    %v3031 = vpow.pop %v3030
    %v3032 = vadd.f32 %v3031, 1.0
    %v3033 = vrcp.pop %v3032
    %v3034 = vmul.f32 1.0, %v3033
    %v3035 = vxor.u32 %v2956, 2147483648
    %v3036 = vmul.f32 %v3035, 1.442695
    %v3037 = vpow.pop %v3036
    %v3038 = vadd.f32 %v3037, 1.0
    %v3039 = vrcp.pop %v3038
    %v3040 = vmul.f32 1.0, %v3039
    %v3041 = vtanh.pop %v3025
    %v3042 = vxor.u32 %v3027, 2147483648
    %v3043 = vmul.f32 %v3042, 1.442695
    %v3044 = vpow.pop %v3043
    %v3045 = vadd.f32 %v3044, 1.0
    %v3046 = vrcp.pop %v3045
    %v3047 = vmul.f32 1.0, %v3046
    %v3048 = vmul.f32 %v3040, %v2706
    %v3049 = vmul.f32 %v3034, %v3041
    %v3050 = vadd.f32 %v3048, %v3049
    %v3051 = vtanh.pop %v3050
    %v3052 = vmul.f32 %v3047, %v3051
    %3053 = vmatprep.subr.mxu0 0.0
    %3054 = vmatpush1.msra.mxu0 %v500
    %3055 = vmatprep.subr.mxu0 0.0
    %3056 = vmatpush1.msra.mxu0 %v499
    %3057 = vmatprep.subr.mxu0 0.0
    %3058 = vmatpush1.msra.mxu0 %v498
    %3059 = vmatprep.subr.mxu0 0.0
    %3060 = vmatpush1.msra.mxu0 %v497
    %3061 = vmatprep.subr.mxu0 0.0
    %3062 = vmatpush1.msra.mxu0 %v496
    %3063 = vmatprep.subr.mxu0 0.0
    %3064 = vmatpush1.msra.mxu0 %v495
    %3065 = vmatprep.subr.mxu0 0.0
    %3066 = vmatpush1.msra.mxu0 %v494
    %3067 = vmatprep.subr.mxu0 0.0
    %3068 = vmatpush1.msra.mxu0 %v493
    %3069 = vmatprep.subr.mxu0 0.0
    %3070 = vmatpush1.msra.mxu0 %v492
    %3071 = vmatprep.subr.mxu0 0.0
    %3072 = vmatpush1.msra.mxu0 %v491
    %3073 = vmatprep.subr.mxu0 0.0
    %3074 = vmatpush1.msra.mxu0 %v490
    %3075 = vmatprep.subr.mxu0 0.0
    %3076 = vmatpush1.msra.mxu0 %v489
    %3077 = vmatprep.subr.mxu0 0.0
    %3078 = vmatpush1.msra.mxu0 %v488
    %3079 = vmatprep.subr.mxu0 0.0
    %3080 = vmatpush1.msra.mxu0 %v487
    %3081 = vmatprep.subr.mxu0 0.0
    %3082 = vmatpush1.msra.mxu0 %v486
    %3083 = vmatprep.subr.mxu0 0.0
    %3084 = vmatpush1.msra.mxu0 %v485
    %3085 = vmatprep.subr.mxu0 0.0
    %3086 = vmatpush2.msra.mxu0 0.0
    %3087 = vmatprep.subr.mxu0 0.0
    %3088 = vmatpush2.msra.mxu0 0.0
    %3089 = vmatprep.subr.mxu0 0.0
    %3090 = vmatpush2.msra.mxu0 0.0
    %3091 = vmatprep.subr.mxu0 0.0
    %3092 = vmatpush2.msra.mxu0 0.0
    %3093 = vmatprep.subr.mxu0 0.0
    %3094 = vmatpush2.msra.mxu0 0.0
    %3095 = vmatprep.subr.mxu0 0.0
    %3096 = vmatpush2.msra.mxu0 0.0
    %3097 = vmatprep.subr.mxu0 0.0
    %3098 = vmatpush2.msra.mxu0 0.0
    %3099 = vmatprep.subr.mxu0 0.0
    %3100 = vmatpush2.msra.mxu0 0.0
    %3101 = vmatprep.subr.mxu0 0.0
    %3102 = vmatpush2.msra.mxu0 0.0
    %3103 = vmatprep.subr.mxu0 0.0
    %3104 = vmatpush2.msra.mxu0 0.0
    %3105 = vmatprep.subr.mxu0 0.0
    %3106 = vmatpush2.msra.mxu0 0.0
    %3107 = vmatprep.subr.mxu0 0.0
    %3108 = vmatpush2.msra.mxu0 0.0
    %3109 = vmatprep.subr.mxu0 0.0
    %3110 = vmatpush2.msra.mxu0 0.0
    %3111 = vmatprep.subr.mxu0 0.0
    %3112 = vmatpush2.msra.mxu0 0.0
    %3113 = vmatprep.subr.mxu0 0.0
    %3114 = vmatpush2.msra.mxu0 0.0
    %3115 = vmatprep.subr.mxu0 0.0
    %3116 = vmatpush2.msra.mxu0 0.0
    %3117 = vmatprep.mubr.f32.mxu0 0.0
    %3118 = vmatmul.mubr.f32.gmra.mxu0 %v3052
    %v3119 = vpop.f32.mrf.mxu0
    %v3120 = vadd.f32 %v195, %v3119
    %v3121 = vpop.f32.mrf.mxu0
    %3122 = vdwg.mxu0
    %s3123 = scalar_lea.vmem %s11, 16
    %3124 = vst [vmem:[%s3123] sm:$0xff] %v3120
    %3125 = vmax.xlane.f32.xlu0 %v3120
    %v3126 = vpop.xlane.xlu0 %3125
    %vm3127 = vcmp.ge.f32.partialorder %v3120, %v3126
    %v3128 = vsel %vm3127, %v145, 128
    %v3129 = vand.u32 %v3128, 65535
    %v3130 = vshra.s32 %v3128, 16
    %v3131 = vcvt.s32.f32 %v3129
    %v3132 = vcvt.s32.f32 %v3130
    %3133 = vmin.xlane.f32.xlu0 %v3132
    %v3134 = vpop.xlane.xlu0 %3133
    %vm3135 = vcmp.eq.f32.partialorder %v3132, %v3134
    %v3136 = vsel %vm3135, %v3131, inf
    %3137 = vmin.xlane.f32.xlu0 %v3136
    %v3138 = vpop.xlane.xlu0 %3137
    %v3139 = vcvt.f32.s32 %v3138
    %v3140 = vcvt.f32.s32 %v3134
    %v3141 = vshll.u32 %v3140, 16
    %v3142 = vadd.s32 %v3141, %v3139
    %vm3143 = vcmp.eq.s32.totalorder %v145, %v3142
    %v3144 = vsel %vm3143, 1, 0
    %v3145 = vcvt.s32.f32 %v3144
    %s3146 = sld [smem:[#allocation5 + $0x100]]
    %v3147 = vstv %s3146
    %v3148 = vsel %vm501, %v3147, 4294967295
    %s3149 = sld [smem:[#allocation5 + $0x101]]
    %v3150 = vstv %s3149
    %v3151 = vsel %vm505, %v3150, %v3148
    %vm3152 = vcmp.eq.s32.totalorder %v3151, %v145
    %v3153 = vsel %vm3152, 1, 0
    %v3154 = vcvt.s32.f32 %v3153
    %s3155 = sld [smem:[#allocation7 + $0x2]]
    %p3156 = scmp.ne.s32.totalorder %s3155, 0
    %s3157 = scalar_select %p3156, 1, 0
    %v3158 = vstv %s3157
    %vm3159 = vcmp.eq.s32.totalorder %v3158, 1
    %v3160 = vsel %vm3159, %v3154, %v3145
    %3161 = vmatprep.subr.mxu0 0.0
    %3162 = vmatpush1.msra.mxu0 %v356
    %3163 = vmatprep.subr.mxu0 0.0
    %3164 = vmatpush1.msra.mxu0 %v355
    %3165 = vmatprep.subr.mxu0 0.0
    %3166 = vmatpush1.msra.mxu0 %v354
    %3167 = vmatprep.subr.mxu0 0.0
    %3168 = vmatpush1.msra.mxu0 %v353
    %3169 = vmatprep.subr.mxu0 0.0
    %3170 = vmatpush1.msra.mxu0 %v352
    %3171 = vmatprep.subr.mxu0 0.0
    %3172 = vmatpush1.msra.mxu0 %v351
    %3173 = vmatprep.subr.mxu0 0.0
    %3174 = vmatpush1.msra.mxu0 %v350
    %3175 = vmatprep.subr.mxu0 0.0
    %3176 = vmatpush1.msra.mxu0 %v349
    %3177 = vmatprep.subr.mxu0 0.0
    %3178 = vmatpush1.msra.mxu0 %v348
    %3179 = vmatprep.subr.mxu0 0.0
    %3180 = vmatpush1.msra.mxu0 %v347
    %3181 = vmatprep.subr.mxu0 0.0
    %3182 = vmatpush1.msra.mxu0 %v346
    %3183 = vmatprep.subr.mxu0 0.0
    %3184 = vmatpush1.msra.mxu0 %v345
    %3185 = vmatprep.subr.mxu0 0.0
    %3186 = vmatpush1.msra.mxu0 %v344
    %3187 = vmatprep.subr.mxu0 0.0
    %3188 = vmatpush1.msra.mxu0 %v343
    %3189 = vmatprep.subr.mxu0 0.0
    %3190 = vmatpush1.msra.mxu0 %v342
    %3191 = vmatprep.subr.mxu0 0.0
    %3192 = vmatpush1.msra.mxu0 %v341
    %3193 = vmatprep.subr.mxu0 0.0
    %3194 = vmatpush2.msra.mxu0 0.0
    %3195 = vmatprep.subr.mxu0 0.0
    %3196 = vmatpush2.msra.mxu0 0.0
    %3197 = vmatprep.subr.mxu0 0.0
    %3198 = vmatpush2.msra.mxu0 0.0
    %3199 = vmatprep.subr.mxu0 0.0
    %3200 = vmatpush2.msra.mxu0 0.0
    %3201 = vmatprep.subr.mxu0 0.0
    %3202 = vmatpush2.msra.mxu0 0.0
    %3203 = vmatprep.subr.mxu0 0.0
    %3204 = vmatpush2.msra.mxu0 0.0
    %3205 = vmatprep.subr.mxu0 0.0
    %3206 = vmatpush2.msra.mxu0 0.0
    %3207 = vmatprep.subr.mxu0 0.0
    %3208 = vmatpush2.msra.mxu0 0.0
    %3209 = vmatprep.subr.mxu0 0.0
    %3210 = vmatpush2.msra.mxu0 0.0
    %3211 = vmatprep.subr.mxu0 0.0
    %3212 = vmatpush2.msra.mxu0 0.0
    %3213 = vmatprep.subr.mxu0 0.0
    %3214 = vmatpush2.msra.mxu0 0.0
    %3215 = vmatprep.subr.mxu0 0.0
    %3216 = vmatpush2.msra.mxu0 0.0
    %3217 = vmatprep.subr.mxu0 0.0
    %3218 = vmatpush2.msra.mxu0 0.0
    %3219 = vmatprep.subr.mxu0 0.0
    %3220 = vmatpush2.msra.mxu0 0.0
    %3221 = vmatprep.subr.mxu0 0.0
    %3222 = vmatpush2.msra.mxu0 0.0
    %3223 = vmatprep.subr.mxu0 0.0
    %3224 = vmatpush2.msra.mxu0 0.0
    %3225 = vmatprep.mubr.f32.mxu0 0.0
    %3226 = vmatmul.mubr.f32.gmra.mxu0 %v3160
    %v3227 = vpop.f32.mrf.mxu0
    %v3228 = vadd.f32 0.0, %v3227
    %v3229 = vpop.f32.mrf.mxu0
    %3230 = vdwg.mxu0
    %3231 = vmatprep.subr.mxu0 %v418
    %3232 = vmatpush1.msra.mxu0 %v417
    %3233 = vmatprep.subr.mxu0 %v414
    %3234 = vmatpush1.msra.mxu0 %v413
    %3235 = vmatprep.subr.mxu0 %v410
    %3236 = vmatpush1.msra.mxu0 %v409
    %3237 = vmatprep.subr.mxu0 %v406
    %3238 = vmatpush1.msra.mxu0 %v405
    %3239 = vmatprep.subr.mxu0 %v402
    %3240 = vmatpush1.msra.mxu0 %v401
    %3241 = vmatprep.subr.mxu0 %v398
    %3242 = vmatpush1.msra.mxu0 %v397
    %3243 = vmatprep.subr.mxu0 %v394
    %3244 = vmatpush1.msra.mxu0 %v393
    %3245 = vmatprep.subr.mxu0 %v390
    %3246 = vmatpush1.msra.mxu0 %v389
    %3247 = vmatprep.subr.mxu0 %v386
    %3248 = vmatpush1.msra.mxu0 %v385
    %3249 = vmatprep.subr.mxu0 %v382
    %3250 = vmatpush1.msra.mxu0 %v381
    %3251 = vmatprep.subr.mxu0 %v378
    %3252 = vmatpush1.msra.mxu0 %v377
    %3253 = vmatprep.subr.mxu0 %v374
    %3254 = vmatpush1.msra.mxu0 %v373
    %3255 = vmatprep.subr.mxu0 %v370
    %3256 = vmatpush1.msra.mxu0 %v369
    %3257 = vmatprep.subr.mxu0 %v366
    %3258 = vmatpush1.msra.mxu0 %v365
    %3259 = vmatprep.subr.mxu0 %v362
    %3260 = vmatpush1.msra.mxu0 %v361
    %3261 = vmatprep.subr.mxu0 %v358
    %3262 = vmatpush1.msra.mxu0 %v357
    %3263 = vmatprep.subr.mxu0 %v482
    %3264 = vmatpush2.msra.mxu0 %v481
    %3265 = vmatprep.subr.mxu0 %v478
    %3266 = vmatpush2.msra.mxu0 %v477
    %3267 = vmatprep.subr.mxu0 %v474
    %3268 = vmatpush2.msra.mxu0 %v473
    %3269 = vmatprep.subr.mxu0 %v470
    %3270 = vmatpush2.msra.mxu0 %v469
    %3271 = vmatprep.subr.mxu0 %v466
    %3272 = vmatpush2.msra.mxu0 %v465
    %3273 = vmatprep.subr.mxu0 %v462
    %3274 = vmatpush2.msra.mxu0 %v461
    %3275 = vmatprep.subr.mxu0 %v458
    %3276 = vmatpush2.msra.mxu0 %v457
    %3277 = vmatprep.subr.mxu0 %v454
    %3278 = vmatpush2.msra.mxu0 %v453
    %3279 = vmatprep.subr.mxu0 %v450
    %3280 = vmatpush2.msra.mxu0 %v449
    %3281 = vmatprep.subr.mxu0 %v446
    %3282 = vmatpush2.msra.mxu0 %v445
    %3283 = vmatprep.subr.mxu0 %v442
    %3284 = vmatpush2.msra.mxu0 %v441
    %3285 = vmatprep.subr.mxu0 %v438
    %3286 = vmatpush2.msra.mxu0 %v437
    %3287 = vmatprep.subr.mxu0 %v434
    %3288 = vmatpush2.msra.mxu0 %v433
    %3289 = vmatprep.subr.mxu0 %v430
    %3290 = vmatpush2.msra.mxu0 %v429
    %3291 = vmatprep.subr.mxu0 %v426
    %3292 = vmatpush2.msra.mxu0 %v425
    %3293 = vmatprep.subr.mxu0 %v422
    %3294 = vmatpush2.msra.mxu0 %v421
    %3295 = vmatprep.mubr.f32.mxu0 %v3052
    %3296 = vmatmul.mubr.f32.gmra.mxu0 %v3228
    %v3297 = vpop.f32.mrf.mxu0
    %v3298 = vadd.f32 %v173, %v3297
    %v3299 = vpop.f32.mrf.mxu0
    %v3300 = vadd.f32 %v177, %v3299
    %3301 = vdwg.mxu0
    %3302 = vmatprep.subr.mxu0 %v420
    %3303 = vmatpush1.msra.mxu0 %v419
    %3304 = vmatprep.subr.mxu0 %v416
    %3305 = vmatpush1.msra.mxu0 %v415
    %3306 = vmatprep.subr.mxu0 %v412
    %3307 = vmatpush1.msra.mxu0 %v411
    %3308 = vmatprep.subr.mxu0 %v408
    %3309 = vmatpush1.msra.mxu0 %v407
    %3310 = vmatprep.subr.mxu0 %v404
    %3311 = vmatpush1.msra.mxu0 %v403
    %3312 = vmatprep.subr.mxu0 %v400
    %3313 = vmatpush1.msra.mxu0 %v399
    %3314 = vmatprep.subr.mxu0 %v396
    %3315 = vmatpush1.msra.mxu0 %v395
    %3316 = vmatprep.subr.mxu0 %v392
    %3317 = vmatpush1.msra.mxu0 %v391
    %3318 = vmatprep.subr.mxu0 %v388
    %3319 = vmatpush1.msra.mxu0 %v387
    %3320 = vmatprep.subr.mxu0 %v384
    %3321 = vmatpush1.msra.mxu0 %v383
    %3322 = vmatprep.subr.mxu0 %v380
    %3323 = vmatpush1.msra.mxu0 %v379
    %3324 = vmatprep.subr.mxu0 %v376
    %3325 = vmatpush1.msra.mxu0 %v375
    %3326 = vmatprep.subr.mxu0 %v372
    %3327 = vmatpush1.msra.mxu0 %v371
    %3328 = vmatprep.subr.mxu0 %v368
    %3329 = vmatpush1.msra.mxu0 %v367
    %3330 = vmatprep.subr.mxu0 %v364
    %3331 = vmatpush1.msra.mxu0 %v363
    %3332 = vmatprep.subr.mxu0 %v360
    %3333 = vmatpush1.msra.mxu0 %v359
    %3334 = vmatprep.subr.mxu0 %v484
    %3335 = vmatpush2.msra.mxu0 %v483
    %3336 = vmatprep.subr.mxu0 %v480
    %3337 = vmatpush2.msra.mxu0 %v479
    %3338 = vmatprep.subr.mxu0 %v476
    %3339 = vmatpush2.msra.mxu0 %v475
    %3340 = vmatprep.subr.mxu0 %v472
    %3341 = vmatpush2.msra.mxu0 %v471
    %3342 = vmatprep.subr.mxu0 %v468
    %3343 = vmatpush2.msra.mxu0 %v467
    %3344 = vmatprep.subr.mxu0 %v464
    %3345 = vmatpush2.msra.mxu0 %v463
    %3346 = vmatprep.subr.mxu0 %v460
    %3347 = vmatpush2.msra.mxu0 %v459
    %3348 = vmatprep.subr.mxu0 %v456
    %3349 = vmatpush2.msra.mxu0 %v455
    %3350 = vmatprep.subr.mxu0 %v452
    %3351 = vmatpush2.msra.mxu0 %v451
    %3352 = vmatprep.subr.mxu0 %v448
    %3353 = vmatpush2.msra.mxu0 %v447
    %3354 = vmatprep.subr.mxu0 %v444
    %3355 = vmatpush2.msra.mxu0 %v443
    %3356 = vmatprep.subr.mxu0 %v440
    %3357 = vmatpush2.msra.mxu0 %v439
    %3358 = vmatprep.subr.mxu0 %v436
    %3359 = vmatpush2.msra.mxu0 %v435
    %3360 = vmatprep.subr.mxu0 %v432
    %3361 = vmatpush2.msra.mxu0 %v431
    %3362 = vmatprep.subr.mxu0 %v428
    %3363 = vmatpush2.msra.mxu0 %v427
    %3364 = vmatprep.subr.mxu0 %v424
    %3365 = vmatpush2.msra.mxu0 %v423
    %3366 = vmatprep.mubr.f32.mxu0 %v3052
    %3367 = vmatmul.mubr.f32.gmra.mxu0 %v3228
    %v3368 = vpop.f32.mrf.mxu0
    %v3369 = vadd.f32 %v181, %v3368
    %v3370 = vpop.f32.mrf.mxu0
    %v3371 = vadd.f32 %v185, %v3370
    %3372 = vdwg.mxu0
    %v3373 = vxor.u32 %v3298, 2147483648
    %v3374 = vmul.f32 %v3373, 1.442695
    %v3375 = vpow.pop %v3374
    %v3376 = vadd.f32 %v3375, 1.0
    %v3377 = vrcp.pop %v3376
    %v3378 = vmul.f32 1.0, %v3377
    %v3379 = vxor.u32 %v3300, 2147483648
    %v3380 = vmul.f32 %v3379, 1.442695
    %v3381 = vpow.pop %v3380
    %v3382 = vadd.f32 %v3381, 1.0
    %v3383 = vrcp.pop %v3382
    %v3384 = vmul.f32 1.0, %v3383
    %v3385 = vtanh.pop %v3369
    %v3386 = vxor.u32 %v3371, 2147483648
    %v3387 = vmul.f32 %v3386, 1.442695
    %v3388 = vpow.pop %v3387
    %v3389 = vadd.f32 %v3388, 1.0
    %v3390 = vrcp.pop %v3389
    %v3391 = vmul.f32 1.0, %v3390
    %v3392 = vmul.f32 %v3384, %v3050
    %v3393 = vmul.f32 %v3378, %v3385
    %v3394 = vadd.f32 %v3392, %v3393
    %v3395 = vtanh.pop %v3394
    %v3396 = vmul.f32 %v3391, %v3395
    %3397 = vmatprep.subr.mxu0 0.0
    %3398 = vmatpush1.msra.mxu0 %v500
    %3399 = vmatprep.subr.mxu0 0.0
    %3400 = vmatpush1.msra.mxu0 %v499
    %3401 = vmatprep.subr.mxu0 0.0
    %3402 = vmatpush1.msra.mxu0 %v498
    %3403 = vmatprep.subr.mxu0 0.0
    %3404 = vmatpush1.msra.mxu0 %v497
    %3405 = vmatprep.subr.mxu0 0.0
    %3406 = vmatpush1.msra.mxu0 %v496
    %3407 = vmatprep.subr.mxu0 0.0
    %3408 = vmatpush1.msra.mxu0 %v495
    %3409 = vmatprep.subr.mxu0 0.0
    %3410 = vmatpush1.msra.mxu0 %v494
    %3411 = vmatprep.subr.mxu0 0.0
    %3412 = vmatpush1.msra.mxu0 %v493
    %3413 = vmatprep.subr.mxu0 0.0
    %3414 = vmatpush1.msra.mxu0 %v492
    %3415 = vmatprep.subr.mxu0 0.0
    %3416 = vmatpush1.msra.mxu0 %v491
    %3417 = vmatprep.subr.mxu0 0.0
    %3418 = vmatpush1.msra.mxu0 %v490
    %3419 = vmatprep.subr.mxu0 0.0
    %3420 = vmatpush1.msra.mxu0 %v489
    %3421 = vmatprep.subr.mxu0 0.0
    %3422 = vmatpush1.msra.mxu0 %v488
    %3423 = vmatprep.subr.mxu0 0.0
    %3424 = vmatpush1.msra.mxu0 %v487
    %3425 = vmatprep.subr.mxu0 0.0
    %3426 = vmatpush1.msra.mxu0 %v486
    %3427 = vmatprep.subr.mxu0 0.0
    %3428 = vmatpush1.msra.mxu0 %v485
    %3429 = vmatprep.subr.mxu0 0.0
    %3430 = vmatpush2.msra.mxu0 0.0
    %3431 = vmatprep.subr.mxu0 0.0
    %3432 = vmatpush2.msra.mxu0 0.0
    %3433 = vmatprep.subr.mxu0 0.0
    %3434 = vmatpush2.msra.mxu0 0.0
    %3435 = vmatprep.subr.mxu0 0.0
    %3436 = vmatpush2.msra.mxu0 0.0
    %3437 = vmatprep.subr.mxu0 0.0
    %3438 = vmatpush2.msra.mxu0 0.0
    %3439 = vmatprep.subr.mxu0 0.0
    %3440 = vmatpush2.msra.mxu0 0.0
    %3441 = vmatprep.subr.mxu0 0.0
    %3442 = vmatpush2.msra.mxu0 0.0
    %3443 = vmatprep.subr.mxu0 0.0
    %3444 = vmatpush2.msra.mxu0 0.0
    %3445 = vmatprep.subr.mxu0 0.0
    %3446 = vmatpush2.msra.mxu0 0.0
    %3447 = vmatprep.subr.mxu0 0.0
    %3448 = vmatpush2.msra.mxu0 0.0
    %3449 = vmatprep.subr.mxu0 0.0
    %3450 = vmatpush2.msra.mxu0 0.0
    %3451 = vmatprep.subr.mxu0 0.0
    %3452 = vmatpush2.msra.mxu0 0.0
    %3453 = vmatprep.subr.mxu0 0.0
    %3454 = vmatpush2.msra.mxu0 0.0
    %3455 = vmatprep.subr.mxu0 0.0
    %3456 = vmatpush2.msra.mxu0 0.0
    %3457 = vmatprep.subr.mxu0 0.0
    %3458 = vmatpush2.msra.mxu0 0.0
    %3459 = vmatprep.subr.mxu0 0.0
    %3460 = vmatpush2.msra.mxu0 0.0
    %3461 = vmatprep.mubr.f32.mxu0 0.0
    %3462 = vmatmul.mubr.f32.gmra.mxu0 %v3396
    %v3463 = vpop.f32.mrf.mxu0
    %v3464 = vadd.f32 %v195, %v3463
    %v3465 = vpop.f32.mrf.mxu0
    %3466 = vdwg.mxu0
    %s3467 = scalar_lea.vmem %s11, 24
    %3468 = vst [vmem:[%s3467] sm:$0xff] %v3464
    %3469 = vmax.xlane.f32.xlu0 %v3464
    %v3470 = vpop.xlane.xlu0 %3469
    %vm3471 = vcmp.ge.f32.partialorder %v3464, %v3470
    %v3472 = vsel %vm3471, %v145, 128
    %v3473 = vand.u32 %v3472, 65535
    %v3474 = vshra.s32 %v3472, 16
    %v3475 = vcvt.s32.f32 %v3473
    %v3476 = vcvt.s32.f32 %v3474
    %3477 = vmin.xlane.f32.xlu0 %v3476
    %v3478 = vpop.xlane.xlu0 %3477
    %vm3479 = vcmp.eq.f32.partialorder %v3476, %v3478
    %v3480 = vsel %vm3479, %v3475, inf
    %3481 = vmin.xlane.f32.xlu0 %v3480
    %v3482 = vpop.xlane.xlu0 %3481
    %v3483 = vcvt.f32.s32 %v3482
    %v3484 = vcvt.f32.s32 %v3478
    %v3485 = vshll.u32 %v3484, 16
    %v3486 = vadd.s32 %v3485, %v3483
    %vm3487 = vcmp.eq.s32.totalorder %v145, %v3486
    %v3488 = vsel %vm3487, 1, 0
    %v3489 = vcvt.s32.f32 %v3488
    %s3490 = sld [smem:[#allocation5 + $0x180]]
    %v3491 = vstv %s3490
    %v3492 = vsel %vm501, %v3491, 4294967295
    %s3493 = sld [smem:[#allocation5 + $0x181]]
    %v3494 = vstv %s3493
    %v3495 = vsel %vm505, %v3494, %v3492
    %vm3496 = vcmp.eq.s32.totalorder %v3495, %v145
    %v3497 = vsel %vm3496, 1, 0
    %v3498 = vcvt.s32.f32 %v3497
    %s3499 = sld [smem:[#allocation7 + $0x3]]
    %p3500 = scmp.ne.s32.totalorder %s3499, 0
    %s3501 = scalar_select %p3500, 1, 0
    %v3502 = vstv %s3501
    %vm3503 = vcmp.eq.s32.totalorder %v3502, 1
    %v3504 = vsel %vm3503, %v3498, %v3489
    %3505 = vmatprep.subr.mxu0 0.0
    %3506 = vmatpush1.msra.mxu0 %v356
    %3507 = vmatprep.subr.mxu0 0.0
    %3508 = vmatpush1.msra.mxu0 %v355
    %3509 = vmatprep.subr.mxu0 0.0
    %3510 = vmatpush1.msra.mxu0 %v354
    %3511 = vmatprep.subr.mxu0 0.0
    %3512 = vmatpush1.msra.mxu0 %v353
    %3513 = vmatprep.subr.mxu0 0.0
    %3514 = vmatpush1.msra.mxu0 %v352
    %3515 = vmatprep.subr.mxu0 0.0
    %3516 = vmatpush1.msra.mxu0 %v351
    %3517 = vmatprep.subr.mxu0 0.0
    %3518 = vmatpush1.msra.mxu0 %v350
    %3519 = vmatprep.subr.mxu0 0.0
    %3520 = vmatpush1.msra.mxu0 %v349
    %3521 = vmatprep.subr.mxu0 0.0
    %3522 = vmatpush1.msra.mxu0 %v348
    %3523 = vmatprep.subr.mxu0 0.0
    %3524 = vmatpush1.msra.mxu0 %v347
    %3525 = vmatprep.subr.mxu0 0.0
    %3526 = vmatpush1.msra.mxu0 %v346
    %3527 = vmatprep.subr.mxu0 0.0
    %3528 = vmatpush1.msra.mxu0 %v345
    %3529 = vmatprep.subr.mxu0 0.0
    %3530 = vmatpush1.msra.mxu0 %v344
    %3531 = vmatprep.subr.mxu0 0.0
    %3532 = vmatpush1.msra.mxu0 %v343
    %3533 = vmatprep.subr.mxu0 0.0
    %3534 = vmatpush1.msra.mxu0 %v342
    %3535 = vmatprep.subr.mxu0 0.0
    %3536 = vmatpush1.msra.mxu0 %v341
    %3537 = vmatprep.subr.mxu0 0.0
    %3538 = vmatpush2.msra.mxu0 0.0
    %3539 = vmatprep.subr.mxu0 0.0
    %3540 = vmatpush2.msra.mxu0 0.0
    %3541 = vmatprep.subr.mxu0 0.0
    %3542 = vmatpush2.msra.mxu0 0.0
    %3543 = vmatprep.subr.mxu0 0.0
    %3544 = vmatpush2.msra.mxu0 0.0
    %3545 = vmatprep.subr.mxu0 0.0
    %3546 = vmatpush2.msra.mxu0 0.0
    %3547 = vmatprep.subr.mxu0 0.0
    %3548 = vmatpush2.msra.mxu0 0.0
    %3549 = vmatprep.subr.mxu0 0.0
    %3550 = vmatpush2.msra.mxu0 0.0
    %3551 = vmatprep.subr.mxu0 0.0
    %3552 = vmatpush2.msra.mxu0 0.0
    %3553 = vmatprep.subr.mxu0 0.0
    %3554 = vmatpush2.msra.mxu0 0.0
    %3555 = vmatprep.subr.mxu0 0.0
    %3556 = vmatpush2.msra.mxu0 0.0
    %3557 = vmatprep.subr.mxu0 0.0
    %3558 = vmatpush2.msra.mxu0 0.0
    %3559 = vmatprep.subr.mxu0 0.0
    %3560 = vmatpush2.msra.mxu0 0.0
    %3561 = vmatprep.subr.mxu0 0.0
    %3562 = vmatpush2.msra.mxu0 0.0
    %3563 = vmatprep.subr.mxu0 0.0
    %3564 = vmatpush2.msra.mxu0 0.0
    %3565 = vmatprep.subr.mxu0 0.0
    %3566 = vmatpush2.msra.mxu0 0.0
    %3567 = vmatprep.subr.mxu0 0.0
    %3568 = vmatpush2.msra.mxu0 0.0
    %3569 = vmatprep.mubr.f32.mxu0 0.0
    %3570 = vmatmul.mubr.f32.gmra.mxu0 %v3504
    %v3571 = vpop.f32.mrf.mxu0
    %v3572 = vadd.f32 0.0, %v3571
    %v3573 = vpop.f32.mrf.mxu0
    %3574 = vdwg.mxu0
    %3575 = vmatprep.subr.mxu0 %v418
    %3576 = vmatpush1.msra.mxu0 %v417
    %3577 = vmatprep.subr.mxu0 %v414
    %3578 = vmatpush1.msra.mxu0 %v413
    %3579 = vmatprep.subr.mxu0 %v410
    %3580 = vmatpush1.msra.mxu0 %v409
    %3581 = vmatprep.subr.mxu0 %v406
    %3582 = vmatpush1.msra.mxu0 %v405
    %3583 = vmatprep.subr.mxu0 %v402
    %3584 = vmatpush1.msra.mxu0 %v401
    %3585 = vmatprep.subr.mxu0 %v398
    %3586 = vmatpush1.msra.mxu0 %v397
    %3587 = vmatprep.subr.mxu0 %v394
    %3588 = vmatpush1.msra.mxu0 %v393
    %3589 = vmatprep.subr.mxu0 %v390
    %3590 = vmatpush1.msra.mxu0 %v389
    %3591 = vmatprep.subr.mxu0 %v386
    %3592 = vmatpush1.msra.mxu0 %v385
    %3593 = vmatprep.subr.mxu0 %v382
    %3594 = vmatpush1.msra.mxu0 %v381
    %3595 = vmatprep.subr.mxu0 %v378
    %3596 = vmatpush1.msra.mxu0 %v377
    %3597 = vmatprep.subr.mxu0 %v374
    %3598 = vmatpush1.msra.mxu0 %v373
    %3599 = vmatprep.subr.mxu0 %v370
    %3600 = vmatpush1.msra.mxu0 %v369
    %3601 = vmatprep.subr.mxu0 %v366
    %3602 = vmatpush1.msra.mxu0 %v365
    %3603 = vmatprep.subr.mxu0 %v362
    %3604 = vmatpush1.msra.mxu0 %v361
    %3605 = vmatprep.subr.mxu0 %v358
    %3606 = vmatpush1.msra.mxu0 %v357
    %3607 = vmatprep.subr.mxu0 %v482
    %3608 = vmatpush2.msra.mxu0 %v481
    %3609 = vmatprep.subr.mxu0 %v478
    %3610 = vmatpush2.msra.mxu0 %v477
    %3611 = vmatprep.subr.mxu0 %v474
    %3612 = vmatpush2.msra.mxu0 %v473
    %3613 = vmatprep.subr.mxu0 %v470
    %3614 = vmatpush2.msra.mxu0 %v469
    %3615 = vmatprep.subr.mxu0 %v466
    %3616 = vmatpush2.msra.mxu0 %v465
    %3617 = vmatprep.subr.mxu0 %v462
    %3618 = vmatpush2.msra.mxu0 %v461
    %3619 = vmatprep.subr.mxu0 %v458
    %3620 = vmatpush2.msra.mxu0 %v457
    %3621 = vmatprep.subr.mxu0 %v454
    %3622 = vmatpush2.msra.mxu0 %v453
    %3623 = vmatprep.subr.mxu0 %v450
    %3624 = vmatpush2.msra.mxu0 %v449
    %3625 = vmatprep.subr.mxu0 %v446
    %3626 = vmatpush2.msra.mxu0 %v445
    %3627 = vmatprep.subr.mxu0 %v442
    %3628 = vmatpush2.msra.mxu0 %v441
    %3629 = vmatprep.subr.mxu0 %v438
    %3630 = vmatpush2.msra.mxu0 %v437
    %3631 = vmatprep.subr.mxu0 %v434
    %3632 = vmatpush2.msra.mxu0 %v433
    %3633 = vmatprep.subr.mxu0 %v430
    %3634 = vmatpush2.msra.mxu0 %v429
    %3635 = vmatprep.subr.mxu0 %v426
    %3636 = vmatpush2.msra.mxu0 %v425
    %3637 = vmatprep.subr.mxu0 %v422
    %3638 = vmatpush2.msra.mxu0 %v421
    %3639 = vmatprep.mubr.f32.mxu0 %v3396
    %3640 = vmatmul.mubr.f32.gmra.mxu0 %v3572
    %v3641 = vpop.f32.mrf.mxu0
    %v3642 = vadd.f32 %v173, %v3641
    %v3643 = vpop.f32.mrf.mxu0
    %v3644 = vadd.f32 %v177, %v3643
    %3645 = vdwg.mxu0
    %3646 = vmatprep.subr.mxu0 %v420
    %3647 = vmatpush1.msra.mxu0 %v419
    %3648 = vmatprep.subr.mxu0 %v416
    %3649 = vmatpush1.msra.mxu0 %v415
    %3650 = vmatprep.subr.mxu0 %v412
    %3651 = vmatpush1.msra.mxu0 %v411
    %3652 = vmatprep.subr.mxu0 %v408
    %3653 = vmatpush1.msra.mxu0 %v407
    %3654 = vmatprep.subr.mxu0 %v404
    %3655 = vmatpush1.msra.mxu0 %v403
    %3656 = vmatprep.subr.mxu0 %v400
    %3657 = vmatpush1.msra.mxu0 %v399
    %3658 = vmatprep.subr.mxu0 %v396
    %3659 = vmatpush1.msra.mxu0 %v395
    %3660 = vmatprep.subr.mxu0 %v392
    %3661 = vmatpush1.msra.mxu0 %v391
    %3662 = vmatprep.subr.mxu0 %v388
    %3663 = vmatpush1.msra.mxu0 %v387
    %3664 = vmatprep.subr.mxu0 %v384
    %3665 = vmatpush1.msra.mxu0 %v383
    %3666 = vmatprep.subr.mxu0 %v380
    %3667 = vmatpush1.msra.mxu0 %v379
    %3668 = vmatprep.subr.mxu0 %v376
    %3669 = vmatpush1.msra.mxu0 %v375
    %3670 = vmatprep.subr.mxu0 %v372
    %3671 = vmatpush1.msra.mxu0 %v371
    %3672 = vmatprep.subr.mxu0 %v368
    %3673 = vmatpush1.msra.mxu0 %v367
    %3674 = vmatprep.subr.mxu0 %v364
    %3675 = vmatpush1.msra.mxu0 %v363
    %3676 = vmatprep.subr.mxu0 %v360
    %3677 = vmatpush1.msra.mxu0 %v359
    %3678 = vmatprep.subr.mxu0 %v484
    %3679 = vmatpush2.msra.mxu0 %v483
    %3680 = vmatprep.subr.mxu0 %v480
    %3681 = vmatpush2.msra.mxu0 %v479
    %3682 = vmatprep.subr.mxu0 %v476
    %3683 = vmatpush2.msra.mxu0 %v475
    %3684 = vmatprep.subr.mxu0 %v472
    %3685 = vmatpush2.msra.mxu0 %v471
    %3686 = vmatprep.subr.mxu0 %v468
    %3687 = vmatpush2.msra.mxu0 %v467
    %3688 = vmatprep.subr.mxu0 %v464
    %3689 = vmatpush2.msra.mxu0 %v463
    %3690 = vmatprep.subr.mxu0 %v460
    %3691 = vmatpush2.msra.mxu0 %v459
    %3692 = vmatprep.subr.mxu0 %v456
    %3693 = vmatpush2.msra.mxu0 %v455
    %3694 = vmatprep.subr.mxu0 %v452
    %3695 = vmatpush2.msra.mxu0 %v451
    %3696 = vmatprep.subr.mxu0 %v448
    %3697 = vmatpush2.msra.mxu0 %v447
    %3698 = vmatprep.subr.mxu0 %v444
    %3699 = vmatpush2.msra.mxu0 %v443
    %3700 = vmatprep.subr.mxu0 %v440
    %3701 = vmatpush2.msra.mxu0 %v439
    %3702 = vmatprep.subr.mxu0 %v436
    %3703 = vmatpush2.msra.mxu0 %v435
    %3704 = vmatprep.subr.mxu0 %v432
    %3705 = vmatpush2.msra.mxu0 %v431
    %3706 = vmatprep.subr.mxu0 %v428
    %3707 = vmatpush2.msra.mxu0 %v427
    %3708 = vmatprep.subr.mxu0 %v424
    %3709 = vmatpush2.msra.mxu0 %v423
    %3710 = vmatprep.mubr.f32.mxu0 %v3396
    %3711 = vmatmul.mubr.f32.gmra.mxu0 %v3572
    %v3712 = vpop.f32.mrf.mxu0
    %v3713 = vadd.f32 %v181, %v3712
    %v3714 = vpop.f32.mrf.mxu0
    %v3715 = vadd.f32 %v185, %v3714
    %3716 = vdwg.mxu0
    %v3717 = vxor.u32 %v3642, 2147483648
    %v3718 = vmul.f32 %v3717, 1.442695
    %v3719 = vpow.pop %v3718
    %v3720 = vadd.f32 %v3719, 1.0
    %v3721 = vrcp.pop %v3720
    %v3722 = vmul.f32 1.0, %v3721
    %v3723 = vxor.u32 %v3644, 2147483648
    %v3724 = vmul.f32 %v3723, 1.442695
    %v3725 = vpow.pop %v3724
    %v3726 = vadd.f32 %v3725, 1.0
    %v3727 = vrcp.pop %v3726
    %v3728 = vmul.f32 1.0, %v3727
    %v3729 = vtanh.pop %v3713
    %v3730 = vxor.u32 %v3715, 2147483648
    %v3731 = vmul.f32 %v3730, 1.442695
    %v3732 = vpow.pop %v3731
    %v3733 = vadd.f32 %v3732, 1.0
    %v3734 = vrcp.pop %v3733
    %v3735 = vmul.f32 1.0, %v3734
    %v3736 = vmul.f32 %v3728, %v3394
    %v3737 = vmul.f32 %v3722, %v3729
    %v3738 = vadd.f32 %v3736, %v3737
    %v3739 = vtanh.pop %v3738
    %v3740 = vmul.f32 %v3735, %v3739
    %3741 = vmatprep.subr.mxu0 0.0
    %3742 = vmatpush1.msra.mxu0 %v500
    %3743 = vmatprep.subr.mxu0 0.0
    %3744 = vmatpush1.msra.mxu0 %v499
    %3745 = vmatprep.subr.mxu0 0.0
    %3746 = vmatpush1.msra.mxu0 %v498
    %3747 = vmatprep.subr.mxu0 0.0
    %3748 = vmatpush1.msra.mxu0 %v497
    %3749 = vmatprep.subr.mxu0 0.0
    %3750 = vmatpush1.msra.mxu0 %v496
    %3751 = vmatprep.subr.mxu0 0.0
    %3752 = vmatpush1.msra.mxu0 %v495
    %3753 = vmatprep.subr.mxu0 0.0
    %3754 = vmatpush1.msra.mxu0 %v494
    %3755 = vmatprep.subr.mxu0 0.0
    %3756 = vmatpush1.msra.mxu0 %v493
    %3757 = vmatprep.subr.mxu0 0.0
    %3758 = vmatpush1.msra.mxu0 %v492
    %3759 = vmatprep.subr.mxu0 0.0
    %3760 = vmatpush1.msra.mxu0 %v491
    %3761 = vmatprep.subr.mxu0 0.0
    %3762 = vmatpush1.msra.mxu0 %v490
    %3763 = vmatprep.subr.mxu0 0.0
    %3764 = vmatpush1.msra.mxu0 %v489
    %3765 = vmatprep.subr.mxu0 0.0
    %3766 = vmatpush1.msra.mxu0 %v488
    %3767 = vmatprep.subr.mxu0 0.0
    %3768 = vmatpush1.msra.mxu0 %v487
    %3769 = vmatprep.subr.mxu0 0.0
    %3770 = vmatpush1.msra.mxu0 %v486
    %3771 = vmatprep.subr.mxu0 0.0
    %3772 = vmatpush1.msra.mxu0 %v485
    %3773 = vmatprep.subr.mxu0 0.0
    %3774 = vmatpush2.msra.mxu0 0.0
    %3775 = vmatprep.subr.mxu0 0.0
    %3776 = vmatpush2.msra.mxu0 0.0
    %3777 = vmatprep.subr.mxu0 0.0
    %3778 = vmatpush2.msra.mxu0 0.0
    %3779 = vmatprep.subr.mxu0 0.0
    %3780 = vmatpush2.msra.mxu0 0.0
    %3781 = vmatprep.subr.mxu0 0.0
    %3782 = vmatpush2.msra.mxu0 0.0
    %3783 = vmatprep.subr.mxu0 0.0
    %3784 = vmatpush2.msra.mxu0 0.0
    %3785 = vmatprep.subr.mxu0 0.0
    %3786 = vmatpush2.msra.mxu0 0.0
    %3787 = vmatprep.subr.mxu0 0.0
    %3788 = vmatpush2.msra.mxu0 0.0
    %3789 = vmatprep.subr.mxu0 0.0
    %3790 = vmatpush2.msra.mxu0 0.0
    %3791 = vmatprep.subr.mxu0 0.0
    %3792 = vmatpush2.msra.mxu0 0.0
    %3793 = vmatprep.subr.mxu0 0.0
    %3794 = vmatpush2.msra.mxu0 0.0
    %3795 = vmatprep.subr.mxu0 0.0
    %3796 = vmatpush2.msra.mxu0 0.0
    %3797 = vmatprep.subr.mxu0 0.0
    %3798 = vmatpush2.msra.mxu0 0.0
    %3799 = vmatprep.subr.mxu0 0.0
    %3800 = vmatpush2.msra.mxu0 0.0
    %3801 = vmatprep.subr.mxu0 0.0
    %3802 = vmatpush2.msra.mxu0 0.0
    %3803 = vmatprep.subr.mxu0 0.0
    %3804 = vmatpush2.msra.mxu0 0.0
    %3805 = vmatprep.mubr.f32.mxu0 0.0
    %3806 = vmatmul.mubr.f32.gmra.mxu0 %v3740
    %v3807 = vpop.f32.mrf.mxu0
    %v3808 = vadd.f32 %v195, %v3807
    %v3809 = vpop.f32.mrf.mxu0
    %3810 = vdwg.mxu0
    %s3811 = scalar_lea.vmem %s11, 32
    %3812 = vst [vmem:[%s3811] sm:$0xff] %v3808
    %3813 = vmax.xlane.f32.xlu0 %v3808
    %v3814 = vpop.xlane.xlu0 %3813
    %vm3815 = vcmp.ge.f32.partialorder %v3808, %v3814
    %v3816 = vsel %vm3815, %v145, 128
    %v3817 = vand.u32 %v3816, 65535
    %v3818 = vshra.s32 %v3816, 16
    %v3819 = vcvt.s32.f32 %v3817
    %v3820 = vcvt.s32.f32 %v3818
    %3821 = vmin.xlane.f32.xlu0 %v3820
    %v3822 = vpop.xlane.xlu0 %3821
    %vm3823 = vcmp.eq.f32.partialorder %v3820, %v3822
    %v3824 = vsel %vm3823, %v3819, inf
    %3825 = vmin.xlane.f32.xlu0 %v3824
    %v3826 = vpop.xlane.xlu0 %3825
    %v3827 = vcvt.f32.s32 %v3826
    %v3828 = vcvt.f32.s32 %v3822
    %v3829 = vshll.u32 %v3828, 16
    %v3830 = vadd.s32 %v3829, %v3827
    %vm3831 = vcmp.eq.s32.totalorder %v145, %v3830
    %v3832 = vsel %vm3831, 1, 0
    %v3833 = vcvt.s32.f32 %v3832
    %s3834 = sld [smem:[#allocation5 + $0x200]]
    %v3835 = vstv %s3834
    %v3836 = vsel %vm501, %v3835, 4294967295
    %s3837 = sld [smem:[#allocation5 + $0x201]]
    %v3838 = vstv %s3837
    %v3839 = vsel %vm505, %v3838, %v3836
    %vm3840 = vcmp.eq.s32.totalorder %v3839, %v145
    %v3841 = vsel %vm3840, 1, 0
    %v3842 = vcvt.s32.f32 %v3841
    %s3843 = sld [smem:[#allocation7 + $0x4]]
    %p3844 = scmp.ne.s32.totalorder %s3843, 0
    %s3845 = scalar_select %p3844, 1, 0
    %v3846 = vstv %s3845
    %vm3847 = vcmp.eq.s32.totalorder %v3846, 1
    %v3848 = vsel %vm3847, %v3842, %v3833
    %3849 = vmatprep.subr.mxu0 0.0
    %3850 = vmatpush1.msra.mxu0 %v356
    %3851 = vmatprep.subr.mxu0 0.0
    %3852 = vmatpush1.msra.mxu0 %v355
    %3853 = vmatprep.subr.mxu0 0.0
    %3854 = vmatpush1.msra.mxu0 %v354
    %3855 = vmatprep.subr.mxu0 0.0
    %3856 = vmatpush1.msra.mxu0 %v353
    %3857 = vmatprep.subr.mxu0 0.0
    %3858 = vmatpush1.msra.mxu0 %v352
    %3859 = vmatprep.subr.mxu0 0.0
    %3860 = vmatpush1.msra.mxu0 %v351
    %3861 = vmatprep.subr.mxu0 0.0
    %3862 = vmatpush1.msra.mxu0 %v350
    %3863 = vmatprep.subr.mxu0 0.0
    %3864 = vmatpush1.msra.mxu0 %v349
    %3865 = vmatprep.subr.mxu0 0.0
    %3866 = vmatpush1.msra.mxu0 %v348
    %3867 = vmatprep.subr.mxu0 0.0
    %3868 = vmatpush1.msra.mxu0 %v347
    %3869 = vmatprep.subr.mxu0 0.0
    %3870 = vmatpush1.msra.mxu0 %v346
    %3871 = vmatprep.subr.mxu0 0.0
    %3872 = vmatpush1.msra.mxu0 %v345
    %3873 = vmatprep.subr.mxu0 0.0
    %3874 = vmatpush1.msra.mxu0 %v344
    %3875 = vmatprep.subr.mxu0 0.0
    %3876 = vmatpush1.msra.mxu0 %v343
    %3877 = vmatprep.subr.mxu0 0.0
    %3878 = vmatpush1.msra.mxu0 %v342
    %3879 = vmatprep.subr.mxu0 0.0
    %3880 = vmatpush1.msra.mxu0 %v341
    %3881 = vmatprep.subr.mxu0 0.0
    %3882 = vmatpush2.msra.mxu0 0.0
    %3883 = vmatprep.subr.mxu0 0.0
    %3884 = vmatpush2.msra.mxu0 0.0
    %3885 = vmatprep.subr.mxu0 0.0
    %3886 = vmatpush2.msra.mxu0 0.0
    %3887 = vmatprep.subr.mxu0 0.0
    %3888 = vmatpush2.msra.mxu0 0.0
    %3889 = vmatprep.subr.mxu0 0.0
    %3890 = vmatpush2.msra.mxu0 0.0
    %3891 = vmatprep.subr.mxu0 0.0
    %3892 = vmatpush2.msra.mxu0 0.0
    %3893 = vmatprep.subr.mxu0 0.0
    %3894 = vmatpush2.msra.mxu0 0.0
    %3895 = vmatprep.subr.mxu0 0.0
    %3896 = vmatpush2.msra.mxu0 0.0
    %3897 = vmatprep.subr.mxu0 0.0
    %3898 = vmatpush2.msra.mxu0 0.0
    %3899 = vmatprep.subr.mxu0 0.0
    %3900 = vmatpush2.msra.mxu0 0.0
    %3901 = vmatprep.subr.mxu0 0.0
    %3902 = vmatpush2.msra.mxu0 0.0
    %3903 = vmatprep.subr.mxu0 0.0
    %3904 = vmatpush2.msra.mxu0 0.0
    %3905 = vmatprep.subr.mxu0 0.0
    %3906 = vmatpush2.msra.mxu0 0.0
    %3907 = vmatprep.subr.mxu0 0.0
    %3908 = vmatpush2.msra.mxu0 0.0
    %3909 = vmatprep.subr.mxu0 0.0
    %3910 = vmatpush2.msra.mxu0 0.0
    %3911 = vmatprep.subr.mxu0 0.0
    %3912 = vmatpush2.msra.mxu0 0.0
    %3913 = vmatprep.mubr.f32.mxu0 0.0
    %3914 = vmatmul.mubr.f32.gmra.mxu0 %v3848
    %v3915 = vpop.f32.mrf.mxu0
    %v3916 = vadd.f32 0.0, %v3915
    %v3917 = vpop.f32.mrf.mxu0
    %3918 = vdwg.mxu0
    %3919 = vmatprep.subr.mxu0 %v418
    %3920 = vmatpush1.msra.mxu0 %v417
    %3921 = vmatprep.subr.mxu0 %v414
    %3922 = vmatpush1.msra.mxu0 %v413
    %3923 = vmatprep.subr.mxu0 %v410
    %3924 = vmatpush1.msra.mxu0 %v409
    %3925 = vmatprep.subr.mxu0 %v406
    %3926 = vmatpush1.msra.mxu0 %v405
    %3927 = vmatprep.subr.mxu0 %v402
    %3928 = vmatpush1.msra.mxu0 %v401
    %3929 = vmatprep.subr.mxu0 %v398
    %3930 = vmatpush1.msra.mxu0 %v397
    %3931 = vmatprep.subr.mxu0 %v394
    %3932 = vmatpush1.msra.mxu0 %v393
    %3933 = vmatprep.subr.mxu0 %v390
    %3934 = vmatpush1.msra.mxu0 %v389
    %3935 = vmatprep.subr.mxu0 %v386
    %3936 = vmatpush1.msra.mxu0 %v385
    %3937 = vmatprep.subr.mxu0 %v382
    %3938 = vmatpush1.msra.mxu0 %v381
    %3939 = vmatprep.subr.mxu0 %v378
    %3940 = vmatpush1.msra.mxu0 %v377
    %3941 = vmatprep.subr.mxu0 %v374
    %3942 = vmatpush1.msra.mxu0 %v373
    %3943 = vmatprep.subr.mxu0 %v370
    %3944 = vmatpush1.msra.mxu0 %v369
    %3945 = vmatprep.subr.mxu0 %v366
    %3946 = vmatpush1.msra.mxu0 %v365
    %3947 = vmatprep.subr.mxu0 %v362
    %3948 = vmatpush1.msra.mxu0 %v361
    %3949 = vmatprep.subr.mxu0 %v358
    %3950 = vmatpush1.msra.mxu0 %v357
    %3951 = vmatprep.subr.mxu0 %v482
    %3952 = vmatpush2.msra.mxu0 %v481
    %3953 = vmatprep.subr.mxu0 %v478
    %3954 = vmatpush2.msra.mxu0 %v477
    %3955 = vmatprep.subr.mxu0 %v474
    %3956 = vmatpush2.msra.mxu0 %v473
    %3957 = vmatprep.subr.mxu0 %v470
    %3958 = vmatpush2.msra.mxu0 %v469
    %3959 = vmatprep.subr.mxu0 %v466
    %3960 = vmatpush2.msra.mxu0 %v465
    %3961 = vmatprep.subr.mxu0 %v462
    %3962 = vmatpush2.msra.mxu0 %v461
    %3963 = vmatprep.subr.mxu0 %v458
    %3964 = vmatpush2.msra.mxu0 %v457
    %3965 = vmatprep.subr.mxu0 %v454
    %3966 = vmatpush2.msra.mxu0 %v453
    %3967 = vmatprep.subr.mxu0 %v450
    %3968 = vmatpush2.msra.mxu0 %v449
    %3969 = vmatprep.subr.mxu0 %v446
    %3970 = vmatpush2.msra.mxu0 %v445
    %3971 = vmatprep.subr.mxu0 %v442
    %3972 = vmatpush2.msra.mxu0 %v441
    %3973 = vmatprep.subr.mxu0 %v438
    %3974 = vmatpush2.msra.mxu0 %v437
    %3975 = vmatprep.subr.mxu0 %v434
    %3976 = vmatpush2.msra.mxu0 %v433
    %3977 = vmatprep.subr.mxu0 %v430
    %3978 = vmatpush2.msra.mxu0 %v429
    %3979 = vmatprep.subr.mxu0 %v426
    %3980 = vmatpush2.msra.mxu0 %v425
    %3981 = vmatprep.subr.mxu0 %v422
    %3982 = vmatpush2.msra.mxu0 %v421
    %3983 = vmatprep.mubr.f32.mxu0 %v3740
    %3984 = vmatmul.mubr.f32.gmra.mxu0 %v3916
    %v3985 = vpop.f32.mrf.mxu0
    %v3986 = vadd.f32 %v173, %v3985
    %v3987 = vpop.f32.mrf.mxu0
    %v3988 = vadd.f32 %v177, %v3987
    %3989 = vdwg.mxu0
    %3990 = vmatprep.subr.mxu0 %v420
    %3991 = vmatpush1.msra.mxu0 %v419
    %3992 = vmatprep.subr.mxu0 %v416
    %3993 = vmatpush1.msra.mxu0 %v415
    %3994 = vmatprep.subr.mxu0 %v412
    %3995 = vmatpush1.msra.mxu0 %v411
    %3996 = vmatprep.subr.mxu0 %v408
    %3997 = vmatpush1.msra.mxu0 %v407
    %3998 = vmatprep.subr.mxu0 %v404
    %3999 = vmatpush1.msra.mxu0 %v403
    %4000 = vmatprep.subr.mxu0 %v400
    %4001 = vmatpush1.msra.mxu0 %v399
    %4002 = vmatprep.subr.mxu0 %v396
    %4003 = vmatpush1.msra.mxu0 %v395
    %4004 = vmatprep.subr.mxu0 %v392
    %4005 = vmatpush1.msra.mxu0 %v391
    %4006 = vmatprep.subr.mxu0 %v388
    %4007 = vmatpush1.msra.mxu0 %v387
    %4008 = vmatprep.subr.mxu0 %v384
    %4009 = vmatpush1.msra.mxu0 %v383
    %4010 = vmatprep.subr.mxu0 %v380
    %4011 = vmatpush1.msra.mxu0 %v379
    %4012 = vmatprep.subr.mxu0 %v376
    %4013 = vmatpush1.msra.mxu0 %v375
    %4014 = vmatprep.subr.mxu0 %v372
    %4015 = vmatpush1.msra.mxu0 %v371
    %4016 = vmatprep.subr.mxu0 %v368
    %4017 = vmatpush1.msra.mxu0 %v367
    %4018 = vmatprep.subr.mxu0 %v364
    %4019 = vmatpush1.msra.mxu0 %v363
    %4020 = vmatprep.subr.mxu0 %v360
    %4021 = vmatpush1.msra.mxu0 %v359
    %4022 = vmatprep.subr.mxu0 %v484
    %4023 = vmatpush2.msra.mxu0 %v483
    %4024 = vmatprep.subr.mxu0 %v480
    %4025 = vmatpush2.msra.mxu0 %v479
    %4026 = vmatprep.subr.mxu0 %v476
    %4027 = vmatpush2.msra.mxu0 %v475
    %4028 = vmatprep.subr.mxu0 %v472
    %4029 = vmatpush2.msra.mxu0 %v471
    %4030 = vmatprep.subr.mxu0 %v468
    %4031 = vmatpush2.msra.mxu0 %v467
    %4032 = vmatprep.subr.mxu0 %v464
    %4033 = vmatpush2.msra.mxu0 %v463
    %4034 = vmatprep.subr.mxu0 %v460
    %4035 = vmatpush2.msra.mxu0 %v459
    %4036 = vmatprep.subr.mxu0 %v456
    %4037 = vmatpush2.msra.mxu0 %v455
    %4038 = vmatprep.subr.mxu0 %v452
    %4039 = vmatpush2.msra.mxu0 %v451
    %4040 = vmatprep.subr.mxu0 %v448
    %4041 = vmatpush2.msra.mxu0 %v447
    %4042 = vmatprep.subr.mxu0 %v444
    %4043 = vmatpush2.msra.mxu0 %v443
    %4044 = vmatprep.subr.mxu0 %v440
    %4045 = vmatpush2.msra.mxu0 %v439
    %4046 = vmatprep.subr.mxu0 %v436
    %4047 = vmatpush2.msra.mxu0 %v435
    %4048 = vmatprep.subr.mxu0 %v432
    %4049 = vmatpush2.msra.mxu0 %v431
    %4050 = vmatprep.subr.mxu0 %v428
    %4051 = vmatpush2.msra.mxu0 %v427
    %4052 = vmatprep.subr.mxu0 %v424
    %4053 = vmatpush2.msra.mxu0 %v423
    %4054 = vmatprep.mubr.f32.mxu0 %v3740
    %4055 = vmatmul.mubr.f32.gmra.mxu0 %v3916
    %v4056 = vpop.f32.mrf.mxu0
    %v4057 = vadd.f32 %v181, %v4056
    %v4058 = vpop.f32.mrf.mxu0
    %v4059 = vadd.f32 %v185, %v4058
    %4060 = vdwg.mxu0
    %v4061 = vxor.u32 %v3986, 2147483648
    %v4062 = vmul.f32 %v4061, 1.442695
    %v4063 = vpow.pop %v4062
    %v4064 = vadd.f32 %v4063, 1.0
    %v4065 = vrcp.pop %v4064
    %v4066 = vmul.f32 1.0, %v4065
    %v4067 = vxor.u32 %v3988, 2147483648
    %v4068 = vmul.f32 %v4067, 1.442695
    %v4069 = vpow.pop %v4068
    %v4070 = vadd.f32 %v4069, 1.0
    %v4071 = vrcp.pop %v4070
    %v4072 = vmul.f32 1.0, %v4071
    %v4073 = vtanh.pop %v4057
    %v4074 = vxor.u32 %v4059, 2147483648
    %v4075 = vmul.f32 %v4074, 1.442695
    %v4076 = vpow.pop %v4075
    %v4077 = vadd.f32 %v4076, 1.0
    %v4078 = vrcp.pop %v4077
    %v4079 = vmul.f32 1.0, %v4078
    %v4080 = vmul.f32 %v4072, %v3738
    %v4081 = vmul.f32 %v4066, %v4073
    %v4082 = vadd.f32 %v4080, %v4081
    %v4083 = vtanh.pop %v4082
    %v4084 = vmul.f32 %v4079, %v4083
    %4085 = vmatprep.subr.mxu0 0.0
    %4086 = vmatpush1.msra.mxu0 %v500
    %4087 = vmatprep.subr.mxu0 0.0
    %4088 = vmatpush1.msra.mxu0 %v499
    %4089 = vmatprep.subr.mxu0 0.0
    %4090 = vmatpush1.msra.mxu0 %v498
    %4091 = vmatprep.subr.mxu0 0.0
    %4092 = vmatpush1.msra.mxu0 %v497
    %4093 = vmatprep.subr.mxu0 0.0
    %4094 = vmatpush1.msra.mxu0 %v496
    %4095 = vmatprep.subr.mxu0 0.0
    %4096 = vmatpush1.msra.mxu0 %v495
    %4097 = vmatprep.subr.mxu0 0.0
    %4098 = vmatpush1.msra.mxu0 %v494
    %4099 = vmatprep.subr.mxu0 0.0
    %4100 = vmatpush1.msra.mxu0 %v493
    %4101 = vmatprep.subr.mxu0 0.0
    %4102 = vmatpush1.msra.mxu0 %v492
    %4103 = vmatprep.subr.mxu0 0.0
    %4104 = vmatpush1.msra.mxu0 %v491
    %4105 = vmatprep.subr.mxu0 0.0
    %4106 = vmatpush1.msra.mxu0 %v490
    %4107 = vmatprep.subr.mxu0 0.0
    %4108 = vmatpush1.msra.mxu0 %v489
    %4109 = vmatprep.subr.mxu0 0.0
    %4110 = vmatpush1.msra.mxu0 %v488
    %4111 = vmatprep.subr.mxu0 0.0
    %4112 = vmatpush1.msra.mxu0 %v487
    %4113 = vmatprep.subr.mxu0 0.0
    %4114 = vmatpush1.msra.mxu0 %v486
    %4115 = vmatprep.subr.mxu0 0.0
    %4116 = vmatpush1.msra.mxu0 %v485
    %4117 = vmatprep.subr.mxu0 0.0
    %4118 = vmatpush2.msra.mxu0 0.0
    %4119 = vmatprep.subr.mxu0 0.0
    %4120 = vmatpush2.msra.mxu0 0.0
    %4121 = vmatprep.subr.mxu0 0.0
    %4122 = vmatpush2.msra.mxu0 0.0
    %4123 = vmatprep.subr.mxu0 0.0
    %4124 = vmatpush2.msra.mxu0 0.0
    %4125 = vmatprep.subr.mxu0 0.0
    %4126 = vmatpush2.msra.mxu0 0.0
    %4127 = vmatprep.subr.mxu0 0.0
    %4128 = vmatpush2.msra.mxu0 0.0
    %4129 = vmatprep.subr.mxu0 0.0
    %4130 = vmatpush2.msra.mxu0 0.0
    %4131 = vmatprep.subr.mxu0 0.0
    %4132 = vmatpush2.msra.mxu0 0.0
    %4133 = vmatprep.subr.mxu0 0.0
    %4134 = vmatpush2.msra.mxu0 0.0
    %4135 = vmatprep.subr.mxu0 0.0
    %4136 = vmatpush2.msra.mxu0 0.0
    %4137 = vmatprep.subr.mxu0 0.0
    %4138 = vmatpush2.msra.mxu0 0.0
    %4139 = vmatprep.subr.mxu0 0.0
    %4140 = vmatpush2.msra.mxu0 0.0
    %4141 = vmatprep.subr.mxu0 0.0
    %4142 = vmatpush2.msra.mxu0 0.0
    %4143 = vmatprep.subr.mxu0 0.0
    %4144 = vmatpush2.msra.mxu0 0.0
    %4145 = vmatprep.subr.mxu0 0.0
    %4146 = vmatpush2.msra.mxu0 0.0
    %4147 = vmatprep.subr.mxu0 0.0
    %4148 = vmatpush2.msra.mxu0 0.0
    %4149 = vmatprep.mubr.f32.mxu0 0.0
    %4150 = vmatmul.mubr.f32.gmra.mxu0 %v4084
    %v4151 = vpop.f32.mrf.mxu0
    %v4152 = vadd.f32 %v195, %v4151
    %v4153 = vpop.f32.mrf.mxu0
    %4154 = vdwg.mxu0
    %s4155 = scalar_lea.vmem %s11, 40
    %4156 = vst [vmem:[%s4155] sm:$0xff] %v4152
    %4157 = vmax.xlane.f32.xlu0 %v4152
    %v4158 = vpop.xlane.xlu0 %4157
    %vm4159 = vcmp.ge.f32.partialorder %v4152, %v4158
    %v4160 = vsel %vm4159, %v145, 128
    %v4161 = vand.u32 %v4160, 65535
    %v4162 = vshra.s32 %v4160, 16
    %v4163 = vcvt.s32.f32 %v4161
    %v4164 = vcvt.s32.f32 %v4162
    %4165 = vmin.xlane.f32.xlu0 %v4164
    %v4166 = vpop.xlane.xlu0 %4165
    %vm4167 = vcmp.eq.f32.partialorder %v4164, %v4166
    %v4168 = vsel %vm4167, %v4163, inf
    %4169 = vmin.xlane.f32.xlu0 %v4168
    %v4170 = vpop.xlane.xlu0 %4169
    %v4171 = vcvt.f32.s32 %v4170
    %v4172 = vcvt.f32.s32 %v4166
    %v4173 = vshll.u32 %v4172, 16
    %v4174 = vadd.s32 %v4173, %v4171
    %vm4175 = vcmp.eq.s32.totalorder %v145, %v4174
    %v4176 = vsel %vm4175, 1, 0
    %v4177 = vcvt.s32.f32 %v4176
    %s4178 = sld [smem:[#allocation5 + $0x280]]
    %v4179 = vstv %s4178
    %v4180 = vsel %vm501, %v4179, 4294967295
    %s4181 = sld [smem:[#allocation5 + $0x281]]
    %v4182 = vstv %s4181
    %v4183 = vsel %vm505, %v4182, %v4180
    %vm4184 = vcmp.eq.s32.totalorder %v4183, %v145
    %v4185 = vsel %vm4184, 1, 0
    %v4186 = vcvt.s32.f32 %v4185
    %s4187 = sld [smem:[#allocation7 + $0x5]]
    %p4188 = scmp.ne.s32.totalorder %s4187, 0
    %s4189 = scalar_select %p4188, 1, 0
    %v4190 = vstv %s4189
    %vm4191 = vcmp.eq.s32.totalorder %v4190, 1
    %v4192 = vsel %vm4191, %v4186, %v4177
    %4193 = vmatprep.subr.mxu0 0.0
    %4194 = vmatpush1.msra.mxu0 %v356
    %4195 = vmatprep.subr.mxu0 0.0
    %4196 = vmatpush1.msra.mxu0 %v355
    %4197 = vmatprep.subr.mxu0 0.0
    %4198 = vmatpush1.msra.mxu0 %v354
    %4199 = vmatprep.subr.mxu0 0.0
    %4200 = vmatpush1.msra.mxu0 %v353
    %4201 = vmatprep.subr.mxu0 0.0
    %4202 = vmatpush1.msra.mxu0 %v352
    %4203 = vmatprep.subr.mxu0 0.0
    %4204 = vmatpush1.msra.mxu0 %v351
    %4205 = vmatprep.subr.mxu0 0.0
    %4206 = vmatpush1.msra.mxu0 %v350
    %4207 = vmatprep.subr.mxu0 0.0
    %4208 = vmatpush1.msra.mxu0 %v349
    %4209 = vmatprep.subr.mxu0 0.0
    %4210 = vmatpush1.msra.mxu0 %v348
    %4211 = vmatprep.subr.mxu0 0.0
    %4212 = vmatpush1.msra.mxu0 %v347
    %4213 = vmatprep.subr.mxu0 0.0
    %4214 = vmatpush1.msra.mxu0 %v346
    %4215 = vmatprep.subr.mxu0 0.0
    %4216 = vmatpush1.msra.mxu0 %v345
    %4217 = vmatprep.subr.mxu0 0.0
    %4218 = vmatpush1.msra.mxu0 %v344
    %4219 = vmatprep.subr.mxu0 0.0
    %4220 = vmatpush1.msra.mxu0 %v343
    %4221 = vmatprep.subr.mxu0 0.0
    %4222 = vmatpush1.msra.mxu0 %v342
    %4223 = vmatprep.subr.mxu0 0.0
    %4224 = vmatpush1.msra.mxu0 %v341
    %4225 = vmatprep.subr.mxu0 0.0
    %4226 = vmatpush2.msra.mxu0 0.0
    %4227 = vmatprep.subr.mxu0 0.0
    %4228 = vmatpush2.msra.mxu0 0.0
    %4229 = vmatprep.subr.mxu0 0.0
    %4230 = vmatpush2.msra.mxu0 0.0
    %4231 = vmatprep.subr.mxu0 0.0
    %4232 = vmatpush2.msra.mxu0 0.0
    %4233 = vmatprep.subr.mxu0 0.0
    %4234 = vmatpush2.msra.mxu0 0.0
    %4235 = vmatprep.subr.mxu0 0.0
    %4236 = vmatpush2.msra.mxu0 0.0
    %4237 = vmatprep.subr.mxu0 0.0
    %4238 = vmatpush2.msra.mxu0 0.0
    %4239 = vmatprep.subr.mxu0 0.0
    %4240 = vmatpush2.msra.mxu0 0.0
    %4241 = vmatprep.subr.mxu0 0.0
    %4242 = vmatpush2.msra.mxu0 0.0
    %4243 = vmatprep.subr.mxu0 0.0
    %4244 = vmatpush2.msra.mxu0 0.0
    %4245 = vmatprep.subr.mxu0 0.0
    %4246 = vmatpush2.msra.mxu0 0.0
    %4247 = vmatprep.subr.mxu0 0.0
    %4248 = vmatpush2.msra.mxu0 0.0
    %4249 = vmatprep.subr.mxu0 0.0
    %4250 = vmatpush2.msra.mxu0 0.0
    %4251 = vmatprep.subr.mxu0 0.0
    %4252 = vmatpush2.msra.mxu0 0.0
    %4253 = vmatprep.subr.mxu0 0.0
    %4254 = vmatpush2.msra.mxu0 0.0
    %4255 = vmatprep.subr.mxu0 0.0
    %4256 = vmatpush2.msra.mxu0 0.0
    %4257 = vmatprep.mubr.f32.mxu0 0.0
    %4258 = vmatmul.mubr.f32.gmra.mxu0 %v4192
    %v4259 = vpop.f32.mrf.mxu0
    %v4260 = vadd.f32 0.0, %v4259
    %v4261 = vpop.f32.mrf.mxu0
    %4262 = vdwg.mxu0
    %4263 = vmatprep.subr.mxu0 %v418
    %4264 = vmatpush1.msra.mxu0 %v417
    %4265 = vmatprep.subr.mxu0 %v414
    %4266 = vmatpush1.msra.mxu0 %v413
    %4267 = vmatprep.subr.mxu0 %v410
    %4268 = vmatpush1.msra.mxu0 %v409
    %4269 = vmatprep.subr.mxu0 %v406
    %4270 = vmatpush1.msra.mxu0 %v405
    %4271 = vmatprep.subr.mxu0 %v402
    %4272 = vmatpush1.msra.mxu0 %v401
    %4273 = vmatprep.subr.mxu0 %v398
    %4274 = vmatpush1.msra.mxu0 %v397
    %4275 = vmatprep.subr.mxu0 %v394
    %4276 = vmatpush1.msra.mxu0 %v393
    %4277 = vmatprep.subr.mxu0 %v390
    %4278 = vmatpush1.msra.mxu0 %v389
    %4279 = vmatprep.subr.mxu0 %v386
    %4280 = vmatpush1.msra.mxu0 %v385
    %4281 = vmatprep.subr.mxu0 %v382
    %4282 = vmatpush1.msra.mxu0 %v381
    %4283 = vmatprep.subr.mxu0 %v378
    %4284 = vmatpush1.msra.mxu0 %v377
    %4285 = vmatprep.subr.mxu0 %v374
    %4286 = vmatpush1.msra.mxu0 %v373
    %4287 = vmatprep.subr.mxu0 %v370
    %4288 = vmatpush1.msra.mxu0 %v369
    %4289 = vmatprep.subr.mxu0 %v366
    %4290 = vmatpush1.msra.mxu0 %v365
    %4291 = vmatprep.subr.mxu0 %v362
    %4292 = vmatpush1.msra.mxu0 %v361
    %4293 = vmatprep.subr.mxu0 %v358
    %4294 = vmatpush1.msra.mxu0 %v357
    %4295 = vmatprep.subr.mxu0 %v482
    %4296 = vmatpush2.msra.mxu0 %v481
    %4297 = vmatprep.subr.mxu0 %v478
    %4298 = vmatpush2.msra.mxu0 %v477
    %4299 = vmatprep.subr.mxu0 %v474
    %4300 = vmatpush2.msra.mxu0 %v473
    %4301 = vmatprep.subr.mxu0 %v470
    %4302 = vmatpush2.msra.mxu0 %v469
    %4303 = vmatprep.subr.mxu0 %v466
    %4304 = vmatpush2.msra.mxu0 %v465
    %4305 = vmatprep.subr.mxu0 %v462
    %4306 = vmatpush2.msra.mxu0 %v461
    %4307 = vmatprep.subr.mxu0 %v458
    %4308 = vmatpush2.msra.mxu0 %v457
    %4309 = vmatprep.subr.mxu0 %v454
    %4310 = vmatpush2.msra.mxu0 %v453
    %4311 = vmatprep.subr.mxu0 %v450
    %4312 = vmatpush2.msra.mxu0 %v449
    %4313 = vmatprep.subr.mxu0 %v446
    %4314 = vmatpush2.msra.mxu0 %v445
    %4315 = vmatprep.subr.mxu0 %v442
    %4316 = vmatpush2.msra.mxu0 %v441
    %4317 = vmatprep.subr.mxu0 %v438
    %4318 = vmatpush2.msra.mxu0 %v437
    %4319 = vmatprep.subr.mxu0 %v434
    %4320 = vmatpush2.msra.mxu0 %v433
    %4321 = vmatprep.subr.mxu0 %v430
    %4322 = vmatpush2.msra.mxu0 %v429
    %4323 = vmatprep.subr.mxu0 %v426
    %4324 = vmatpush2.msra.mxu0 %v425
    %4325 = vmatprep.subr.mxu0 %v422
    %4326 = vmatpush2.msra.mxu0 %v421
    %4327 = vmatprep.mubr.f32.mxu0 %v4084
    %4328 = vmatmul.mubr.f32.gmra.mxu0 %v4260
    %v4329 = vpop.f32.mrf.mxu0
    %v4330 = vadd.f32 %v173, %v4329
    %v4331 = vpop.f32.mrf.mxu0
    %v4332 = vadd.f32 %v177, %v4331
    %4333 = vdwg.mxu0
    %4334 = vmatprep.subr.mxu0 %v420
    %4335 = vmatpush1.msra.mxu0 %v419
    %4336 = vmatprep.subr.mxu0 %v416
    %4337 = vmatpush1.msra.mxu0 %v415
    %4338 = vmatprep.subr.mxu0 %v412
    %4339 = vmatpush1.msra.mxu0 %v411
    %4340 = vmatprep.subr.mxu0 %v408
    %4341 = vmatpush1.msra.mxu0 %v407
    %4342 = vmatprep.subr.mxu0 %v404
    %4343 = vmatpush1.msra.mxu0 %v403
    %4344 = vmatprep.subr.mxu0 %v400
    %4345 = vmatpush1.msra.mxu0 %v399
    %4346 = vmatprep.subr.mxu0 %v396
    %4347 = vmatpush1.msra.mxu0 %v395
    %4348 = vmatprep.subr.mxu0 %v392
    %4349 = vmatpush1.msra.mxu0 %v391
    %4350 = vmatprep.subr.mxu0 %v388
    %4351 = vmatpush1.msra.mxu0 %v387
    %4352 = vmatprep.subr.mxu0 %v384
    %4353 = vmatpush1.msra.mxu0 %v383
    %4354 = vmatprep.subr.mxu0 %v380
    %4355 = vmatpush1.msra.mxu0 %v379
    %4356 = vmatprep.subr.mxu0 %v376
    %4357 = vmatpush1.msra.mxu0 %v375
    %4358 = vmatprep.subr.mxu0 %v372
    %4359 = vmatpush1.msra.mxu0 %v371
    %4360 = vmatprep.subr.mxu0 %v368
    %4361 = vmatpush1.msra.mxu0 %v367
    %4362 = vmatprep.subr.mxu0 %v364
    %4363 = vmatpush1.msra.mxu0 %v363
    %4364 = vmatprep.subr.mxu0 %v360
    %4365 = vmatpush1.msra.mxu0 %v359
    %4366 = vmatprep.subr.mxu0 %v484
    %4367 = vmatpush2.msra.mxu0 %v483
    %4368 = vmatprep.subr.mxu0 %v480
    %4369 = vmatpush2.msra.mxu0 %v479
    %4370 = vmatprep.subr.mxu0 %v476
    %4371 = vmatpush2.msra.mxu0 %v475
    %4372 = vmatprep.subr.mxu0 %v472
    %4373 = vmatpush2.msra.mxu0 %v471
    %4374 = vmatprep.subr.mxu0 %v468
    %4375 = vmatpush2.msra.mxu0 %v467
    %4376 = vmatprep.subr.mxu0 %v464
    %4377 = vmatpush2.msra.mxu0 %v463
    %4378 = vmatprep.subr.mxu0 %v460
    %4379 = vmatpush2.msra.mxu0 %v459
    %4380 = vmatprep.subr.mxu0 %v456
    %4381 = vmatpush2.msra.mxu0 %v455
    %4382 = vmatprep.subr.mxu0 %v452
    %4383 = vmatpush2.msra.mxu0 %v451
    %4384 = vmatprep.subr.mxu0 %v448
    %4385 = vmatpush2.msra.mxu0 %v447
    %4386 = vmatprep.subr.mxu0 %v444
    %4387 = vmatpush2.msra.mxu0 %v443
    %4388 = vmatprep.subr.mxu0 %v440
    %4389 = vmatpush2.msra.mxu0 %v439
    %4390 = vmatprep.subr.mxu0 %v436
    %4391 = vmatpush2.msra.mxu0 %v435
    %4392 = vmatprep.subr.mxu0 %v432
    %4393 = vmatpush2.msra.mxu0 %v431
    %4394 = vmatprep.subr.mxu0 %v428
    %4395 = vmatpush2.msra.mxu0 %v427
    %4396 = vmatprep.subr.mxu0 %v424
    %4397 = vmatpush2.msra.mxu0 %v423
    %4398 = vmatprep.mubr.f32.mxu0 %v4084
    %4399 = vmatmul.mubr.f32.gmra.mxu0 %v4260
    %v4400 = vpop.f32.mrf.mxu0
    %v4401 = vadd.f32 %v181, %v4400
    %v4402 = vpop.f32.mrf.mxu0
    %v4403 = vadd.f32 %v185, %v4402
    %4404 = vdwg.mxu0
    %v4405 = vxor.u32 %v4330, 2147483648
    %v4406 = vmul.f32 %v4405, 1.442695
    %v4407 = vpow.pop %v4406
    %v4408 = vadd.f32 %v4407, 1.0
    %v4409 = vrcp.pop %v4408
    %v4410 = vmul.f32 1.0, %v4409
    %v4411 = vxor.u32 %v4332, 2147483648
    %v4412 = vmul.f32 %v4411, 1.442695
    %v4413 = vpow.pop %v4412
    %v4414 = vadd.f32 %v4413, 1.0
    %v4415 = vrcp.pop %v4414
    %v4416 = vmul.f32 1.0, %v4415
    %v4417 = vtanh.pop %v4401
    %v4418 = vxor.u32 %v4403, 2147483648
    %v4419 = vmul.f32 %v4418, 1.442695
    %v4420 = vpow.pop %v4419
    %v4421 = vadd.f32 %v4420, 1.0
    %v4422 = vrcp.pop %v4421
    %v4423 = vmul.f32 1.0, %v4422
    %v4424 = vmul.f32 %v4416, %v4082
    %v4425 = vmul.f32 %v4410, %v4417
    %v4426 = vadd.f32 %v4424, %v4425
    %v4427 = vtanh.pop %v4426
    %v4428 = vmul.f32 %v4423, %v4427
    %4429 = vmatprep.subr.mxu0 0.0
    %4430 = vmatpush1.msra.mxu0 %v500
    %4431 = vmatprep.subr.mxu0 0.0
    %4432 = vmatpush1.msra.mxu0 %v499
    %4433 = vmatprep.subr.mxu0 0.0
    %4434 = vmatpush1.msra.mxu0 %v498
    %4435 = vmatprep.subr.mxu0 0.0
    %4436 = vmatpush1.msra.mxu0 %v497
    %4437 = vmatprep.subr.mxu0 0.0
    %4438 = vmatpush1.msra.mxu0 %v496
    %4439 = vmatprep.subr.mxu0 0.0
    %4440 = vmatpush1.msra.mxu0 %v495
    %4441 = vmatprep.subr.mxu0 0.0
    %4442 = vmatpush1.msra.mxu0 %v494
    %4443 = vmatprep.subr.mxu0 0.0
    %4444 = vmatpush1.msra.mxu0 %v493
    %4445 = vmatprep.subr.mxu0 0.0
    %4446 = vmatpush1.msra.mxu0 %v492
    %4447 = vmatprep.subr.mxu0 0.0
    %4448 = vmatpush1.msra.mxu0 %v491
    %4449 = vmatprep.subr.mxu0 0.0
    %4450 = vmatpush1.msra.mxu0 %v490
    %4451 = vmatprep.subr.mxu0 0.0
    %4452 = vmatpush1.msra.mxu0 %v489
    %4453 = vmatprep.subr.mxu0 0.0
    %4454 = vmatpush1.msra.mxu0 %v488
    %4455 = vmatprep.subr.mxu0 0.0
    %4456 = vmatpush1.msra.mxu0 %v487
    %4457 = vmatprep.subr.mxu0 0.0
    %4458 = vmatpush1.msra.mxu0 %v486
    %4459 = vmatprep.subr.mxu0 0.0
    %4460 = vmatpush1.msra.mxu0 %v485
    %4461 = vmatprep.subr.mxu0 0.0
    %4462 = vmatpush2.msra.mxu0 0.0
    %4463 = vmatprep.subr.mxu0 0.0
    %4464 = vmatpush2.msra.mxu0 0.0
    %4465 = vmatprep.subr.mxu0 0.0
    %4466 = vmatpush2.msra.mxu0 0.0
    %4467 = vmatprep.subr.mxu0 0.0
    %4468 = vmatpush2.msra.mxu0 0.0
    %4469 = vmatprep.subr.mxu0 0.0
    %4470 = vmatpush2.msra.mxu0 0.0
    %4471 = vmatprep.subr.mxu0 0.0
    %4472 = vmatpush2.msra.mxu0 0.0
    %4473 = vmatprep.subr.mxu0 0.0
    %4474 = vmatpush2.msra.mxu0 0.0
    %4475 = vmatprep.subr.mxu0 0.0
    %4476 = vmatpush2.msra.mxu0 0.0
    %4477 = vmatprep.subr.mxu0 0.0
    %4478 = vmatpush2.msra.mxu0 0.0
    %4479 = vmatprep.subr.mxu0 0.0
    %4480 = vmatpush2.msra.mxu0 0.0
    %4481 = vmatprep.subr.mxu0 0.0
    %4482 = vmatpush2.msra.mxu0 0.0
    %4483 = vmatprep.subr.mxu0 0.0
    %4484 = vmatpush2.msra.mxu0 0.0
    %4485 = vmatprep.subr.mxu0 0.0
    %4486 = vmatpush2.msra.mxu0 0.0
    %4487 = vmatprep.subr.mxu0 0.0
    %4488 = vmatpush2.msra.mxu0 0.0
    %4489 = vmatprep.subr.mxu0 0.0
    %4490 = vmatpush2.msra.mxu0 0.0
    %4491 = vmatprep.subr.mxu0 0.0
    %4492 = vmatpush2.msra.mxu0 0.0
    %4493 = vmatprep.mubr.f32.mxu0 0.0
    %4494 = vmatmul.mubr.f32.gmra.mxu0 %v4428
    %v4495 = vpop.f32.mrf.mxu0
    %v4496 = vadd.f32 %v195, %v4495
    %v4497 = vpop.f32.mrf.mxu0
    %4498 = vdwg.mxu0
    %s4499 = scalar_lea.vmem %s11, 48
    %4500 = vst [vmem:[%s4499] sm:$0xff] %v4496
    %4501 = vmax.xlane.f32.xlu0 %v4496
    %v4502 = vpop.xlane.xlu0 %4501
    %vm4503 = vcmp.ge.f32.partialorder %v4496, %v4502
    %v4504 = vsel %vm4503, %v145, 128
    %v4505 = vand.u32 %v4504, 65535
    %v4506 = vshra.s32 %v4504, 16
    %v4507 = vcvt.s32.f32 %v4505
    %v4508 = vcvt.s32.f32 %v4506
    %4509 = vmin.xlane.f32.xlu0 %v4508
    %v4510 = vpop.xlane.xlu0 %4509
    %vm4511 = vcmp.eq.f32.partialorder %v4508, %v4510
    %v4512 = vsel %vm4511, %v4507, inf
    %4513 = vmin.xlane.f32.xlu0 %v4512
    %v4514 = vpop.xlane.xlu0 %4513
    %v4515 = vcvt.f32.s32 %v4514
    %v4516 = vcvt.f32.s32 %v4510
    %v4517 = vshll.u32 %v4516, 16
    %v4518 = vadd.s32 %v4517, %v4515
    %vm4519 = vcmp.eq.s32.totalorder %v145, %v4518
    %v4520 = vsel %vm4519, 1, 0
    %v4521 = vcvt.s32.f32 %v4520
    %s4522 = sld [smem:[#allocation5 + $0x300]]
    %v4523 = vstv %s4522
    %v4524 = vsel %vm501, %v4523, 4294967295
    %s4525 = sld [smem:[#allocation5 + $0x301]]
    %v4526 = vstv %s4525
    %v4527 = vsel %vm505, %v4526, %v4524
    %vm4528 = vcmp.eq.s32.totalorder %v4527, %v145
    %v4529 = vsel %vm4528, 1, 0
    %v4530 = vcvt.s32.f32 %v4529
    %s4531 = sld [smem:[#allocation7 + $0x6]]
    %p4532 = scmp.ne.s32.totalorder %s4531, 0
    %s4533 = scalar_select %p4532, 1, 0
    %v4534 = vstv %s4533
    %vm4535 = vcmp.eq.s32.totalorder %v4534, 1
    %v4536 = vsel %vm4535, %v4530, %v4521
    %4537 = vmatprep.subr.mxu0 0.0
    %4538 = vmatpush1.msra.mxu0 %v356
    %4539 = vmatprep.subr.mxu0 0.0
    %4540 = vmatpush1.msra.mxu0 %v355
    %4541 = vmatprep.subr.mxu0 0.0
    %4542 = vmatpush1.msra.mxu0 %v354
    %4543 = vmatprep.subr.mxu0 0.0
    %4544 = vmatpush1.msra.mxu0 %v353
    %4545 = vmatprep.subr.mxu0 0.0
    %4546 = vmatpush1.msra.mxu0 %v352
    %4547 = vmatprep.subr.mxu0 0.0
    %4548 = vmatpush1.msra.mxu0 %v351
    %4549 = vmatprep.subr.mxu0 0.0
    %4550 = vmatpush1.msra.mxu0 %v350
    %4551 = vmatprep.subr.mxu0 0.0
    %4552 = vmatpush1.msra.mxu0 %v349
    %4553 = vmatprep.subr.mxu0 0.0
    %4554 = vmatpush1.msra.mxu0 %v348
    %4555 = vmatprep.subr.mxu0 0.0
    %4556 = vmatpush1.msra.mxu0 %v347
    %4557 = vmatprep.subr.mxu0 0.0
    %4558 = vmatpush1.msra.mxu0 %v346
    %4559 = vmatprep.subr.mxu0 0.0
    %4560 = vmatpush1.msra.mxu0 %v345
    %4561 = vmatprep.subr.mxu0 0.0
    %4562 = vmatpush1.msra.mxu0 %v344
    %4563 = vmatprep.subr.mxu0 0.0
    %4564 = vmatpush1.msra.mxu0 %v343
    %4565 = vmatprep.subr.mxu0 0.0
    %4566 = vmatpush1.msra.mxu0 %v342
    %4567 = vmatprep.subr.mxu0 0.0
    %4568 = vmatpush1.msra.mxu0 %v341
    %4569 = vmatprep.subr.mxu0 0.0
    %4570 = vmatpush2.msra.mxu0 0.0
    %4571 = vmatprep.subr.mxu0 0.0
    %4572 = vmatpush2.msra.mxu0 0.0
    %4573 = vmatprep.subr.mxu0 0.0
    %4574 = vmatpush2.msra.mxu0 0.0
    %4575 = vmatprep.subr.mxu0 0.0
    %4576 = vmatpush2.msra.mxu0 0.0
    %4577 = vmatprep.subr.mxu0 0.0
    %4578 = vmatpush2.msra.mxu0 0.0
    %4579 = vmatprep.subr.mxu0 0.0
    %4580 = vmatpush2.msra.mxu0 0.0
    %4581 = vmatprep.subr.mxu0 0.0
    %4582 = vmatpush2.msra.mxu0 0.0
    %4583 = vmatprep.subr.mxu0 0.0
    %4584 = vmatpush2.msra.mxu0 0.0
    %4585 = vmatprep.subr.mxu0 0.0
    %4586 = vmatpush2.msra.mxu0 0.0
    %4587 = vmatprep.subr.mxu0 0.0
    %4588 = vmatpush2.msra.mxu0 0.0
    %4589 = vmatprep.subr.mxu0 0.0
    %4590 = vmatpush2.msra.mxu0 0.0
    %4591 = vmatprep.subr.mxu0 0.0
    %4592 = vmatpush2.msra.mxu0 0.0
    %4593 = vmatprep.subr.mxu0 0.0
    %4594 = vmatpush2.msra.mxu0 0.0
    %4595 = vmatprep.subr.mxu0 0.0
    %4596 = vmatpush2.msra.mxu0 0.0
    %4597 = vmatprep.subr.mxu0 0.0
    %4598 = vmatpush2.msra.mxu0 0.0
    %4599 = vmatprep.subr.mxu0 0.0
    %4600 = vmatpush2.msra.mxu0 0.0
    %4601 = vmatprep.mubr.f32.mxu0 0.0
    %4602 = vmatmul.mubr.f32.gmra.mxu0 %v4536
    %v4603 = vpop.f32.mrf.mxu0
    %v4604 = vadd.f32 0.0, %v4603
    %v4605 = vpop.f32.mrf.mxu0
    %4606 = vdwg.mxu0
    %4607 = vmatprep.subr.mxu0 %v418
    %4608 = vmatpush1.msra.mxu0 %v417
    %4609 = vmatprep.subr.mxu0 %v414
    %4610 = vmatpush1.msra.mxu0 %v413
    %4611 = vmatprep.subr.mxu0 %v410
    %4612 = vmatpush1.msra.mxu0 %v409
    %4613 = vmatprep.subr.mxu0 %v406
    %4614 = vmatpush1.msra.mxu0 %v405
    %4615 = vmatprep.subr.mxu0 %v402
    %4616 = vmatpush1.msra.mxu0 %v401
    %4617 = vmatprep.subr.mxu0 %v398
    %4618 = vmatpush1.msra.mxu0 %v397
    %4619 = vmatprep.subr.mxu0 %v394
    %4620 = vmatpush1.msra.mxu0 %v393
    %4621 = vmatprep.subr.mxu0 %v390
    %4622 = vmatpush1.msra.mxu0 %v389
    %4623 = vmatprep.subr.mxu0 %v386
    %4624 = vmatpush1.msra.mxu0 %v385
    %4625 = vmatprep.subr.mxu0 %v382
    %4626 = vmatpush1.msra.mxu0 %v381
    %4627 = vmatprep.subr.mxu0 %v378
    %4628 = vmatpush1.msra.mxu0 %v377
    %4629 = vmatprep.subr.mxu0 %v374
    %4630 = vmatpush1.msra.mxu0 %v373
    %4631 = vmatprep.subr.mxu0 %v370
    %4632 = vmatpush1.msra.mxu0 %v369
    %4633 = vmatprep.subr.mxu0 %v366
    %4634 = vmatpush1.msra.mxu0 %v365
    %4635 = vmatprep.subr.mxu0 %v362
    %4636 = vmatpush1.msra.mxu0 %v361
    %4637 = vmatprep.subr.mxu0 %v358
    %4638 = vmatpush1.msra.mxu0 %v357
    %4639 = vmatprep.subr.mxu0 %v482
    %4640 = vmatpush2.msra.mxu0 %v481
    %4641 = vmatprep.subr.mxu0 %v478
    %4642 = vmatpush2.msra.mxu0 %v477
    %4643 = vmatprep.subr.mxu0 %v474
    %4644 = vmatpush2.msra.mxu0 %v473
    %4645 = vmatprep.subr.mxu0 %v470
    %4646 = vmatpush2.msra.mxu0 %v469
    %4647 = vmatprep.subr.mxu0 %v466
    %4648 = vmatpush2.msra.mxu0 %v465
    %4649 = vmatprep.subr.mxu0 %v462
    %4650 = vmatpush2.msra.mxu0 %v461
    %4651 = vmatprep.subr.mxu0 %v458
    %4652 = vmatpush2.msra.mxu0 %v457
    %4653 = vmatprep.subr.mxu0 %v454
    %4654 = vmatpush2.msra.mxu0 %v453
    %4655 = vmatprep.subr.mxu0 %v450
    %4656 = vmatpush2.msra.mxu0 %v449
    %4657 = vmatprep.subr.mxu0 %v446
    %4658 = vmatpush2.msra.mxu0 %v445
    %4659 = vmatprep.subr.mxu0 %v442
    %4660 = vmatpush2.msra.mxu0 %v441
    %4661 = vmatprep.subr.mxu0 %v438
    %4662 = vmatpush2.msra.mxu0 %v437
    %4663 = vmatprep.subr.mxu0 %v434
    %4664 = vmatpush2.msra.mxu0 %v433
    %4665 = vmatprep.subr.mxu0 %v430
    %4666 = vmatpush2.msra.mxu0 %v429
    %4667 = vmatprep.subr.mxu0 %v426
    %4668 = vmatpush2.msra.mxu0 %v425
    %4669 = vmatprep.subr.mxu0 %v422
    %4670 = vmatpush2.msra.mxu0 %v421
    %4671 = vmatprep.mubr.f32.mxu0 %v4428
    %4672 = vmatmul.mubr.f32.gmra.mxu0 %v4604
    %v4673 = vpop.f32.mrf.mxu0
    %v4674 = vadd.f32 %v173, %v4673
    %v4675 = vpop.f32.mrf.mxu0
    %v4676 = vadd.f32 %v177, %v4675
    %4677 = vdwg.mxu0
    %4678 = vmatprep.subr.mxu0 %v420
    %4679 = vmatpush1.msra.mxu0 %v419
    %4680 = vmatprep.subr.mxu0 %v416
    %4681 = vmatpush1.msra.mxu0 %v415
    %4682 = vmatprep.subr.mxu0 %v412
    %4683 = vmatpush1.msra.mxu0 %v411
    %4684 = vmatprep.subr.mxu0 %v408
    %4685 = vmatpush1.msra.mxu0 %v407
    %4686 = vmatprep.subr.mxu0 %v404
    %4687 = vmatpush1.msra.mxu0 %v403
    %4688 = vmatprep.subr.mxu0 %v400
    %4689 = vmatpush1.msra.mxu0 %v399
    %4690 = vmatprep.subr.mxu0 %v396
    %4691 = vmatpush1.msra.mxu0 %v395
    %4692 = vmatprep.subr.mxu0 %v392
    %4693 = vmatpush1.msra.mxu0 %v391
    %4694 = vmatprep.subr.mxu0 %v388
    %4695 = vmatpush1.msra.mxu0 %v387
    %4696 = vmatprep.subr.mxu0 %v384
    %4697 = vmatpush1.msra.mxu0 %v383
    %4698 = vmatprep.subr.mxu0 %v380
    %4699 = vmatpush1.msra.mxu0 %v379
    %4700 = vmatprep.subr.mxu0 %v376
    %4701 = vmatpush1.msra.mxu0 %v375
    %4702 = vmatprep.subr.mxu0 %v372
    %4703 = vmatpush1.msra.mxu0 %v371
    %4704 = vmatprep.subr.mxu0 %v368
    %4705 = vmatpush1.msra.mxu0 %v367
    %4706 = vmatprep.subr.mxu0 %v364
    %4707 = vmatpush1.msra.mxu0 %v363
    %4708 = vmatprep.subr.mxu0 %v360
    %4709 = vmatpush1.msra.mxu0 %v359
    %4710 = vmatprep.subr.mxu0 %v484
    %4711 = vmatpush2.msra.mxu0 %v483
    %4712 = vmatprep.subr.mxu0 %v480
    %4713 = vmatpush2.msra.mxu0 %v479
    %4714 = vmatprep.subr.mxu0 %v476
    %4715 = vmatpush2.msra.mxu0 %v475
    %4716 = vmatprep.subr.mxu0 %v472
    %4717 = vmatpush2.msra.mxu0 %v471
    %4718 = vmatprep.subr.mxu0 %v468
    %4719 = vmatpush2.msra.mxu0 %v467
    %4720 = vmatprep.subr.mxu0 %v464
    %4721 = vmatpush2.msra.mxu0 %v463
    %4722 = vmatprep.subr.mxu0 %v460
    %4723 = vmatpush2.msra.mxu0 %v459
    %4724 = vmatprep.subr.mxu0 %v456
    %4725 = vmatpush2.msra.mxu0 %v455
    %4726 = vmatprep.subr.mxu0 %v452
    %4727 = vmatpush2.msra.mxu0 %v451
    %4728 = vmatprep.subr.mxu0 %v448
    %4729 = vmatpush2.msra.mxu0 %v447
    %4730 = vmatprep.subr.mxu0 %v444
    %4731 = vmatpush2.msra.mxu0 %v443
    %4732 = vmatprep.subr.mxu0 %v440
    %4733 = vmatpush2.msra.mxu0 %v439
    %4734 = vmatprep.subr.mxu0 %v436
    %4735 = vmatpush2.msra.mxu0 %v435
    %4736 = vmatprep.subr.mxu0 %v432
    %4737 = vmatpush2.msra.mxu0 %v431
    %4738 = vmatprep.subr.mxu0 %v428
    %4739 = vmatpush2.msra.mxu0 %v427
    %4740 = vmatprep.subr.mxu0 %v424
    %4741 = vmatpush2.msra.mxu0 %v423
    %4742 = vmatprep.mubr.f32.mxu0 %v4428
    %4743 = vmatmul.mubr.f32.gmra.mxu0 %v4604
    %v4744 = vpop.f32.mrf.mxu0
    %v4745 = vadd.f32 %v181, %v4744
    %v4746 = vpop.f32.mrf.mxu0
    %v4747 = vadd.f32 %v185, %v4746
    %4748 = vdwg.mxu0
    %v4749 = vxor.u32 %v4674, 2147483648
    %v4750 = vmul.f32 %v4749, 1.442695
    %v4751 = vpow.pop %v4750
    %v4752 = vadd.f32 %v4751, 1.0
    %v4753 = vrcp.pop %v4752
    %v4754 = vmul.f32 1.0, %v4753
    %v4755 = vxor.u32 %v4676, 2147483648
    %v4756 = vmul.f32 %v4755, 1.442695
    %v4757 = vpow.pop %v4756
    %v4758 = vadd.f32 %v4757, 1.0
    %v4759 = vrcp.pop %v4758
    %v4760 = vmul.f32 1.0, %v4759
    %v4761 = vtanh.pop %v4745
    %v4762 = vxor.u32 %v4747, 2147483648
    %v4763 = vmul.f32 %v4762, 1.442695
    %v4764 = vpow.pop %v4763
    %v4765 = vadd.f32 %v4764, 1.0
    %v4766 = vrcp.pop %v4765
    %v4767 = vmul.f32 1.0, %v4766
    %v4768 = vmul.f32 %v4760, %v4426
    %v4769 = vmul.f32 %v4754, %v4761
    %v4770 = vadd.f32 %v4768, %v4769
    %v4771 = vtanh.pop %v4770
    %v4772 = vmul.f32 %v4767, %v4771
    %4773 = vmatprep.subr.mxu0 0.0
    %4774 = vmatpush1.msra.mxu0 %v500
    %4775 = vmatprep.subr.mxu0 0.0
    %4776 = vmatpush1.msra.mxu0 %v499
    %4777 = vmatprep.subr.mxu0 0.0
    %4778 = vmatpush1.msra.mxu0 %v498
    %4779 = vmatprep.subr.mxu0 0.0
    %4780 = vmatpush1.msra.mxu0 %v497
    %4781 = vmatprep.subr.mxu0 0.0
    %4782 = vmatpush1.msra.mxu0 %v496
    %4783 = vmatprep.subr.mxu0 0.0
    %4784 = vmatpush1.msra.mxu0 %v495
    %4785 = vmatprep.subr.mxu0 0.0
    %4786 = vmatpush1.msra.mxu0 %v494
    %4787 = vmatprep.subr.mxu0 0.0
    %4788 = vmatpush1.msra.mxu0 %v493
    %4789 = vmatprep.subr.mxu0 0.0
    %4790 = vmatpush1.msra.mxu0 %v492
    %4791 = vmatprep.subr.mxu0 0.0
    %4792 = vmatpush1.msra.mxu0 %v491
    %4793 = vmatprep.subr.mxu0 0.0
    %4794 = vmatpush1.msra.mxu0 %v490
    %4795 = vmatprep.subr.mxu0 0.0
    %4796 = vmatpush1.msra.mxu0 %v489
    %4797 = vmatprep.subr.mxu0 0.0
    %4798 = vmatpush1.msra.mxu0 %v488
    %4799 = vmatprep.subr.mxu0 0.0
    %4800 = vmatpush1.msra.mxu0 %v487
    %4801 = vmatprep.subr.mxu0 0.0
    %4802 = vmatpush1.msra.mxu0 %v486
    %4803 = vmatprep.subr.mxu0 0.0
    %4804 = vmatpush1.msra.mxu0 %v485
    %4805 = vmatprep.subr.mxu0 0.0
    %4806 = vmatpush2.msra.mxu0 0.0
    %4807 = vmatprep.subr.mxu0 0.0
    %4808 = vmatpush2.msra.mxu0 0.0
    %4809 = vmatprep.subr.mxu0 0.0
    %4810 = vmatpush2.msra.mxu0 0.0
    %4811 = vmatprep.subr.mxu0 0.0
    %4812 = vmatpush2.msra.mxu0 0.0
    %4813 = vmatprep.subr.mxu0 0.0
    %4814 = vmatpush2.msra.mxu0 0.0
    %4815 = vmatprep.subr.mxu0 0.0
    %4816 = vmatpush2.msra.mxu0 0.0
    %4817 = vmatprep.subr.mxu0 0.0
    %4818 = vmatpush2.msra.mxu0 0.0
    %4819 = vmatprep.subr.mxu0 0.0
    %4820 = vmatpush2.msra.mxu0 0.0
    %4821 = vmatprep.subr.mxu0 0.0
    %4822 = vmatpush2.msra.mxu0 0.0
    %4823 = vmatprep.subr.mxu0 0.0
    %4824 = vmatpush2.msra.mxu0 0.0
    %4825 = vmatprep.subr.mxu0 0.0
    %4826 = vmatpush2.msra.mxu0 0.0
    %4827 = vmatprep.subr.mxu0 0.0
    %4828 = vmatpush2.msra.mxu0 0.0
    %4829 = vmatprep.subr.mxu0 0.0
    %4830 = vmatpush2.msra.mxu0 0.0
    %4831 = vmatprep.subr.mxu0 0.0
    %4832 = vmatpush2.msra.mxu0 0.0
    %4833 = vmatprep.subr.mxu0 0.0
    %4834 = vmatpush2.msra.mxu0 0.0
    %4835 = vmatprep.subr.mxu0 0.0
    %4836 = vmatpush2.msra.mxu0 0.0
    %4837 = vmatprep.mubr.f32.mxu0 0.0
    %4838 = vmatmul.mubr.f32.gmra.mxu0 %v4772
    %v4839 = vpop.f32.mrf.mxu0
    %v4840 = vadd.f32 %v195, %v4839
    %v4841 = vpop.f32.mrf.mxu0
    %4842 = vdwg.mxu0
    %s4843 = scalar_lea.vmem %s11, 56
    %4844 = vst [vmem:[%s4843] sm:$0xff] %v4840
    // Predicated region
    $region78: #{seq2seq_forward.1} parent=1 // pred_check
      _
    $region79: #{seq2seq_forward.1} parent=1 // pred_check_branch
      %4846 = sbr.rel (0) target = $region81
    $region80: #{seq2seq_forward.1} parent=1 // pred_region
      _
    $region81: #{seq2seq_forward.1} parent=1 // pred_fallthru
      _
    // Predicated region
    $region82: #{seq2seq_forward.1} parent=1 // pred_check
      _
    $region83: #{seq2seq_forward.1} parent=1 // pred_check_branch
      %4848 = sbr.rel (0) target = $region85
    $region84: #{seq2seq_forward.1} parent=1 // pred_region
      _
    $region85: #{seq2seq_forward.1} parent=1 // pred_fallthru
      _
    %4849 = vsyncpa [#allocation3], 1
    %4850 = vsyncpa [#allocation10], 1
    %4851 = vsyncpa [#allocation13], 1
    %4852 = vsyncpa [#allocation4], 1
    %4853 = vsyncpa [#allocation6], 1

</llo_original>
